<compile_context>
chip_gen: v6e
topology: v6e:2x2x1
jax: 0.10.0
libtpu: 0.0.40
codegen_flags: <defaults>
</compile_context>

<pallas_src>
import functools

import jax
import jax.numpy as jnp
from jax import lax
from jax.experimental import pallas as pl
from jax.experimental.pallas import tpu as pltpu

KW = 4             # conv kernel size
PADW = 2           # int(ceil((4 - 1)/2)) -- the "OriPix2Pix" padding
BN_EPS = 1e-5
LRELU_SLOPE = 0.2

TM_MAX = 512                     # rows of the im2col matrix per tile
VMEM_LIMIT = 48 * 1024 * 1024    # fits v7x (64 MiB physical) and v5e/v6e


def _round_up(x, m):
    return ((x + m - 1) // m) * m


def _k_tiling(k_dim):
    """Choose (k_pad, tk).  Avoid zero-padding K when possible (layer 0)."""
    if k_dim % 128 == 0:
        for t in (512, 256, 128):
            if k_dim % t == 0:
                return k_dim, t
    if k_dim <= 1024:
        # A single full-K block is legal (block dim == array dim); no pad pass.
        return k_dim, k_dim
    k_pad = _round_up(k_dim, 128)
    for t in (512, 256, 128):
        if k_pad % t == 0:
            return k_pad, t
    return k_pad, 128


# ---------------------------------------------------------------------------
# Kernel 1: tiled im2col-matmul conv
#   grid = (num_m, num_n, num_k); fp32 accumulator scratch.
#   Non-BN layers: bias (+ optional LeakyReLU) fused into the epilogue.
#   BN layers: no bias (it cancels under BatchNorm); per-tile fp32 sum /
#   sum-of-squares of the pre-BN output are emitted instead.
# ---------------------------------------------------------------------------
def _conv_matmul_kernel(use_bn, fuse_lrelu, *refs):
    if use_bn:
        a_ref, w_ref, y_ref, sum_ref, sq_ref, acc_ref = refs
        b_ref = None
    else:
        a_ref, w_ref, b_ref, y_ref, acc_ref = refs
        sum_ref = sq_ref = None

    # NOTE: program_id / num_programs are read at the kernel top level only
    # (never inside a pl.when body) -- required for interpret-mode lowering.
    k = pl.program_id(2)
    k_last = pl.num_programs(2) - 1

    @pl.when(k == 0)
    def _init():
        acc_ref[...] = jnp.zeros_like(acc_ref)

    acc_ref[...] += jnp.dot(a_ref[...], w_ref[...],
                            preferred_element_type=jnp.float32)

    @pl.when(k == k_last)
    def _finalize():
        y = acc_ref[...]                                   # fp32
        if use_bn:
            # Conv bias cancels exactly under training-mode BatchNorm, so it is
            # neither added nor included in the statistics.  Zero-padded rows
            # of A are exactly zero here, so no row mask is needed; the host
            # divides by the true (un-padded) row count.
            sum_ref[...] = jnp.broadcast_to(
                jnp.sum(y, axis=0, keepdims=True), sum_ref.shape)
            sq_ref[...] = jnp.broadcast_to(
                jnp.sum(y * y, axis=0, keepdims=True), sq_ref.shape)
        else:
            y = y + b_ref[...]
        if fuse_lrelu:
            y = jnp.where(y > 0, y, LRELU_SLOPE * y)
        y_ref[...] = y.astype(y_ref.dtype)


# ---------------------------------------------------------------------------
# Kernel 2: BatchNorm apply (+ LeakyReLU), tiled elementwise, bf16 in / bf16 out.
#   out = y * scale + shift ; scale/shift are per-channel (1, Cout_pad) fp32.
# ---------------------------------------------------------------------------
def _bn_apply_kernel(use_lrelu, y_ref, scale_ref, shift_ref, o_ref):
    y = y_ref[...].astype(jnp.float32) * scale_ref[...] + shift_ref[...]
    if use_lrelu:
        y = jnp.where(y > 0, y, LRELU_SLOPE * y)
    o_ref[...] = y.astype(o_ref.dtype)


# ---------------------------------------------------------------------------
# One conv layer = bf16 patch extraction (XLA) + Pallas matmul [+ BN apply].
# ---------------------------------------------------------------------------
def _conv_layer(x_nhwc, w_oihw, bias, stride, *, gamma=None, beta=None,
                use_bn=False, use_lrelu=True, out_dtype=jnp.bfloat16):
    n, _, _, cin = x_nhwc.shape
    cout = w_oihw.shape[0]

    # im2col in bf16.  K (feature) ordering of conv_general_dilated_patches is
    # channel-major: K index = cin*(KW*KW) + kh*KW + kw.
    # TODO(synk): in-kernel implicit-GEMM patch formation (halo'd row-strip
    # DMA + 16 tap matmuls) to kill this HBM-materialized A matrix.
    patches = lax.conv_general_dilated_patches(
        x_nhwc.astype(jnp.bfloat16),
        filter_shape=(KW, KW),
        window_strides=(stride, stride),
        padding=((PADW, PADW), (PADW, PADW)),
        dimension_numbers=("NHWC", "HWIO", "NHWC"))
    _, ho, wo, k_dim = patches.shape
    m_dim = n * ho * wo
    patches = patches.reshape(m_dim, k_dim)

    # Tiling: lane-dense channels (>=128), M tiles multiples of 16,
    # K tiles multiples of 128 (or one full-K block so layer 0 is never padded).
    k_pad, tk = _k_tiling(k_dim)
    n_pad = _round_up(cout, 128)
    tn = 256 if n_pad % 256 == 0 else 128
    tm = min(TM_MAX, _round_up(m_dim, 16))
    if _round_up(m_dim, tm) // tm == 1 and n_pad // tn == 1 and tm >= 32:
        # Guarantee >=2 independent (m, c) tiles so v7x's 2 TCs both get work.
        tm = _round_up((m_dim + 1) // 2, 16)
    m_pad = _round_up(m_dim, tm)
    num_m, num_n, num_k = m_pad // tm, n_pad // tn, k_pad // tk

    a = patches
    if (m_pad, k_pad) != (m_dim, k_dim):
        a = jnp.pad(a, ((0, m_pad - m_dim), (0, k_pad - k_dim)))

    # (Cout, Cin, kh, kw) -> (Cin, kh, kw, Cout) -> (K, Cout): matches the
    # channel-major tap order of the patches.
    wk = jnp.transpose(w_oihw, (1, 2, 3, 0)).reshape(k_dim, cout)
    wk = jnp.pad(wk, ((0, k_pad - k_dim), (0, n_pad - cout))).astype(jnp.bfloat16)

    kernel = functools.partial(_conv_matmul_kernel, use_bn,
                               use_lrelu and not use_bn)
    y_dtype = jnp.bfloat16 if use_bn else out_dtype
    y_spec = pl.BlockSpec((tm, tn), lambda m, c, k: (m, c))

    in_specs = [pl.BlockSpec((tm, tk), lambda m, c, k: (m, k)),
                pl.BlockSpec((tk, tn), lambda m, c, k: (k, c))]
    args = [a, wk]
    if use_bn:
        out_shape = (jax.ShapeDtypeStruct((m_pad, n_pad), y_dtype),
                     jax.ShapeDtypeStruct((num_m * 8, n_pad), jnp.float32),
                     jax.ShapeDtypeStruct((num_m * 8, n_pad), jnp.float32))
        out_specs = (y_spec,
                     pl.BlockSpec((8, tn), lambda m, c, k: (m, c)),
                     pl.BlockSpec((8, tn), lambda m, c, k: (m, c)))
    else:
        b2 = jnp.pad(bias.reshape(1, cout).astype(jnp.float32),
                     ((0, 0), (0, n_pad - cout)))
        in_specs.append(pl.BlockSpec((1, tn), lambda m, c, k: (0, c)))
        args.append(b2)
        out_shape = jax.ShapeDtypeStruct((m_pad, n_pad), y_dtype)
        out_specs = y_spec

    result = pl.pallas_call(
        kernel,
        out_shape=out_shape,
        grid_spec=pltpu.PrefetchScalarGridSpec(
            num_scalar_prefetch=0,
            grid=(num_m, num_n, num_k),
            in_specs=in_specs,
            out_specs=out_specs,
            scratch_shapes=[pltpu.VMEM((tm, tn), jnp.float32)]),
        compiler_params=pltpu.CompilerParams(
            dimension_semantics=("parallel", "parallel", "arbitrary"),
            vmem_limit_bytes=VMEM_LIMIT),
    )(*args)

    if use_bn:
        y, psum, psq = result
        # Finalize statistics: tiny per-channel reduction over the M tiles.
        sums = psum.reshape(num_m, 8, n_pad)[:, 0, :].sum(axis=0)
        sqs = psq.reshape(num_m, 8, n_pad)[:, 0, :].sum(axis=0)
        mean = (sums / float(m_dim))[None, :]
        var = jnp.maximum(sqs[None, :] / float(m_dim) - mean * mean, 0.0)
        gamma_p = jnp.pad(gamma.reshape(1, cout).astype(jnp.float32),
                          ((0, 0), (0, n_pad - cout)))
        beta_p = jnp.pad(beta.reshape(1, cout).astype(jnp.float32),
                         ((0, 0), (0, n_pad - cout)))
        scale = gamma_p * lax.rsqrt(var + BN_EPS)
        shift = beta_p - mean * scale

        y = pl.pallas_call(
            functools.partial(_bn_apply_kernel, use_lrelu),
            out_shape=jax.ShapeDtypeStruct((m_pad, n_pad), out_dtype),
            grid_spec=pltpu.PrefetchScalarGridSpec(
                num_scalar_prefetch=0,
                grid=(num_m, num_n),
                in_specs=[pl.BlockSpec((tm, tn), lambda m, c: (m, c)),
                          pl.BlockSpec((1, tn), lambda m, c: (0, c)),
                          pl.BlockSpec((1, tn), lambda m, c: (0, c))],
                out_specs=pl.BlockSpec((tm, tn), lambda m, c: (m, c))),
            compiler_params=pltpu.CompilerParams(
                dimension_semantics=("parallel", "parallel"),
                vmem_limit_bytes=VMEM_LIMIT),
        )(y, scale, shift)
    else:
        y = result

    return y[:m_dim, :cout].reshape(n, ho, wo, cout)


# ---------------------------------------------------------------------------
# Parameter construction (pix2pix-style N(0, 0.02) init) + layer specs.
# ---------------------------------------------------------------------------
def init_params(key, input_nc, ndf=64, n_layers=3):
    arch = [(input_nc, ndf, 2, False, True)]
    nf = ndf
    for _ in range(1, n_layers):
        nf_prev, nf = nf, min(nf * 2, 512)
        arch.append((nf_prev, nf, 2, True, True))
    nf_prev, nf = nf, min(nf * 2, 512)
    arch.append((nf_prev, nf, 1, True, True))
    arch.append((nf, 1, 1, False, False))

    params, specs = [], []
    for (cin, cout, stride, use_bn, use_lrelu) in arch:
        key, kw_, kb_ = jax.random.split(key, 3)
        p = dict(
            w=0.02 * jax.random.normal(kw_, (cout, cin, KW, KW), jnp.float32),
            b=0.02 * jax.random.normal(kb_, (cout,), jnp.float32))
        if use_bn:
            p["gamma"] = jnp.ones((cout,), jnp.float32)
            p["beta"] = jnp.zeros((cout,), jnp.float32)
        params.append(p)
        specs.append((stride, use_bn, use_lrelu))
    return params, tuple(specs)


@functools.partial(jax.jit, static_argnames=("specs",))
def nlayer_discriminator_forward(x_nchw, params, specs):
    """x_nchw: (N, C, H, W) float32 -> (N, 1, H', W') patch logits."""
    x = jnp.transpose(x_nchw, (0, 2, 3, 1)).astype(jnp.float32)  # NCHW -> NHWC
    n_total = len(specs)
    for idx, (spec, p) in enumerate(zip(specs, params)):
        stride, use_bn, use_lrelu = spec
        last = idx == n_total - 1
        x = _conv_layer(
            x, p["w"], p["b"], stride,
            gamma=p.get("gamma"), beta=p.get("beta"),
            use_bn=use_bn, use_lrelu=use_lrelu,
            out_dtype=jnp.float32 if last else jnp.bfloat16)
    return jnp.transpose(x, (0, 3, 1, 2))  # NHWC -> NCHW


# ---------------------------------------------------------------------------
# Pure-JAX fp32 reference (training-mode BatchNorm, i.e. batch statistics).
# ---------------------------------------------------------------------------
def _reference_forward(x_nchw, params, specs):
    x = x_nchw.astype(jnp.float32)
    for p, (stride, use_bn, use_lrelu) in zip(params, specs):
        x = lax.conv_general_dilated(
            x, p["w"], window_strides=(stride, stride),
            padding=((PADW, PADW), (PADW, PADW)),
            dimension_numbers=("NCHW", "OIHW", "NCHW"))
        x = x + p["b"][None, :, None, None]
        if use_bn:
            mean = jnp.mean(x, axis=(0, 2, 3), keepdims=True)
            var = jnp.mean((x - mean) ** 2, axis=(0, 2, 3), keepdims=True)
            x = (x - mean) * lax.rsqrt(var + BN_EPS)
            x = (x * p["gamma"][None, :, None, None]
                 + p["beta"][None, :, None, None])
        if use_lrelu:
            x = jnp.where(x > 0, x, LRELU_SLOPE * x)
    return x


if __name__ == "__main__":
    key = jax.random.PRNGKey(0)
    k_in, k_par = jax.random.split(key)

    # Small shapes consistent with the module: batch=2, input_nc=3, 16x16, ndf=8.
    batch, input_nc, spatial, ndf, n_layers = 2, 3, 16, 8, 3
    x = jax.random.normal(k_in, (batch, input_nc, spatial, spatial), jnp.float32)

    params, specs = init_params(k_par, input_nc, ndf=ndf, n_layers=n_layers)

    out = nlayer_discriminator_forward(x, params, specs=specs)
    out = jax.block_until_ready(out)

    # 16 -> 9 -> 5 -> 3 -> 4 -> 5 spatial; final channels = 1.
    assert out.shape == (batch, 1, 5, 5), out.shape
    assert bool(jnp.all(jnp.isfinite(out)))

    # Loose numerical check vs the fp32 reference (kernel uses bf16 activations).
    ref = _reference_forward(x, params, specs)
    err = float(jnp.max(jnp.abs(out.astype(jnp.float32) - ref)))
    tol = 0.15 * float(jnp.max(jnp.abs(ref))) + 0.05
    assert err <= tol, (err, tol)

    print("KERNEL_OK")
</pallas_src>

<mosaic_0001>
module attributes {stable_mosaic.version = 11 : i64} {
  func.func @_bn_apply_kernel(%arg0: i32, %arg1: i32, %arg2: memref<32x128xbf16, #tpu.memory_space<vmem>>, %arg3: memref<1x128xf32, #tpu.memory_space<vmem>>, %arg4: memref<1x128xf32, #tpu.memory_space<vmem>>, %arg5: memref<32x128xbf16, #tpu.memory_space<vmem>>) attributes {dimension_semantics = [#tpu.dimension_semantics<parallel>, #tpu.dimension_semantics<parallel>], iteration_bounds = array<i64: 2, 1>, scalar_prefetch = 0 : i64, scratch_operands = 0 : i64, tpu.core_type = #tpu.core_type<tc>, window_params = [{transform_indices = @transform_0, window_bounds = array<i64: 32, 128>}, {transform_indices = @transform_1, window_bounds = array<i64: 1, 128>}, {transform_indices = @transform_2, window_bounds = array<i64: 1, 128>}, {transform_indices = @transform_3, window_bounds = array<i64: 32, 128>}]} {
    %c0 = arith.constant 0 : index
    %c0_0 = arith.constant 0 : index
    %0 = vector.load %arg2[%c0, %c0_0] : memref<32x128xbf16, #tpu.memory_space<vmem>>, vector<32x128xbf16>
    %1 = arith.extf %0 : vector<32x128xbf16> to vector<32x128xf32>
    %c0_1 = arith.constant 0 : index
    %c0_2 = arith.constant 0 : index
    %2 = vector.load %arg3[%c0_1, %c0_2] : memref<1x128xf32, #tpu.memory_space<vmem>>, vector<1x128xf32>
    %3 = vector.broadcast %2 : vector<1x128xf32> to vector<32x128xf32>
    %4 = arith.mulf %1, %3 : vector<32x128xf32>
    %c0_3 = arith.constant 0 : index
    %c0_4 = arith.constant 0 : index
    %5 = vector.load %arg4[%c0_3, %c0_4] : memref<1x128xf32, #tpu.memory_space<vmem>>, vector<1x128xf32>
    %6 = vector.broadcast %5 : vector<1x128xf32> to vector<32x128xf32>
    %7 = arith.addf %4, %6 : vector<32x128xf32>
    %cst = arith.constant 0.000000e+00 : f32
    %8 = vector.broadcast %cst : f32 to vector<32x128xf32>
    %9 = arith.cmpf ogt, %7, %8 : vector<32x128xf32>
    %cst_5 = arith.constant 2.000000e-01 : f32
    %10 = vector.broadcast %cst_5 : f32 to vector<32x128xf32>
    %11 = arith.mulf %10, %7 : vector<32x128xf32>
    %12 = arith.select %9, %7, %11 : vector<32x128xi1>, vector<32x128xf32>
    %13 = arith.truncf %12 : vector<32x128xf32> to vector<32x128xbf16>
    %c0_6 = arith.constant 0 : index
    %c0_7 = arith.constant 0 : index
    %14 = vector.load %arg5[%c0_6, %c0_7] : memref<32x128xbf16, #tpu.memory_space<vmem>>, vector<32x128xbf16>
    tpu.vector_store %arg5[%c0_6, %c0_7], %13 {strides = array<i32>} : memref<32x128xbf16, #tpu.memory_space<vmem>>, vector<32x128xbf16>,
    return
  }
  func.func @transform_0(%arg0: i32, %arg1: i32) -> (i32, i32) {
    %c0_i32 = arith.constant 0 : i32
    return %arg0, %arg1 : i32, i32
  }
  func.func @transform_1(%arg0: i32, %arg1: i32) -> (i32, i32) {
    %c0_i32 = arith.constant 0 : i32
    %c0_i32_0 = arith.constant 0 : i32
    return %c0_i32, %arg1 : i32, i32
  }
  func.func @transform_2(%arg0: i32, %arg1: i32) -> (i32, i32) {
    %c0_i32 = arith.constant 0 : i32
    %c0_i32_0 = arith.constant 0 : i32
    return %c0_i32, %arg1 : i32, i32
  }
  func.func @transform_3(%arg0: i32, %arg1: i32) -> (i32, i32) {
    %c0_i32 = arith.constant 0 : i32
    return %arg0, %arg1 : i32, i32
  }
}

module attributes {stable_mosaic.version = 11 : i64} {
  func.func @_conv_matmul_kernel(%arg0: i32, %arg1: i32, %arg2: i32, %arg3: memref<96x48xbf16, #tpu.memory_space<vmem>>, %arg4: memref<48x128xbf16, #tpu.memory_space<vmem>>, %arg5: memref<1x128xf32, #tpu.memory_space<vmem>>, %arg6: memref<96x128xbf16, #tpu.memory_space<vmem>>, %arg7: memref<96x128xf32, #tpu.memory_space<vmem>>) attributes {dimension_semantics = [#tpu.dimension_semantics<parallel>, #tpu.dimension_semantics<parallel>, #tpu.dimension_semantics<arbitrary>], iteration_bounds = array<i64: 2, 1, 1>, scalar_prefetch = 0 : i64, scratch_operands = 1 : i64, tpu.core_type = #tpu.core_type<tc>, window_params = [{transform_indices = @transform_0, window_bounds = array<i64: 96, 48>}, {transform_indices = @transform_1, window_bounds = array<i64: 48, 128>}, {transform_indices = @transform_2, window_bounds = array<i64: 1, 128>}, {transform_indices = @transform_3, window_bounds = array<i64: 96, 128>}]} {
    %c0_i32 = arith.constant 0 : i32
    %0 = arith.cmpi eq, %arg2, %c0_i32 : i32
    %1 = arith.extui %0 : i1 to i32
    %c0_i32_0 = arith.constant 0 : i32
    %2 = arith.cmpi ne, %1, %c0_i32_0 : i32
    scf.if %2 {
      %cst_10 = arith.constant 0.000000e+00 : f32
      %12 = vector.broadcast %cst_10 : f32 to vector<96x128xf32>
      %c0_11 = arith.constant 0 : index
      %c0_12 = arith.constant 0 : index
      %13 = vector.load %arg7[%c0_11, %c0_12] : memref<96x128xf32, #tpu.memory_space<vmem>>, vector<96x128xf32>
      tpu.vector_store %arg7[%c0_11, %c0_12], %12 {strides = array<i32>} : memref<96x128xf32, #tpu.memory_space<vmem>>, vector<96x128xf32>,
    } else {
    }
    %c0 = arith.constant 0 : index
    %c0_1 = arith.constant 0 : index
    %3 = vector.load %arg7[%c0, %c0_1] : memref<96x128xf32, #tpu.memory_space<vmem>>, vector<96x128xf32>
    %c0_2 = arith.constant 0 : index
    %c0_3 = arith.constant 0 : index
    %4 = vector.load %arg3[%c0_2, %c0_3] : memref<96x48xbf16, #tpu.memory_space<vmem>>, vector<96x48xbf16>
    %c0_4 = arith.constant 0 : index
    %c0_5 = arith.constant 0 : index
    %5 = vector.load %arg4[%c0_4, %c0_5] : memref<48x128xbf16, #tpu.memory_space<vmem>>, vector<48x128xbf16>
    %cst = arith.constant dense<0.000000e+00> : vector<96x128xf32>
    %6 = tpu.matmul %4, %5, %cst {dimension_numbers = #tpu.dot_dimension_numbers<[1], [0], [0], [1], [0, 0, 1, 1], [], []>} : vector<96x48xbf16>, vector<48x128xbf16>, vector<96x128xf32> -> vector<96x128xf32>
    %7 = arith.addf %3, %6 : vector<96x128xf32>
    %c0_6 = arith.constant 0 : index
    %c0_7 = arith.constant 0 : index
    %8 = vector.load %arg7[%c0_6, %c0_7] : memref<96x128xf32, #tpu.memory_space<vmem>>, vector<96x128xf32>
    tpu.vector_store %arg7[%c0_6, %c0_7], %7 {strides = array<i32>} : memref<96x128xf32, #tpu.memory_space<vmem>>, vector<96x128xf32>,
    %c0_i32_8 = arith.constant 0 : i32
    %9 = arith.cmpi eq, %arg2, %c0_i32_8 : i32
    %10 = arith.extui %9 : i1 to i32
    %c0_i32_9 = arith.constant 0 : i32
    %11 = arith.cmpi ne, %10, %c0_i32_9 : i32
    scf.if %11 {
      %c0_10 = arith.constant 0 : index
      %c0_11 = arith.constant 0 : index
      %12 = vector.load %arg7[%c0_10, %c0_11] : memref<96x128xf32, #tpu.memory_space<vmem>>, vector<96x128xf32>
      %c0_12 = arith.constant 0 : index
      %c0_13 = arith.constant 0 : index
      %13 = vector.load %arg5[%c0_12, %c0_13] : memref<1x128xf32, #tpu.memory_space<vmem>>, vector<1x128xf32>
      %14 = vector.broadcast %13 : vector<1x128xf32> to vector<96x128xf32>
      %15 = arith.addf %12, %14 : vector<96x128xf32>
      %cst_14 = arith.constant 0.000000e+00 : f32
      %16 = vector.broadcast %cst_14 : f32 to vector<96x128xf32>
      %17 = arith.cmpf ogt, %15, %16 : vector<96x128xf32>
      %cst_15 = arith.constant 2.000000e-01 : f32
      %18 = vector.broadcast %cst_15 : f32 to vector<96x128xf32>
      %19 = arith.mulf %18, %15 : vector<96x128xf32>
      %20 = arith.select %17, %15, %19 : vector<96x128xi1>, vector<96x128xf32>
      %21 = arith.truncf %20 : vector<96x128xf32> to vector<96x128xbf16>
      %c0_16 = arith.constant 0 : index
      %c0_17 = arith.constant 0 : index
      %22 = vector.load %arg6[%c0_16, %c0_17] : memref<96x128xbf16, #tpu.memory_space<vmem>>, vector<96x128xbf16>
      tpu.vector_store %arg6[%c0_16, %c0_17], %21 {strides = array<i32>} : memref<96x128xbf16, #tpu.memory_space<vmem>>, vector<96x128xbf16>,
    } else {
    }
    return
  }
  func.func @transform_0(%arg0: i32, %arg1: i32, %arg2: i32) -> (i32, i32) {
    %c0_i32 = arith.constant 0 : i32
    return %arg0, %arg2 : i32, i32
  }
  func.func @transform_1(%arg0: i32, %arg1: i32, %arg2: i32) -> (i32, i32) {
    %c0_i32 = arith.constant 0 : i32
    return %arg2, %arg1 : i32, i32
  }
  func.func @transform_2(%arg0: i32, %arg1: i32, %arg2: i32) -> (i32, i32) {
    %c0_i32 = arith.constant 0 : i32
    %c0_i32_0 = arith.constant 0 : i32
    return %c0_i32, %arg1 : i32, i32
  }
  func.func @transform_3(%arg0: i32, %arg1: i32, %arg2: i32) -> (i32, i32) {
    %c0_i32 = arith.constant 0 : i32
    return %arg0, %arg1 : i32, i32
  }
}

module attributes {stable_mosaic.version = 11 : i64} {
  func.func @_conv_matmul_kernel(%arg0: i32, %arg1: i32, %arg2: i32, %arg3: memref<32x128xbf16, #tpu.memory_space<vmem>>, %arg4: memref<128x128xbf16, #tpu.memory_space<vmem>>, %arg5: memref<32x128xbf16, #tpu.memory_space<vmem>>, %arg6: memref<8x128xf32, #tpu.memory_space<vmem>>, %arg7: memref<8x128xf32, #tpu.memory_space<vmem>>, %arg8: memref<32x128xf32, #tpu.memory_space<vmem>>) attributes {dimension_semantics = [#tpu.dimension_semantics<parallel>, #tpu.dimension_semantics<parallel>, #tpu.dimension_semantics<arbitrary>], iteration_bounds = array<i64: 2, 1, 1>, scalar_prefetch = 0 : i64, scratch_operands = 1 : i64, tpu.core_type = #tpu.core_type<tc>, window_params = [{transform_indices = @transform_0, window_bounds = array<i64: 32, 128>}, {transform_indices = @transform_1, window_bounds = array<i64: 128, 128>}, {transform_indices = @transform_2, window_bounds = array<i64: 32, 128>}, {transform_indices = @transform_3, window_bounds = array<i64: 8, 128>}, {transform_indices = @transform_4, window_bounds = array<i64: 8, 128>}]} {
    %c0_i32 = arith.constant 0 : i32
    %0 = arith.cmpi eq, %arg2, %c0_i32 : i32
    %1 = arith.extui %0 : i1 to i32
    %c0_i32_0 = arith.constant 0 : i32
    %2 = arith.cmpi ne, %1, %c0_i32_0 : i32
    scf.if %2 {
      %cst_10 = arith.constant 0.000000e+00 : f32
      %12 = vector.broadcast %cst_10 : f32 to vector<32x128xf32>
      %c0_11 = arith.constant 0 : index
      %c0_12 = arith.constant 0 : index
      %13 = vector.load %arg8[%c0_11, %c0_12] : memref<32x128xf32, #tpu.memory_space<vmem>>, vector<32x128xf32>
      tpu.vector_store %arg8[%c0_11, %c0_12], %12 {strides = array<i32>} : memref<32x128xf32, #tpu.memory_space<vmem>>, vector<32x128xf32>,
    } else {
    }
    %c0 = arith.constant 0 : index
    %c0_1 = arith.constant 0 : index
    %3 = vector.load %arg8[%c0, %c0_1] : memref<32x128xf32, #tpu.memory_space<vmem>>, vector<32x128xf32>
    %c0_2 = arith.constant 0 : index
    %c0_3 = arith.constant 0 : index
    %4 = vector.load %arg3[%c0_2, %c0_3] : memref<32x128xbf16, #tpu.memory_space<vmem>>, vector<32x128xbf16>
    %c0_4 = arith.constant 0 : index
    %c0_5 = arith.constant 0 : index
    %5 = vector.load %arg4[%c0_4, %c0_5] : memref<128x128xbf16, #tpu.memory_space<vmem>>, vector<128x128xbf16>
    %cst = arith.constant dense<0.000000e+00> : vector<32x128xf32>
    %6 = tpu.matmul %4, %5, %cst {dimension_numbers = #tpu.dot_dimension_numbers<[1], [0], [0], [1], [0, 0, 1, 1], [], []>} : vector<32x128xbf16>, vector<128x128xbf16>, vector<32x128xf32> -> vector<32x128xf32>
    %7 = arith.addf %3, %6 : vector<32x128xf32>
    %c0_6 = arith.constant 0 : index
    %c0_7 = arith.constant 0 : index
    %8 = vector.load %arg8[%c0_6, %c0_7] : memref<32x128xf32, #tpu.memory_space<vmem>>, vector<32x128xf32>
    tpu.vector_store %arg8[%c0_6, %c0_7], %7 {strides = array<i32>} : memref<32x128xf32, #tpu.memory_space<vmem>>, vector<32x128xf32>,
    %c0_i32_8 = arith.constant 0 : i32
    %9 = arith.cmpi eq, %arg2, %c0_i32_8 : i32
    %10 = arith.extui %9 : i1 to i32
    %c0_i32_9 = arith.constant 0 : i32
    %11 = arith.cmpi ne, %10, %c0_i32_9 : i32
    scf.if %11 {
      %c0_10 = arith.constant 0 : index
      %c0_11 = arith.constant 0 : index
      %12 = vector.load %arg8[%c0_10, %c0_11] : memref<32x128xf32, #tpu.memory_space<vmem>>, vector<32x128xf32>
      %cst_12 = arith.constant dense<0.000000e+00> : vector<128xf32>
      %13 = vector.multi_reduction <add>, %12, %cst_12 [0] : vector<32x128xf32> to vector<128xf32>
      %14 = vector.shape_cast %13 : vector<128xf32> to vector<1x128xf32>
      %15 = vector.shape_cast %14 : vector<1x128xf32> to vector<1x128xf32>
      %16 = vector.broadcast %15 : vector<1x128xf32> to vector<8x128xf32>
      %c0_13 = arith.constant 0 : index
      %c0_14 = arith.constant 0 : index
      %17 = vector.load %arg6[%c0_13, %c0_14] : memref<8x128xf32, #tpu.memory_space<vmem>>, vector<8x128xf32>
      tpu.vector_store %arg6[%c0_13, %c0_14], %16 {strides = array<i32>} : memref<8x128xf32, #tpu.memory_space<vmem>>, vector<8x128xf32>,
      %18 = arith.mulf %12, %12 : vector<32x128xf32>
      %cst_15 = arith.constant dense<0.000000e+00> : vector<128xf32>
      %19 = vector.multi_reduction <add>, %18, %cst_15 [0] : vector<32x128xf32> to vector<128xf32>
      %20 = vector.shape_cast %19 : vector<128xf32> to vector<1x128xf32>
      %21 = vector.shape_cast %20 : vector<1x128xf32> to vector<1x128xf32>
      %22 = vector.broadcast %21 : vector<1x128xf32> to vector<8x128xf32>
      %c0_16 = arith.constant 0 : index
      %c0_17 = arith.constant 0 : index
      %23 = vector.load %arg7[%c0_16, %c0_17] : memref<8x128xf32, #tpu.memory_space<vmem>>, vector<8x128xf32>
      tpu.vector_store %arg7[%c0_16, %c0_17], %22 {strides = array<i32>} : memref<8x128xf32, #tpu.memory_space<vmem>>, vector<8x128xf32>,
      %24 = arith.truncf %12 : vector<32x128xf32> to vector<32x128xbf16>
      %c0_18 = arith.constant 0 : index
      %c0_19 = arith.constant 0 : index
      %25 = vector.load %arg5[%c0_18, %c0_19] : memref<32x128xbf16, #tpu.memory_space<vmem>>, vector<32x128xbf16>
      tpu.vector_store %arg5[%c0_18, %c0_19], %24 {strides = array<i32>} : memref<32x128xbf16, #tpu.memory_space<vmem>>, vector<32x128xbf16>,
    } else {
    }
    return
  }
  func.func @transform_0(%arg0: i32, %arg1: i32, %arg2: i32) -> (i32, i32) {
    %c0_i32 = arith.constant 0 : i32
    return %arg0, %arg2 : i32, i32
  }
  func.func @transform_1(%arg0: i32, %arg1: i32, %arg2: i32) -> (i32, i32) {
    %c0_i32 = arith.constant 0 : i32
    return %arg2, %arg1 : i32, i32
  }
  func.func @transform_2(%arg0: i32, %arg1: i32, %arg2: i32) -> (i32, i32) {
    %c0_i32 = arith.constant 0 : i32
    return %arg0, %arg1 : i32, i32
  }
  func.func @transform_3(%arg0: i32, %arg1: i32, %arg2: i32) -> (i32, i32) {
    %c0_i32 = arith.constant 0 : i32
    return %arg0, %arg1 : i32, i32
  }
  func.func @transform_4(%arg0: i32, %arg1: i32, %arg2: i32) -> (i32, i32) {
    %c0_i32 = arith.constant 0 : i32
    return %arg0, %arg1 : i32, i32
  }
}

module attributes {stable_mosaic.version = 11 : i64} {
  func.func @_conv_matmul_kernel(%arg0: i32, %arg1: i32, %arg2: i32, %arg3: memref<16x256xbf16, #tpu.memory_space<vmem>>, %arg4: memref<256x128xbf16, #tpu.memory_space<vmem>>, %arg5: memref<16x128xbf16, #tpu.memory_space<vmem>>, %arg6: memref<8x128xf32, #tpu.memory_space<vmem>>, %arg7: memref<8x128xf32, #tpu.memory_space<vmem>>, %arg8: memref<16x128xf32, #tpu.memory_space<vmem>>) attributes {dimension_semantics = [#tpu.dimension_semantics<parallel>, #tpu.dimension_semantics<parallel>, #tpu.dimension_semantics<arbitrary>], iteration_bounds = array<i64: 2, 1, 1>, scalar_prefetch = 0 : i64, scratch_operands = 1 : i64, tpu.core_type = #tpu.core_type<tc>, window_params = [{transform_indices = @transform_0, window_bounds = array<i64: 16, 256>}, {transform_indices = @transform_1, window_bounds = array<i64: 256, 128>}, {transform_indices = @transform_2, window_bounds = array<i64: 16, 128>}, {transform_indices = @transform_3, window_bounds = array<i64: 8, 128>}, {transform_indices = @transform_4, window_bounds = array<i64: 8, 128>}]} {
    %c0_i32 = arith.constant 0 : i32
    %0 = arith.cmpi eq, %arg2, %c0_i32 : i32
    %1 = arith.extui %0 : i1 to i32
    %c0_i32_0 = arith.constant 0 : i32
    %2 = arith.cmpi ne, %1, %c0_i32_0 : i32
    scf.if %2 {
      %cst_10 = arith.constant 0.000000e+00 : f32
      %12 = vector.broadcast %cst_10 : f32 to vector<16x128xf32>
      %c0_11 = arith.constant 0 : index
      %c0_12 = arith.constant 0 : index
      %13 = vector.load %arg8[%c0_11, %c0_12] : memref<16x128xf32, #tpu.memory_space<vmem>>, vector<16x128xf32>
      tpu.vector_store %arg8[%c0_11, %c0_12], %12 {strides = array<i32>} : memref<16x128xf32, #tpu.memory_space<vmem>>, vector<16x128xf32>,
    } else {
    }
    %c0 = arith.constant 0 : index
    %c0_1 = arith.constant 0 : index
    %3 = vector.load %arg8[%c0, %c0_1] : memref<16x128xf32, #tpu.memory_space<vmem>>, vector<16x128xf32>
    %c0_2 = arith.constant 0 : index
    %c0_3 = arith.constant 0 : index
    %4 = vector.load %arg3[%c0_2, %c0_3] : memref<16x256xbf16, #tpu.memory_space<vmem>>, vector<16x256xbf16>
    %c0_4 = arith.constant 0 : index
    %c0_5 = arith.constant 0 : index
    %5 = vector.load %arg4[%c0_4, %c0_5] : memref<256x128xbf16, #tpu.memory_space<vmem>>, vector<256x128xbf16>
    %cst = arith.constant dense<0.000000e+00> : vector<16x128xf32>
    %6 = tpu.matmul %4, %5, %cst {dimension_numbers = #tpu.dot_dimension_numbers<[1], [0], [0], [1], [0, 0, 1, 1], [], []>} : vector<16x256xbf16>, vector<256x128xbf16>, vector<16x128xf32> -> vector<16x128xf32>
    %7 = arith.addf %3, %6 : vector<16x128xf32>
    %c0_6 = arith.constant 0 : index
    %c0_7 = arith.constant 0 : index
    %8 = vector.load %arg8[%c0_6, %c0_7] : memref<16x128xf32, #tpu.memory_space<vmem>>, vector<16x128xf32>
    tpu.vector_store %arg8[%c0_6, %c0_7], %7 {strides = array<i32>} : memref<16x128xf32, #tpu.memory_space<vmem>>, vector<16x128xf32>,
    %c0_i32_8 = arith.constant 0 : i32
    %9 = arith.cmpi eq, %arg2, %c0_i32_8 : i32
    %10 = arith.extui %9 : i1 to i32
    %c0_i32_9 = arith.constant 0 : i32
    %11 = arith.cmpi ne, %10, %c0_i32_9 : i32
    scf.if %11 {
      %c0_10 = arith.constant 0 : index
      %c0_11 = arith.constant 0 : index
      %12 = vector.load %arg8[%c0_10, %c0_11] : memref<16x128xf32, #tpu.memory_space<vmem>>, vector<16x128xf32>
      %cst_12 = arith.constant dense<0.000000e+00> : vector<128xf32>
      %13 = vector.multi_reduction <add>, %12, %cst_12 [0] : vector<16x128xf32> to vector<128xf32>
      %14 = vector.shape_cast %13 : vector<128xf32> to vector<1x128xf32>
      %15 = vector.shape_cast %14 : vector<1x128xf32> to vector<1x128xf32>
      %16 = vector.broadcast %15 : vector<1x128xf32> to vector<8x128xf32>
      %c0_13 = arith.constant 0 : index
      %c0_14 = arith.constant 0 : index
      %17 = vector.load %arg6[%c0_13, %c0_14] : memref<8x128xf32, #tpu.memory_space<vmem>>, vector<8x128xf32>
      tpu.vector_store %arg6[%c0_13, %c0_14], %16 {strides = array<i32>} : memref<8x128xf32, #tpu.memory_space<vmem>>, vector<8x128xf32>,
      %18 = arith.mulf %12, %12 : vector<16x128xf32>
      %cst_15 = arith.constant dense<0.000000e+00> : vector<128xf32>
      %19 = vector.multi_reduction <add>, %18, %cst_15 [0] : vector<16x128xf32> to vector<128xf32>
      %20 = vector.shape_cast %19 : vector<128xf32> to vector<1x128xf32>
      %21 = vector.shape_cast %20 : vector<1x128xf32> to vector<1x128xf32>
      %22 = vector.broadcast %21 : vector<1x128xf32> to vector<8x128xf32>
      %c0_16 = arith.constant 0 : index
      %c0_17 = arith.constant 0 : index
      %23 = vector.load %arg7[%c0_16, %c0_17] : memref<8x128xf32, #tpu.memory_space<vmem>>, vector<8x128xf32>
      tpu.vector_store %arg7[%c0_16, %c0_17], %22 {strides = array<i32>} : memref<8x128xf32, #tpu.memory_space<vmem>>, vector<8x128xf32>,
      %24 = arith.truncf %12 : vector<16x128xf32> to vector<16x128xbf16>
      %c0_18 = arith.constant 0 : index
      %c0_19 = arith.constant 0 : index
      %25 = vector.load %arg5[%c0_18, %c0_19] : memref<16x128xbf16, #tpu.memory_space<vmem>>, vector<16x128xbf16>
      tpu.vector_store %arg5[%c0_18, %c0_19], %24 {strides = array<i32>} : memref<16x128xbf16, #tpu.memory_space<vmem>>, vector<16x128xbf16>,
    } else {
    }
    return
  }
  func.func @transform_0(%arg0: i32, %arg1: i32, %arg2: i32) -> (i32, i32) {
    %c0_i32 = arith.constant 0 : i32
    return %arg0, %arg2 : i32, i32
  }
  func.func @transform_1(%arg0: i32, %arg1: i32, %arg2: i32) -> (i32, i32) {
    %c0_i32 = arith.constant 0 : i32
    return %arg2, %arg1 : i32, i32
  }
  func.func @transform_2(%arg0: i32, %arg1: i32, %arg2: i32) -> (i32, i32) {
    %c0_i32 = arith.constant 0 : i32
    return %arg0, %arg1 : i32, i32
  }
  func.func @transform_3(%arg0: i32, %arg1: i32, %arg2: i32) -> (i32, i32) {
    %c0_i32 = arith.constant 0 : i32
    return %arg0, %arg1 : i32, i32
  }
  func.func @transform_4(%arg0: i32, %arg1: i32, %arg2: i32) -> (i32, i32) {
    %c0_i32 = arith.constant 0 : i32
    return %arg0, %arg1 : i32, i32
  }
}

module attributes {stable_mosaic.version = 11 : i64} {
  func.func @_bn_apply_kernel(%arg0: i32, %arg1: i32, %arg2: memref<16x128xbf16, #tpu.memory_space<vmem>>, %arg3: memref<1x128xf32, #tpu.memory_space<vmem>>, %arg4: memref<1x128xf32, #tpu.memory_space<vmem>>, %arg5: memref<16x128xbf16, #tpu.memory_space<vmem>>) attributes {dimension_semantics = [#tpu.dimension_semantics<parallel>, #tpu.dimension_semantics<parallel>], iteration_bounds = array<i64: 2, 1>, scalar_prefetch = 0 : i64, scratch_operands = 0 : i64, tpu.core_type = #tpu.core_type<tc>, window_params = [{transform_indices = @transform_0, window_bounds = array<i64: 16, 128>}, {transform_indices = @transform_1, window_bounds = array<i64: 1, 128>}, {transform_indices = @transform_2, window_bounds = array<i64: 1, 128>}, {transform_indices = @transform_3, window_bounds = array<i64: 16, 128>}]} {
    %c0 = arith.constant 0 : index
    %c0_0 = arith.constant 0 : index
    %0 = vector.load %arg2[%c0, %c0_0] : memref<16x128xbf16, #tpu.memory_space<vmem>>, vector<16x128xbf16>
    %1 = arith.extf %0 : vector<16x128xbf16> to vector<16x128xf32>
    %c0_1 = arith.constant 0 : index
    %c0_2 = arith.constant 0 : index
    %2 = vector.load %arg3[%c0_1, %c0_2] : memref<1x128xf32, #tpu.memory_space<vmem>>, vector<1x128xf32>
    %3 = vector.broadcast %2 : vector<1x128xf32> to vector<16x128xf32>
    %4 = arith.mulf %1, %3 : vector<16x128xf32>
    %c0_3 = arith.constant 0 : index
    %c0_4 = arith.constant 0 : index
    %5 = vector.load %arg4[%c0_3, %c0_4] : memref<1x128xf32, #tpu.memory_space<vmem>>, vector<1x128xf32>
    %6 = vector.broadcast %5 : vector<1x128xf32> to vector<16x128xf32>
    %7 = arith.addf %4, %6 : vector<16x128xf32>
    %cst = arith.constant 0.000000e+00 : f32
    %8 = vector.broadcast %cst : f32 to vector<16x128xf32>
    %9 = arith.cmpf ogt, %7, %8 : vector<16x128xf32>
    %cst_5 = arith.constant 2.000000e-01 : f32
    %10 = vector.broadcast %cst_5 : f32 to vector<16x128xf32>
    %11 = arith.mulf %10, %7 : vector<16x128xf32>
    %12 = arith.select %9, %7, %11 : vector<16x128xi1>, vector<16x128xf32>
    %13 = arith.truncf %12 : vector<16x128xf32> to vector<16x128xbf16>
    %c0_6 = arith.constant 0 : index
    %c0_7 = arith.constant 0 : index
    %14 = vector.load %arg5[%c0_6, %c0_7] : memref<16x128xbf16, #tpu.memory_space<vmem>>, vector<16x128xbf16>
    tpu.vector_store %arg5[%c0_6, %c0_7], %13 {strides = array<i32>} : memref<16x128xbf16, #tpu.memory_space<vmem>>, vector<16x128xbf16>,
    return
  }
  func.func @transform_0(%arg0: i32, %arg1: i32) -> (i32, i32) {
    %c0_i32 = arith.constant 0 : i32
    return %arg0, %arg1 : i32, i32
  }
  func.func @transform_1(%arg0: i32, %arg1: i32) -> (i32, i32) {
    %c0_i32 = arith.constant 0 : i32
    %c0_i32_0 = arith.constant 0 : i32
    return %c0_i32, %arg1 : i32, i32
  }
  func.func @transform_2(%arg0: i32, %arg1: i32) -> (i32, i32) {
    %c0_i32 = arith.constant 0 : i32
    %c0_i32_0 = arith.constant 0 : i32
    return %c0_i32, %arg1 : i32, i32
  }
  func.func @transform_3(%arg0: i32, %arg1: i32) -> (i32, i32) {
    %c0_i32 = arith.constant 0 : i32
    return %arg0, %arg1 : i32, i32
  }
}

module attributes {stable_mosaic.version = 11 : i64} {
  func.func @_conv_matmul_kernel(%arg0: i32, %arg1: i32, %arg2: i32, %arg3: memref<16x512xbf16, #tpu.memory_space<vmem>>, %arg4: memref<512x128xbf16, #tpu.memory_space<vmem>>, %arg5: memref<16x128xbf16, #tpu.memory_space<vmem>>, %arg6: memref<8x128xf32, #tpu.memory_space<vmem>>, %arg7: memref<8x128xf32, #tpu.memory_space<vmem>>, %arg8: memref<16x128xf32, #tpu.memory_space<vmem>>) attributes {dimension_semantics = [#tpu.dimension_semantics<parallel>, #tpu.dimension_semantics<parallel>, #tpu.dimension_semantics<arbitrary>], iteration_bounds = array<i64: 2, 1, 1>, scalar_prefetch = 0 : i64, scratch_operands = 1 : i64, tpu.core_type = #tpu.core_type<tc>, window_params = [{transform_indices = @transform_0, window_bounds = array<i64: 16, 512>}, {transform_indices = @transform_1, window_bounds = array<i64: 512, 128>}, {transform_indices = @transform_2, window_bounds = array<i64: 16, 128>}, {transform_indices = @transform_3, window_bounds = array<i64: 8, 128>}, {transform_indices = @transform_4, window_bounds = array<i64: 8, 128>}]} {
    %c0_i32 = arith.constant 0 : i32
    %0 = arith.cmpi eq, %arg2, %c0_i32 : i32
    %1 = arith.extui %0 : i1 to i32
    %c0_i32_0 = arith.constant 0 : i32
    %2 = arith.cmpi ne, %1, %c0_i32_0 : i32
    scf.if %2 {
      %cst_10 = arith.constant 0.000000e+00 : f32
      %12 = vector.broadcast %cst_10 : f32 to vector<16x128xf32>
      %c0_11 = arith.constant 0 : index
      %c0_12 = arith.constant 0 : index
      %13 = vector.load %arg8[%c0_11, %c0_12] : memref<16x128xf32, #tpu.memory_space<vmem>>, vector<16x128xf32>
      tpu.vector_store %arg8[%c0_11, %c0_12], %12 {strides = array<i32>} : memref<16x128xf32, #tpu.memory_space<vmem>>, vector<16x128xf32>,
    } else {
    }
    %c0 = arith.constant 0 : index
    %c0_1 = arith.constant 0 : index
    %3 = vector.load %arg8[%c0, %c0_1] : memref<16x128xf32, #tpu.memory_space<vmem>>, vector<16x128xf32>
    %c0_2 = arith.constant 0 : index
    %c0_3 = arith.constant 0 : index
    %4 = vector.load %arg3[%c0_2, %c0_3] : memref<16x512xbf16, #tpu.memory_space<vmem>>, vector<16x512xbf16>
    %c0_4 = arith.constant 0 : index
    %c0_5 = arith.constant 0 : index
    %5 = vector.load %arg4[%c0_4, %c0_5] : memref<512x128xbf16, #tpu.memory_space<vmem>>, vector<512x128xbf16>
    %cst = arith.constant dense<0.000000e+00> : vector<16x128xf32>
    %6 = tpu.matmul %4, %5, %cst {dimension_numbers = #tpu.dot_dimension_numbers<[1], [0], [0], [1], [0, 0, 1, 1], [], []>} : vector<16x512xbf16>, vector<512x128xbf16>, vector<16x128xf32> -> vector<16x128xf32>
    %7 = arith.addf %3, %6 : vector<16x128xf32>
    %c0_6 = arith.constant 0 : index
    %c0_7 = arith.constant 0 : index
    %8 = vector.load %arg8[%c0_6, %c0_7] : memref<16x128xf32, #tpu.memory_space<vmem>>, vector<16x128xf32>
    tpu.vector_store %arg8[%c0_6, %c0_7], %7 {strides = array<i32>} : memref<16x128xf32, #tpu.memory_space<vmem>>, vector<16x128xf32>,
    %c0_i32_8 = arith.constant 0 : i32
    %9 = arith.cmpi eq, %arg2, %c0_i32_8 : i32
    %10 = arith.extui %9 : i1 to i32
    %c0_i32_9 = arith.constant 0 : i32
    %11 = arith.cmpi ne, %10, %c0_i32_9 : i32
    scf.if %11 {
      %c0_10 = arith.constant 0 : index
      %c0_11 = arith.constant 0 : index
      %12 = vector.load %arg8[%c0_10, %c0_11] : memref<16x128xf32, #tpu.memory_space<vmem>>, vector<16x128xf32>
      %cst_12 = arith.constant dense<0.000000e+00> : vector<128xf32>
      %13 = vector.multi_reduction <add>, %12, %cst_12 [0] : vector<16x128xf32> to vector<128xf32>
      %14 = vector.shape_cast %13 : vector<128xf32> to vector<1x128xf32>
      %15 = vector.shape_cast %14 : vector<1x128xf32> to vector<1x128xf32>
      %16 = vector.broadcast %15 : vector<1x128xf32> to vector<8x128xf32>
      %c0_13 = arith.constant 0 : index
      %c0_14 = arith.constant 0 : index
      %17 = vector.load %arg6[%c0_13, %c0_14] : memref<8x128xf32, #tpu.memory_space<vmem>>, vector<8x128xf32>
      tpu.vector_store %arg6[%c0_13, %c0_14], %16 {strides = array<i32>} : memref<8x128xf32, #tpu.memory_space<vmem>>, vector<8x128xf32>,
      %18 = arith.mulf %12, %12 : vector<16x128xf32>
      %cst_15 = arith.constant dense<0.000000e+00> : vector<128xf32>
      %19 = vector.multi_reduction <add>, %18, %cst_15 [0] : vector<16x128xf32> to vector<128xf32>
      %20 = vector.shape_cast %19 : vector<128xf32> to vector<1x128xf32>
      %21 = vector.shape_cast %20 : vector<1x128xf32> to vector<1x128xf32>
      %22 = vector.broadcast %21 : vector<1x128xf32> to vector<8x128xf32>
      %c0_16 = arith.constant 0 : index
      %c0_17 = arith.constant 0 : index
      %23 = vector.load %arg7[%c0_16, %c0_17] : memref<8x128xf32, #tpu.memory_space<vmem>>, vector<8x128xf32>
      tpu.vector_store %arg7[%c0_16, %c0_17], %22 {strides = array<i32>} : memref<8x128xf32, #tpu.memory_space<vmem>>, vector<8x128xf32>,
      %24 = arith.truncf %12 : vector<16x128xf32> to vector<16x128xbf16>
      %c0_18 = arith.constant 0 : index
      %c0_19 = arith.constant 0 : index
      %25 = vector.load %arg5[%c0_18, %c0_19] : memref<16x128xbf16, #tpu.memory_space<vmem>>, vector<16x128xbf16>
      tpu.vector_store %arg5[%c0_18, %c0_19], %24 {strides = array<i32>} : memref<16x128xbf16, #tpu.memory_space<vmem>>, vector<16x128xbf16>,
    } else {
    }
    return
  }
  func.func @transform_0(%arg0: i32, %arg1: i32, %arg2: i32) -> (i32, i32) {
    %c0_i32 = arith.constant 0 : i32
    return %arg0, %arg2 : i32, i32
  }
  func.func @transform_1(%arg0: i32, %arg1: i32, %arg2: i32) -> (i32, i32) {
    %c0_i32 = arith.constant 0 : i32
    return %arg2, %arg1 : i32, i32
  }
  func.func @transform_2(%arg0: i32, %arg1: i32, %arg2: i32) -> (i32, i32) {
    %c0_i32 = arith.constant 0 : i32
    return %arg0, %arg1 : i32, i32
  }
  func.func @transform_3(%arg0: i32, %arg1: i32, %arg2: i32) -> (i32, i32) {
    %c0_i32 = arith.constant 0 : i32
    return %arg0, %arg1 : i32, i32
  }
  func.func @transform_4(%arg0: i32, %arg1: i32, %arg2: i32) -> (i32, i32) {
    %c0_i32 = arith.constant 0 : i32
    return %arg0, %arg1 : i32, i32
  }
}

module attributes {stable_mosaic.version = 11 : i64} {
  func.func @_conv_matmul_kernel(%arg0: i32, %arg1: i32, %arg2: i32, %arg3: memref<32x512xbf16, #tpu.memory_space<vmem>>, %arg4: memref<512x128xbf16, #tpu.memory_space<vmem>>, %arg5: memref<1x128xf32, #tpu.memory_space<vmem>>, %arg6: memref<32x128xf32, #tpu.memory_space<vmem>>, %arg7: memref<32x128xf32, #tpu.memory_space<vmem>>) attributes {dimension_semantics = [#tpu.dimension_semantics<parallel>, #tpu.dimension_semantics<parallel>, #tpu.dimension_semantics<arbitrary>], iteration_bounds = array<i64: 2, 1, 2>, scalar_prefetch = 0 : i64, scratch_operands = 1 : i64, tpu.core_type = #tpu.core_type<tc>, window_params = [{transform_indices = @transform_0, window_bounds = array<i64: 32, 512>}, {transform_indices = @transform_1, window_bounds = array<i64: 512, 128>}, {transform_indices = @transform_2, window_bounds = array<i64: 1, 128>}, {transform_indices = @transform_3, window_bounds = array<i64: 32, 128>}]} {
    %c0_i32 = arith.constant 0 : i32
    %0 = arith.cmpi eq, %arg2, %c0_i32 : i32
    %1 = arith.extui %0 : i1 to i32
    %c0_i32_0 = arith.constant 0 : i32
    %2 = arith.cmpi ne, %1, %c0_i32_0 : i32
    scf.if %2 {
      %cst_9 = arith.constant 0.000000e+00 : f32
      %12 = vector.broadcast %cst_9 : f32 to vector<32x128xf32>
      %c0_10 = arith.constant 0 : index
      %c0_11 = arith.constant 0 : index
      %13 = vector.load %arg7[%c0_10, %c0_11] : memref<32x128xf32, #tpu.memory_space<vmem>>, vector<32x128xf32>
      tpu.vector_store %arg7[%c0_10, %c0_11], %12 {strides = array<i32>} : memref<32x128xf32, #tpu.memory_space<vmem>>, vector<32x128xf32>,
    } else {
    }
    %c0 = arith.constant 0 : index
    %c0_1 = arith.constant 0 : index
    %3 = vector.load %arg7[%c0, %c0_1] : memref<32x128xf32, #tpu.memory_space<vmem>>, vector<32x128xf32>
    %c0_2 = arith.constant 0 : index
    %c0_3 = arith.constant 0 : index
    %4 = vector.load %arg3[%c0_2, %c0_3] : memref<32x512xbf16, #tpu.memory_space<vmem>>, vector<32x512xbf16>
    %c0_4 = arith.constant 0 : index
    %c0_5 = arith.constant 0 : index
    %5 = vector.load %arg4[%c0_4, %c0_5] : memref<512x128xbf16, #tpu.memory_space<vmem>>, vector<512x128xbf16>
    %cst = arith.constant dense<0.000000e+00> : vector<32x128xf32>
    %6 = tpu.matmul %4, %5, %cst {dimension_numbers = #tpu.dot_dimension_numbers<[1], [0], [0], [1], [0, 0, 1, 1], [], []>} : vector<32x512xbf16>, vector<512x128xbf16>, vector<32x128xf32> -> vector<32x128xf32>
    %7 = arith.addf %3, %6 : vector<32x128xf32>
    %c0_6 = arith.constant 0 : index
    %c0_7 = arith.constant 0 : index
    %8 = vector.load %arg7[%c0_6, %c0_7] : memref<32x128xf32, #tpu.memory_space<vmem>>, vector<32x128xf32>
    tpu.vector_store %arg7[%c0_6, %c0_7], %7 {strides = array<i32>} : memref<32x128xf32, #tpu.memory_space<vmem>>, vector<32x128xf32>,
    %c1_i32 = arith.constant 1 : i32
    %9 = arith.cmpi eq, %arg2, %c1_i32 : i32
    %10 = arith.extui %9 : i1 to i32
    %c0_i32_8 = arith.constant 0 : i32
    %11 = arith.cmpi ne, %10, %c0_i32_8 : i32
    scf.if %11 {
      %c0_9 = arith.constant 0 : index
      %c0_10 = arith.constant 0 : index
      %12 = vector.load %arg7[%c0_9, %c0_10] : memref<32x128xf32, #tpu.memory_space<vmem>>, vector<32x128xf32>
      %c0_11 = arith.constant 0 : index
      %c0_12 = arith.constant 0 : index
      %13 = vector.load %arg5[%c0_11, %c0_12] : memref<1x128xf32, #tpu.memory_space<vmem>>, vector<1x128xf32>
      %14 = vector.broadcast %13 : vector<1x128xf32> to vector<32x128xf32>
      %15 = arith.addf %12, %14 : vector<32x128xf32>
      %c0_13 = arith.constant 0 : index
      %c0_14 = arith.constant 0 : index
      %16 = vector.load %arg6[%c0_13, %c0_14] : memref<32x128xf32, #tpu.memory_space<vmem>>, vector<32x128xf32>
      tpu.vector_store %arg6[%c0_13, %c0_14], %15 {strides = array<i32>} : memref<32x128xf32, #tpu.memory_space<vmem>>, vector<32x128xf32>,
    } else {
    }
    return
  }
  func.func @transform_0(%arg0: i32, %arg1: i32, %arg2: i32) -> (i32, i32) {
    %c0_i32 = arith.constant 0 : i32
    return %arg0, %arg2 : i32, i32
  }
  func.func @transform_1(%arg0: i32, %arg1: i32, %arg2: i32) -> (i32, i32) {
    %c0_i32 = arith.constant 0 : i32
    return %arg2, %arg1 : i32, i32
  }
  func.func @transform_2(%arg0: i32, %arg1: i32, %arg2: i32) -> (i32, i32) {
    %c0_i32 = arith.constant 0 : i32
    %c0_i32_0 = arith.constant 0 : i32
    return %c0_i32, %arg1 : i32, i32
  }
  func.func @transform_3(%arg0: i32, %arg1: i32, %arg2: i32) -> (i32, i32) {
    %c0_i32 = arith.constant 0 : i32
    return %arg0, %arg1 : i32, i32
  }
}

</mosaic_0001>

<llo_original>
// kernel: nlayer_discriminator_forward.9
$region0: #{nlayer_discriminator_forward.9}
  #allocation0 [shape = 'u32[]', space=smem, size = 0x4, offset = 0x4, fixed_abs, tag = 'smem constant byte address 0x4 - core index']
  #allocation1 [shape = 'u32[144,128]{1,0:T(1,128)}', space=vmem, size = 0x12000, scoped, tag = 'internal scratch']
  #allocation2 [shape = 'f32[32,128]{1,0:T(8,128)}', space=vmem, size = 0x4000, scoped, tag = 'scratch operand']
  %s0 = inlined_call_operand.vmem [shape: bf16[64,128], index: 0, kind: input, shape index: {}]
  %s1 = inlined_call_operand.vmem [shape: bf16[128,128], index: 1, kind: input, shape index: {}]
  %s2 = inlined_call_operand.vmem [shape: bf16[64,128], index: 2, kind: output, shape index: {0}]
  %s3 = inlined_call_operand.vmem [shape: f32[16,128], index: 3, kind: output, shape index: {1}]
  %s4 = inlined_call_operand.vmem [shape: f32[16,128], index: 4, kind: output, shape index: {2}]
  %5 = xla_tuple %s2, %s3, %s4
  %s6 = sld [smem:[#allocation0]]
  $region65: #{nlayer_discriminator_forward.9} parent=0
    _
  %s8 = ssub.s32 1, %s6
  %s9 = scalar_select 0, %s8, %s6
  loop: start=0, step=1, limit=4
  $region2: #{nlayer_discriminator_forward.9} parent=0 // loop_pre_header
    _
  $region3: #{nlayer_discriminator_forward.9} parent=0 // loop_header
    %s11 = sphi 0, %s15
    %p12 = scmp.ge.s32.totalorder %s11, 4
    %s18 = sphi 0, %s37
    %s19 = sphi 0, %s33
    %s20 = sphi 0, %s29
    %s21 = sphi 0, %s18
    %s22 = sphi 0, %s19
    %s23 = sphi 0, %s20
    %s24 = sphi 0, %s21
    %s25 = sphi 0, %s22
    %s26 = sphi 0, %s23
    %s42 = sphi 0, %s44
    %s45 = sphi 0, %s42
    %s46 = sphi 0, %s45
    %s62 = sphi 0, %s46
    %s70 = sphi 0, %s72
    %s73 = sphi 0, %s70
    %s74 = sphi 0, %s73
    %s90 = sphi 0, %s74
    %s98 = sphi 0, %s100
    %s101 = sphi 0, %s98
    %s102 = sphi 0, %s101
    %s118 = sphi 0, %s102
    %s126 = sphi 0, %s128
    %s129 = sphi 0, %s126
    %s130 = sphi 0, %s129
    %s146 = sphi 0, %s130
    %s154 = sphi 0, %s156
    %s157 = sphi 0, %s154
    %s158 = sphi 0, %s157
    %s174 = sphi 0, %s158
  $region4: #{nlayer_discriminator_forward.9} parent=0 // loop_header_branch
    %14 = sbr.rel (%p12) target = $region8
  $region5: #{nlayer_discriminator_forward.9} parent=0 // loop_body
    %s16 = ssub.s32 %s11, 1
    %s17 = ssub.s32 %s11, 2
    %s27 = sadd.s32 1, %s20
    %p28 = scmp.ge.s32.totalorder %s27, 1
    %s29 = scalar_select %p28, 0, %s27
    %s30 = sadd.s32 1, %s19
    %s31 = scalar_select %p28, %s30, %s19
    %p32 = scmp.ge.s32.totalorder %s31, 1
    %s33 = scalar_select %p32, 0, %s31
    %s34 = sadd.s32 1, %s18
    %s35 = scalar_select %p32, %s34, %s18
    %p36 = scmp.ge.s32.totalorder %s35, 2
    %s37 = scalar_select %p36, 0, %s35
    %s38 = ssub.s32 %s18, %s37
    %s39 = ssub.s32 %s20, %s29
    %s40 = sor.u32 %s38, %s39
    %p41 = scmp.eq.s32.totalorder %s40, 0
    %s43 = sadd.s32 %s42, 1
    %s44 = scalar_select %p41, %s42, %s43
    %p47 = pneg %p41
    %p48 = scmp.eq.s32.totalorder %s11, 1
    %p49 = por %p47, %p48
    %p50 = scmp.ne.s32.totalorder %s42, %s45
    %p51 = scmp.eq.s32.totalorder %s11, 0
    %p52 = por %p50, %p51
    %p53 = scmp.ne.s32.totalorder %s42, %s45
    %p54 = scmp.eq.s32.totalorder %s16, 1
    %p55 = por %p53, %p54
    %p56 = scmp.ne.s32.totalorder %s45, %s46
    %p57 = scmp.eq.s32.totalorder %s16, 0
    %p58 = por %p56, %p57
    %p59 = scmp.ne.s32.totalorder %s45, %s46
    %p60 = scmp.eq.s32.totalorder %s17, 1
    %p61 = por %p59, %p60
    %p63 = scmp.ne.s32.totalorder %s46, %s62
    %p64 = scmp.eq.s32.totalorder %s17, 0
    %p65 = por %p63, %p64
    %s66 = ssub.s32 %s20, %s29
    %s67 = ssub.s32 %s19, %s33
    %s68 = sor.u32 %s66, %s67
    %p69 = scmp.eq.s32.totalorder %s68, 0
    %s71 = sadd.s32 %s70, 1
    %s72 = scalar_select %p69, %s70, %s71
    %p75 = pneg %p69
    %p76 = scmp.eq.s32.totalorder %s11, 1
    %p77 = por %p75, %p76
    %p78 = scmp.ne.s32.totalorder %s70, %s73
    %p79 = scmp.eq.s32.totalorder %s11, 0
    %p80 = por %p78, %p79
    %p81 = scmp.ne.s32.totalorder %s70, %s73
    %p82 = scmp.eq.s32.totalorder %s16, 1
    %p83 = por %p81, %p82
    %p84 = scmp.ne.s32.totalorder %s73, %s74
    %p85 = scmp.eq.s32.totalorder %s16, 0
    %p86 = por %p84, %p85
    %p87 = scmp.ne.s32.totalorder %s73, %s74
    %p88 = scmp.eq.s32.totalorder %s17, 1
    %p89 = por %p87, %p88
    %p91 = scmp.ne.s32.totalorder %s74, %s90
    %p92 = scmp.eq.s32.totalorder %s17, 0
    %p93 = por %p91, %p92
    %s94 = ssub.s32 %s18, %s37
    %s95 = ssub.s32 %s19, %s33
    %s96 = sor.u32 %s94, %s95
    %p97 = scmp.eq.s32.totalorder %s96, 0
    %s99 = sadd.s32 %s98, 1
    %s100 = scalar_select %p97, %s98, %s99
    %p103 = pneg %p97
    %p104 = scmp.eq.s32.totalorder %s11, 1
    %p105 = por %p103, %p104
    %p106 = scmp.ne.s32.totalorder %s98, %s101
    %p107 = scmp.eq.s32.totalorder %s11, 0
    %p108 = por %p106, %p107
    %p109 = scmp.ne.s32.totalorder %s98, %s101
    %p110 = scmp.eq.s32.totalorder %s16, 1
    %p111 = por %p109, %p110
    %p112 = scmp.ne.s32.totalorder %s101, %s102
    %p113 = scmp.eq.s32.totalorder %s16, 0
    %p114 = por %p112, %p113
    %p115 = scmp.ne.s32.totalorder %s101, %s102
    %p116 = scmp.eq.s32.totalorder %s17, 1
    %p117 = por %p115, %p116
    %p119 = scmp.ne.s32.totalorder %s102, %s118
    %p120 = scmp.eq.s32.totalorder %s17, 0
    %p121 = por %p119, %p120
    %s122 = ssub.s32 %s18, %s37
    %s123 = ssub.s32 %s19, %s33
    %s124 = sor.u32 %s122, %s123
    %p125 = scmp.eq.s32.totalorder %s124, 0
    %s127 = sadd.s32 %s126, 1
    %s128 = scalar_select %p125, %s126, %s127
    %p131 = pneg %p125
    %p132 = scmp.eq.s32.totalorder %s11, 1
    %p133 = por %p131, %p132
    %p134 = scmp.ne.s32.totalorder %s126, %s129
    %p135 = scmp.eq.s32.totalorder %s11, 0
    %p136 = por %p134, %p135
    %p137 = scmp.ne.s32.totalorder %s126, %s129
    %p138 = scmp.eq.s32.totalorder %s16, 1
    %p139 = por %p137, %p138
    %p140 = scmp.ne.s32.totalorder %s129, %s130
    %p141 = scmp.eq.s32.totalorder %s16, 0
    %p142 = por %p140, %p141
    %p143 = scmp.ne.s32.totalorder %s129, %s130
    %p144 = scmp.eq.s32.totalorder %s17, 1
    %p145 = por %p143, %p144
    %p147 = scmp.ne.s32.totalorder %s130, %s146
    %p148 = scmp.eq.s32.totalorder %s17, 0
    %p149 = por %p147, %p148
    %s150 = ssub.s32 %s18, %s37
    %s151 = ssub.s32 %s19, %s33
    %s152 = sor.u32 %s150, %s151
    %p153 = scmp.eq.s32.totalorder %s152, 0
    %s155 = sadd.s32 %s154, 1
    %s156 = scalar_select %p153, %s154, %s155
    %p159 = pneg %p153
    %p160 = scmp.eq.s32.totalorder %s11, 1
    %p161 = por %p159, %p160
    %p162 = scmp.ne.s32.totalorder %s154, %s157
    %p163 = scmp.eq.s32.totalorder %s11, 0
    %p164 = por %p162, %p163
    %p165 = scmp.ne.s32.totalorder %s154, %s157
    %p166 = scmp.eq.s32.totalorder %s16, 1
    %p167 = por %p165, %p166
    %p168 = scmp.ne.s32.totalorder %s157, %s158
    %p169 = scmp.eq.s32.totalorder %s16, 0
    %p170 = por %p168, %p169
    %p171 = scmp.ne.s32.totalorder %s157, %s158
    %p172 = scmp.eq.s32.totalorder %s17, 1
    %p173 = por %p171, %p172
    %p175 = scmp.ne.s32.totalorder %s158, %s174
    %p176 = scmp.eq.s32.totalorder %s17, 0
    %p177 = por %p175, %p176
    %p178 = scmp.le.s32.totalorder 1, %s11
    %p179 = scmp.lt.s32.totalorder %s11, 3
    %p180 = pnand %p178, %p179
    %p181 = pneg %p180
    // Predicated region
    $region9: #{nlayer_discriminator_forward.9} parent=5 // pred_check
      _
    $region10: #{nlayer_discriminator_forward.9} parent=5 // pred_check_branch
      %183 = sbr.rel (%p180) target = $region12
    $region11: #{nlayer_discriminator_forward.9} parent=5 // pred_region
      %s184 = ssub.s32 %s11, 1
      // Predicated region
      $region13: #{nlayer_discriminator_forward.9} parent=11 // pred_check
        %p185 = pneg %p86
      $region14: #{nlayer_discriminator_forward.9} parent=11 // pred_check_branch
        %187 = sbr.rel (%p185) target = $region16
      $region15: #{nlayer_discriminator_forward.9} parent=11 // pred_region
        %s188 = smul.u32 16, %s23
        %p189 = scmp.lt.s32.totalorder %s188, 15
        %s190 = scalar_select %p189, %s188, 15
        %p191 = scmp.lt.s32.totalorder %s22, 0
        %s192 = scalar_select %p191, %s22, 0
        %s193 = sadd.s32 %s192, %s190
        %s194 = smul.addr %s193, 4
        %s195 = scalar_lea.vmem %s1, %s194
        %s196 = smul.u32 16, %s23
      $region16: #{nlayer_discriminator_forward.9} parent=11 // pred_fallthru
        _
    $region12: #{nlayer_discriminator_forward.9} parent=5 // pred_fallthru
      _
    %p197 = scmp.lt.s32.totalorder %s11, 2
    // Predicated region
    $region17: #{nlayer_discriminator_forward.9} parent=5 // pred_check
      %p198 = pneg %p197
    $region18: #{nlayer_discriminator_forward.9} parent=5 // pred_check_branch
      %200 = sbr.rel (%p198) target = $region20
    $region19: #{nlayer_discriminator_forward.9} parent=5 // pred_region
      // Predicated region
      $region21: #{nlayer_discriminator_forward.9} parent=19 // pred_check
        %p201 = pneg %p52
      $region22: #{nlayer_discriminator_forward.9} parent=19 // pred_check_branch
        %203 = sbr.rel (%p201) target = $region24
      $region23: #{nlayer_discriminator_forward.9} parent=19 // pred_region
        %s204 = smul.u32 4, %s18
        %p205 = scmp.lt.s32.totalorder %s204, 7
        %s206 = scalar_select %p205, %s204, 7
        %p207 = scmp.lt.s32.totalorder %s20, 0
        %s208 = scalar_select %p207, %s20, 0
        %s209 = sadd.s32 %s208, %s206
        %s210 = smul.addr %s209, 4
        %s211 = scalar_lea.vmem %s0, %s210
        %s212 = smul.u32 4, %s18
      $region24: #{nlayer_discriminator_forward.9} parent=19 // pred_fallthru
        _
    $region20: #{nlayer_discriminator_forward.9} parent=5 // pred_fallthru
      _
    %p213 = scmp.le.s32.totalorder 1, %s11
    %p214 = scmp.lt.s32.totalorder %s11, 3
    %p215 = pnand %p213, %p214
    %p216 = pneg %p215
    // Predicated region
    $region25: #{nlayer_discriminator_forward.9} parent=5 // pred_check
      _
    $region26: #{nlayer_discriminator_forward.9} parent=5 // pred_check_branch
      %218 = sbr.rel (%p215) target = $region28
    $region27: #{nlayer_discriminator_forward.9} parent=5 // pred_region
      %s219 = ssub.s32 %s11, 1
      %s220 = smul.u32 4, %s21
      %p221 = scmp.lt.s32.totalorder %s220, 7
      %s222 = scalar_select %p221, %s220, 7
      %p223 = scmp.lt.s32.totalorder %s23, 0
      %s224 = scalar_select %p223, %s23, 0
      %s225 = sadd.s32 %s224, %s222
      %s226 = smul.addr %s225, 4
      %s227 = scalar_lea.vmem %s0, %s226
      %p228 = pneg %p58
      %p229 = pneg %p55
      %s230 = smul.u32 16, %s23
      %p231 = scmp.lt.s32.totalorder %s230, 15
      %s232 = scalar_select %p231, %s230, 15
      %p233 = scmp.lt.s32.totalorder %s22, 0
      %s234 = scalar_select %p233, %s22, 0
      %s235 = sadd.s32 %s234, %s232
      %s236 = smul.addr %s235, 4
      %s237 = scalar_lea.vmem %s1, %s236
      %p238 = pneg %p86
      %p239 = pneg %p83
      %p240 = pneg %p114
      %p241 = pneg %p111
      %s242 = smul.u32 4, %s21
      %p243 = scmp.lt.s32.totalorder %s242, 7
      %s244 = scalar_select %p243, %s242, 7
      %p245 = scmp.lt.s32.totalorder %s22, 0
      %s246 = scalar_select %p245, %s22, 0
      %s247 = sadd.s32 %s246, %s244
      %s248 = smul.addr %s247, 4
      %s249 = scalar_lea.vmem %s2, %s248
      %p250 = pneg %p142
      %p251 = pneg %p139
      %p252 = scmp.lt.s32.totalorder %s21, 1
      %s253 = scalar_select %p252, %s21, 1
      %p254 = scmp.lt.s32.totalorder %s22, 0
      %s255 = scalar_select %p254, %s22, 0
      %s256 = sadd.s32 %s255, %s253
      %s257 = smul.addr %s256, 8
      %s258 = scalar_lea.vmem %s3, %s257
      %p259 = pneg %p170
      %p260 = pneg %p167
      %p261 = scmp.lt.s32.totalorder %s21, 1
      %s262 = scalar_select %p261, %s21, 1
      %p263 = scmp.lt.s32.totalorder %s22, 0
      %s264 = scalar_select %p263, %s22, 0
      %s265 = sadd.s32 %s264, %s262
      %s266 = smul.addr %s265, 8
      %s267 = scalar_lea.vmem %s4, %s266
      %s268 = smul.u32 4, %s21
      %p269 = scmp.lt.s32.totalorder %s268, 7
      %s270 = scalar_select %p269, %s268, 7
      %p271 = scmp.lt.s32.totalorder %s23, 0
      %s272 = scalar_select %p271, %s23, 0
      %s273 = sadd.s32 %s272, %s270
      %s274 = smul.addr %s273, 4
      %s275 = scalar_lea.vmem %s0, %s274
      %s276 = smul.u32 4, %s21
      %s277 = smul.u32 16, %s23
      %p278 = scmp.lt.s32.totalorder %s277, 15
      %s279 = scalar_select %p278, %s277, 15
      %p280 = scmp.lt.s32.totalorder %s22, 0
      %s281 = scalar_select %p280, %s22, 0
      %s282 = sadd.s32 %s281, %s279
      %s283 = smul.addr %s282, 4
      %s284 = scalar_lea.vmem %s1, %s283
      %s285 = smul.u32 16, %s23
      %s286 = smul.u32 4, %s21
      %p287 = scmp.lt.s32.totalorder %s286, 7
      %s288 = scalar_select %p287, %s286, 7
      %p289 = scmp.lt.s32.totalorder %s22, 0
      %s290 = scalar_select %p289, %s22, 0
      %s291 = sadd.s32 %s290, %s288
      %s292 = smul.addr %s291, 4
      %s293 = scalar_lea.vmem %s2, %s292
      %s294 = smul.u32 4, %s21
      %p295 = scmp.lt.s32.totalorder %s21, 1
      %s296 = scalar_select %p295, %s21, 1
      %p297 = scmp.lt.s32.totalorder %s22, 0
      %s298 = scalar_select %p297, %s22, 0
      %s299 = sadd.s32 %s298, %s296
      %s300 = smul.addr %s299, 8
      %s301 = scalar_lea.vmem %s3, %s300
      %p302 = scmp.lt.s32.totalorder %s21, 1
      %s303 = scalar_select %p302, %s21, 1
      %p304 = scmp.lt.s32.totalorder %s22, 0
      %s305 = scalar_select %p304, %s22, 0
      %s306 = sadd.s32 %s305, %s303
      %s307 = smul.addr %s306, 8
      %s308 = scalar_lea.vmem %s4, %s307
      %p310 = scmp.eq.s32.totalorder %s23, 0
      // Predicated region
      $region29: #{nlayer_discriminator_forward.9} parent=27 // pred_check
        %p311 = pneg %p310
      $region30: #{nlayer_discriminator_forward.9} parent=27 // pred_check_branch
        %313 = sbr.rel (%p311) target = $region32
      $region31: #{nlayer_discriminator_forward.9} parent=27 // pred_region
        %314 = vst [vmem:[#allocation2] sm:$0xff] 0.0
        %315 = vst [vmem:[#allocation2 + $0x8] sm:$0xff] 0.0
        %316 = vst [vmem:[#allocation2 + $0x10] sm:$0xff] 0.0
        %317 = vst [vmem:[#allocation2 + $0x18] sm:$0xff] 0.0
      $region32: #{nlayer_discriminator_forward.9} parent=27 // pred_fallthru
        _
      %v318 = vld [vmem:[#allocation2] sm:$0xff]
      %v319 = vld [vmem:[#allocation2 + $0x8] sm:$0xff]
      %v320 = vld [vmem:[#allocation2 + $0x10] sm:$0xff]
      %v321 = vld [vmem:[#allocation2 + $0x18] sm:$0xff]
      %v322 = vld [vmem:[%s275] sm:$0xf]
      %v323 = vld [vmem:[%s275 + $0x4] sm:$0xf]
      %v324 = vld [vmem:[%s275 + $0x8] sm:$0xf]
      %v325 = vld [vmem:[%s275 + $0xc] sm:$0xf]
      %v326 = vld [vmem:[%s284] sm:$0xf]
      %v327 = vld [vmem:[%s284 + $0x4] sm:$0xf]
      %v328 = vld [vmem:[%s284 + $0x8] sm:$0xf]
      %v329 = vld [vmem:[%s284 + $0xc] sm:$0xf]
      %v330 = vld [vmem:[%s284 + $0x10] sm:$0xf]
      %v331 = vld [vmem:[%s284 + $0x14] sm:$0xf]
      %v332 = vld [vmem:[%s284 + $0x18] sm:$0xf]
      %v333 = vld [vmem:[%s284 + $0x1c] sm:$0xf]
      %v334 = vld [vmem:[%s284 + $0x20] sm:$0xf]
      %v335 = vld [vmem:[%s284 + $0x24] sm:$0xf]
      %v336 = vld [vmem:[%s284 + $0x28] sm:$0xf]
      %v337 = vld [vmem:[%s284 + $0x2c] sm:$0xf]
      %v338 = vld [vmem:[%s284 + $0x30] sm:$0xf]
      %v339 = vld [vmem:[%s284 + $0x34] sm:$0xf]
      %v340 = vld [vmem:[%s284 + $0x38] sm:$0xf]
      %v341 = vld [vmem:[%s284 + $0x3c] sm:$0xf]
      %v346 = vunpack.c.l.b16 %v322
      %v347 = vunpack.c.l.b16 %v323
      %v348 = vunpack.c.l.b16 %v324
      %v349 = vunpack.c.l.b16 %v325
      %v350 = vpack.c.b16 %v347, %v346
      %v351 = vpack.c.b16 %v349, %v348
      %v370 = vunpack.c.l.b16 %v326
      %v371 = vunpack.c.l.b16 %v327
      %v372 = vunpack.c.l.b16 %v328
      %v373 = vunpack.c.l.b16 %v329
      %v374 = vunpack.c.l.b16 %v330
      %v375 = vunpack.c.l.b16 %v331
      %v376 = vunpack.c.l.b16 %v332
      %v377 = vunpack.c.l.b16 %v333
      %v378 = vunpack.c.l.b16 %v334
      %v379 = vunpack.c.l.b16 %v335
      %v380 = vunpack.c.l.b16 %v336
      %v381 = vunpack.c.l.b16 %v337
      %v382 = vunpack.c.l.b16 %v338
      %v383 = vunpack.c.l.b16 %v339
      %v384 = vunpack.c.l.b16 %v340
      %v385 = vunpack.c.l.b16 %v341
      %v386 = vpack.c.b16 %v371, %v370
      %v387 = vpack.c.b16 %v373, %v372
      %v388 = vpack.c.b16 %v375, %v374
      %v389 = vpack.c.b16 %v377, %v376
      %v390 = vpack.c.b16 %v379, %v378
      %v391 = vpack.c.b16 %v381, %v380
      %v392 = vpack.c.b16 %v383, %v382
      %v393 = vpack.c.b16 %v385, %v384
      %402 = vmatprep.subr.bf16.mxu0 0
      %403 = vmatpush1.bf16.msra.mxu0 %v393
      %404 = vmatprep.subr.bf16.mxu0 0
      %405 = vmatpush1.bf16.msra.mxu0 %v392
      %406 = vmatprep.subr.bf16.mxu0 0
      %407 = vmatpush1.bf16.msra.mxu0 %v391
      %408 = vmatprep.subr.bf16.mxu0 0
      %409 = vmatpush1.bf16.msra.mxu0 %v390
      %410 = vmatprep.subr.bf16.mxu0 0
      %411 = vmatpush1.bf16.msra.mxu0 %v389
      %412 = vmatprep.subr.bf16.mxu0 0
      %413 = vmatpush1.bf16.msra.mxu0 %v388
      %414 = vmatprep.subr.bf16.mxu0 0
      %415 = vmatpush1.bf16.msra.mxu0 %v387
      %416 = vmatprep.subr.bf16.mxu0 0
      %417 = vmatpush1.bf16.msra.mxu0 %v386
      %418 = vmatprep.subr.bf16.mxu0 0
      %419 = vmatpush2.bf16.msra.mxu0 0
      %420 = vmatprep.subr.bf16.mxu0 0
      %421 = vmatpush2.bf16.msra.mxu0 0
      %422 = vmatprep.subr.bf16.mxu0 0
      %423 = vmatpush2.bf16.msra.mxu0 0
      %424 = vmatprep.subr.bf16.mxu0 0
      %425 = vmatpush2.bf16.msra.mxu0 0
      %426 = vmatprep.subr.bf16.mxu0 0
      %427 = vmatpush2.bf16.msra.mxu0 0
      %428 = vmatprep.subr.bf16.mxu0 0
      %429 = vmatpush2.bf16.msra.mxu0 0
      %430 = vmatprep.subr.bf16.mxu0 0
      %431 = vmatpush2.bf16.msra.mxu0 0
      %432 = vmatprep.subr.bf16.mxu0 0
      %433 = vmatpush2.bf16.msra.mxu0 0
      %434 = vmatprep.mubr.bf16.mxu0 0
      %435 = vmatmul.mubr.bf16.gmra.mxu0 %v350
      %v436 = vpop.f32.mrf.mxu0
      %v437 = vadd.f32 0.0, %v436
      %v438 = vpop.f32.mrf.mxu0
      %v439 = vpop.f32.mrf.mxu0
      %v440 = vadd.f32 0.0, %v439
      %v441 = vpop.f32.mrf.mxu0
      %442 = vmatprep.mubr.bf16.mxu0 0
      %443 = vmatmul.mubr.bf16.gmra.mxu0 %v351
      %v444 = vpop.f32.mrf.mxu0
      %v445 = vadd.f32 0.0, %v444
      %v446 = vpop.f32.mrf.mxu0
      %v447 = vpop.f32.mrf.mxu0
      %v448 = vadd.f32 0.0, %v447
      %v449 = vpop.f32.mrf.mxu0
      %450 = vdwg.mxu0
      %v451 = vadd.f32 %v318, %v437
      %v452 = vadd.f32 %v319, %v440
      %v453 = vadd.f32 %v320, %v445
      %v454 = vadd.f32 %v321, %v448
      %455 = vst [vmem:[#allocation2] sm:$0xff] %v451
      %456 = vst [vmem:[#allocation2 + $0x8] sm:$0xff] %v452
      %457 = vst [vmem:[#allocation2 + $0x10] sm:$0xff] %v453
      %458 = vst [vmem:[#allocation2 + $0x18] sm:$0xff] %v454
      // Predicated region
      $region33: #{nlayer_discriminator_forward.9} parent=27 // pred_check
        %p459 = pneg %p310
      $region34: #{nlayer_discriminator_forward.9} parent=27 // pred_check_branch
        %461 = sbr.rel (%p459) target = $region36
      $region35: #{nlayer_discriminator_forward.9} parent=27 // pred_region
        %v462 = vld [vmem:[#allocation2] sm:$0xff]
        %v463 = vld [vmem:[#allocation2 + $0x8] sm:$0xff]
        %v464 = vld [vmem:[#allocation2 + $0x10] sm:$0xff]
        %v465 = vld [vmem:[#allocation2 + $0x18] sm:$0xff]
        %v466 = vadd.f32 %v462, %v463
        %v467 = vadd.f32 %v466, %v464
        %v468 = vadd.f32 %v467, %v465
        %v469 = vrot.slane %v468, 4
        %v470 = vadd.f32 %v468, %v469
        %v471 = vrot.slane %v470, 2
        %v472 = vadd.f32 %v470, %v471
        %v473 = vrot.slane %v472, 1
        %v474 = vadd.f32 %v472, %v473
        %475 = vst [vmem:[%s301] sm:$0xff] %v474
        %v476 = vmul.f32 %v462, %v462
        %v477 = vmul.f32 %v463, %v463
        %v478 = vmul.f32 %v464, %v464
        %v479 = vmul.f32 %v465, %v465
        %v480 = vadd.f32 %v476, %v477
        %v481 = vadd.f32 %v480, %v478
        %v482 = vadd.f32 %v481, %v479
        %v483 = vrot.slane %v482, 4
        %v484 = vadd.f32 %v482, %v483
        %v485 = vrot.slane %v484, 2
        %v486 = vadd.f32 %v484, %v485
        %v487 = vrot.slane %v486, 1
        %v488 = vadd.f32 %v486, %v487
        %489 = vst [vmem:[%s308] sm:$0xff] %v488
        %v490 = vpack.c.bf16 %v463, %v462
        %v491 = vpack.c.bf16 %v465, %v464
        %v494 = vunpack.c.l.b16 %v490
        %v495 = vunpack.c.h.b16 %v490
        %v496 = vunpack.c.l.b16 %v491
        %v497 = vunpack.c.h.b16 %v491
        %v498 = vpack.c.b16 %v494, %v494
        %v499 = vpack.c.b16 %v495, %v495
        %v500 = vpack.c.b16 %v496, %v496
        %v501 = vpack.c.b16 %v497, %v497
        %506 = vst [vmem:[%s293] sm:$0xf] %v498
        %507 = vst [vmem:[%s293 + $0x4] sm:$0xf] %v499
        %508 = vst [vmem:[%s293 + $0x8] sm:$0xf] %v500
        %509 = vst [vmem:[%s293 + $0xc] sm:$0xf] %v501
      $region36: #{nlayer_discriminator_forward.9} parent=27 // pred_fallthru
        _
      %s510 = smul.u32 4, %s21
      %p511 = scmp.lt.s32.totalorder %s510, 7
      %s512 = scalar_select %p511, %s510, 7
      %p513 = scmp.lt.s32.totalorder %s22, 0
      %s514 = scalar_select %p513, %s22, 0
      %s515 = sadd.s32 %s514, %s512
      %s516 = smul.addr %s515, 4
      %s517 = scalar_lea.vmem %s2, %s516
      %p518 = scmp.lt.s32.totalorder %s21, 1
      %s519 = scalar_select %p518, %s21, 1
      %p520 = scmp.lt.s32.totalorder %s22, 0
      %s521 = scalar_select %p520, %s22, 0
      %s522 = sadd.s32 %s521, %s519
      %s523 = smul.addr %s522, 8
      %s524 = scalar_lea.vmem %s3, %s523
      %p525 = scmp.lt.s32.totalorder %s21, 1
      %s526 = scalar_select %p525, %s21, 1
      %p527 = scmp.lt.s32.totalorder %s22, 0
      %s528 = scalar_select %p527, %s22, 0
      %s529 = sadd.s32 %s528, %s526
      %s530 = smul.addr %s529, 8
      %s531 = scalar_lea.vmem %s4, %s530
      // Predicated region
      $region37: #{nlayer_discriminator_forward.9} parent=27 // pred_check
        %p532 = pneg %p111
      $region38: #{nlayer_discriminator_forward.9} parent=27 // pred_check_branch
        %534 = sbr.rel (%p532) target = $region40
      $region39: #{nlayer_discriminator_forward.9} parent=27 // pred_region
        %s535 = smul.u32 4, %s21
      $region40: #{nlayer_discriminator_forward.9} parent=27 // pred_fallthru
        _
      // Predicated region
      $region41: #{nlayer_discriminator_forward.9} parent=27 // pred_check
        %p536 = pneg %p139
      $region42: #{nlayer_discriminator_forward.9} parent=27 // pred_check_branch
        %538 = sbr.rel (%p536) target = $region44
      $region43: #{nlayer_discriminator_forward.9} parent=27 // pred_region
        _
      $region44: #{nlayer_discriminator_forward.9} parent=27 // pred_fallthru
        _
      // Predicated region
      $region45: #{nlayer_discriminator_forward.9} parent=27 // pred_check
        %p539 = pneg %p167
      $region46: #{nlayer_discriminator_forward.9} parent=27 // pred_check_branch
        %541 = sbr.rel (%p539) target = $region48
      $region47: #{nlayer_discriminator_forward.9} parent=27 // pred_region
        _
      $region48: #{nlayer_discriminator_forward.9} parent=27 // pred_fallthru
        _
    $region28: #{nlayer_discriminator_forward.9} parent=5 // pred_fallthru
      _
    %p542 = scmp.le.s32.totalorder 2, %s11
    // Predicated region
    $region49: #{nlayer_discriminator_forward.9} parent=5 // pred_check
      %p543 = pneg %p542
    $region50: #{nlayer_discriminator_forward.9} parent=5 // pred_check_branch
      %545 = sbr.rel (%p543) target = $region52
    $region51: #{nlayer_discriminator_forward.9} parent=5 // pred_region
      %s546 = ssub.s32 %s11, 2
      // Predicated region
      $region53: #{nlayer_discriminator_forward.9} parent=51 // pred_check
        %p547 = pneg %p117
      $region54: #{nlayer_discriminator_forward.9} parent=51 // pred_check_branch
        %549 = sbr.rel (%p547) target = $region56
      $region55: #{nlayer_discriminator_forward.9} parent=51 // pred_region
        %s550 = smul.u32 4, %s24
        %p551 = scmp.lt.s32.totalorder %s550, 7
        %s552 = scalar_select %p551, %s550, 7
        %p553 = scmp.lt.s32.totalorder %s25, 0
        %s554 = scalar_select %p553, %s25, 0
        %s555 = sadd.s32 %s554, %s552
        %s556 = smul.addr %s555, 4
        %s557 = scalar_lea.vmem %s2, %s556
      $region56: #{nlayer_discriminator_forward.9} parent=51 // pred_fallthru
        _
      // Predicated region
      $region57: #{nlayer_discriminator_forward.9} parent=51 // pred_check
        %p558 = pneg %p145
      $region58: #{nlayer_discriminator_forward.9} parent=51 // pred_check_branch
        %560 = sbr.rel (%p558) target = $region60
      $region59: #{nlayer_discriminator_forward.9} parent=51 // pred_region
        %p561 = scmp.lt.s32.totalorder %s24, 1
        %s562 = scalar_select %p561, %s24, 1
        %p563 = scmp.lt.s32.totalorder %s25, 0
        %s564 = scalar_select %p563, %s25, 0
        %s565 = sadd.s32 %s564, %s562
        %s566 = smul.addr %s565, 8
        %s567 = scalar_lea.vmem %s3, %s566
      $region60: #{nlayer_discriminator_forward.9} parent=51 // pred_fallthru
        _
      // Predicated region
      $region61: #{nlayer_discriminator_forward.9} parent=51 // pred_check
        %p568 = pneg %p173
      $region62: #{nlayer_discriminator_forward.9} parent=51 // pred_check_branch
        %570 = sbr.rel (%p568) target = $region64
      $region63: #{nlayer_discriminator_forward.9} parent=51 // pred_region
        %p571 = scmp.lt.s32.totalorder %s24, 1
        %s572 = scalar_select %p571, %s24, 1
        %p573 = scmp.lt.s32.totalorder %s25, 0
        %s574 = scalar_select %p573, %s25, 0
        %s575 = sadd.s32 %s574, %s572
        %s576 = smul.addr %s575, 8
        %s577 = scalar_lea.vmem %s4, %s576
      $region64: #{nlayer_discriminator_forward.9} parent=51 // pred_fallthru
        _
    $region52: #{nlayer_discriminator_forward.9} parent=5 // pred_fallthru
      _
  $region6: #{nlayer_discriminator_forward.9} parent=0 // loop_footer
    %s15 = sadd.s32 1, %s11
  $region7: #{nlayer_discriminator_forward.9} parent=0 // loop_footer_branch
    %10 = sbr.rel target = $region3
  $region8: #{nlayer_discriminator_forward.9} parent=0 // loop_exit
    _

// kernel: nlayer_discriminator_forward.10
$region0: #{nlayer_discriminator_forward.10}
  #allocation0 [shape = 'u32[]', space=smem, size = 0x4, offset = 0x4, fixed_abs, tag = 'smem constant byte address 0x4 - core index']
  #allocation1 [shape = 'u32[144,128]{1,0:T(1,128)}', space=vmem, size = 0x12000, scoped, tag = 'internal scratch']
  %s0 = inlined_call_operand.vmem [shape: bf16[64,128], index: 0, kind: input, shape index: {}]
  %s1 = inlined_call_operand.vmem [shape: f32[1,128], index: 1, kind: input, shape index: {}]
  %s2 = inlined_call_operand.vmem [shape: f32[1,128], index: 2, kind: input, shape index: {}]
  %s3 = inlined_call_operand.vmem [shape: bf16[64,128], index: 3, kind: output, shape index: {}]
  %s4 = sld [smem:[#allocation0]]
  $region45: #{nlayer_discriminator_forward.10} parent=0
    _
  %s6 = ssub.s32 1, %s4
  %s7 = scalar_select 0, %s6, %s4
  loop: start=0, step=1, limit=4
  $region2: #{nlayer_discriminator_forward.10} parent=0 // loop_pre_header
    _
  $region3: #{nlayer_discriminator_forward.10} parent=0 // loop_header
    %s9 = sphi 0, %s13
    %p10 = scmp.ge.s32.totalorder %s9, 4
    %s16 = sphi 0, %s28
    %s17 = sphi 0, %s24
    %s18 = sphi 0, %s16
    %s19 = sphi 0, %s17
    %s20 = sphi 0, %s18
    %s21 = sphi 0, %s19
    %s33 = sphi 0, %s35
    %s36 = sphi 0, %s33
    %s37 = sphi 0, %s36
    %s53 = sphi 0, %s37
    %s59 = sphi 0, %s61
    %s62 = sphi 0, %s59
    %s63 = sphi 0, %s62
    %s79 = sphi 0, %s63
    %s85 = sphi 0, %s87
    %s88 = sphi 0, %s85
    %s89 = sphi 0, %s88
    %s105 = sphi 0, %s89
    %s113 = sphi 0, %s115
    %s116 = sphi 0, %s113
    %s117 = sphi 0, %s116
    %s133 = sphi 0, %s117
  $region4: #{nlayer_discriminator_forward.10} parent=0 // loop_header_branch
    %12 = sbr.rel (%p10) target = $region8
  $region5: #{nlayer_discriminator_forward.10} parent=0 // loop_body
    %s14 = ssub.s32 %s9, 1
    %s15 = ssub.s32 %s9, 2
    %s22 = sadd.s32 1, %s17
    %p23 = scmp.ge.s32.totalorder %s22, 1
    %s24 = scalar_select %p23, 0, %s22
    %s25 = sadd.s32 1, %s16
    %s26 = scalar_select %p23, %s25, %s16
    %p27 = scmp.ge.s32.totalorder %s26, 2
    %s28 = scalar_select %p27, 0, %s26
    %s29 = ssub.s32 %s16, %s28
    %s30 = ssub.s32 %s17, %s24
    %s31 = sor.u32 %s29, %s30
    %p32 = scmp.eq.s32.totalorder %s31, 0
    %s34 = sadd.s32 %s33, 1
    %s35 = scalar_select %p32, %s33, %s34
    %p38 = pneg %p32
    %p39 = scmp.eq.s32.totalorder %s9, 1
    %p40 = por %p38, %p39
    %p41 = scmp.ne.s32.totalorder %s33, %s36
    %p42 = scmp.eq.s32.totalorder %s9, 0
    %p43 = por %p41, %p42
    %p44 = scmp.ne.s32.totalorder %s33, %s36
    %p45 = scmp.eq.s32.totalorder %s14, 1
    %p46 = por %p44, %p45
    %p47 = scmp.ne.s32.totalorder %s36, %s37
    %p48 = scmp.eq.s32.totalorder %s14, 0
    %p49 = por %p47, %p48
    %p50 = scmp.ne.s32.totalorder %s36, %s37
    %p51 = scmp.eq.s32.totalorder %s15, 1
    %p52 = por %p50, %p51
    %p54 = scmp.ne.s32.totalorder %s37, %s53
    %p55 = scmp.eq.s32.totalorder %s15, 0
    %p56 = por %p54, %p55
    %s57 = ssub.s32 %s17, %s24
    %p58 = scmp.eq.s32.totalorder %s57, 0
    %s60 = sadd.s32 %s59, 1
    %s61 = scalar_select %p58, %s59, %s60
    %p64 = pneg %p58
    %p65 = scmp.eq.s32.totalorder %s9, 1
    %p66 = por %p64, %p65
    %p67 = scmp.ne.s32.totalorder %s59, %s62
    %p68 = scmp.eq.s32.totalorder %s9, 0
    %p69 = por %p67, %p68
    %p70 = scmp.ne.s32.totalorder %s59, %s62
    %p71 = scmp.eq.s32.totalorder %s14, 1
    %p72 = por %p70, %p71
    %p73 = scmp.ne.s32.totalorder %s62, %s63
    %p74 = scmp.eq.s32.totalorder %s14, 0
    %p75 = por %p73, %p74
    %p76 = scmp.ne.s32.totalorder %s62, %s63
    %p77 = scmp.eq.s32.totalorder %s15, 1
    %p78 = por %p76, %p77
    %p80 = scmp.ne.s32.totalorder %s63, %s79
    %p81 = scmp.eq.s32.totalorder %s15, 0
    %p82 = por %p80, %p81
    %s83 = ssub.s32 %s17, %s24
    %p84 = scmp.eq.s32.totalorder %s83, 0
    %s86 = sadd.s32 %s85, 1
    %s87 = scalar_select %p84, %s85, %s86
    %p90 = pneg %p84
    %p91 = scmp.eq.s32.totalorder %s9, 1
    %p92 = por %p90, %p91
    %p93 = scmp.ne.s32.totalorder %s85, %s88
    %p94 = scmp.eq.s32.totalorder %s9, 0
    %p95 = por %p93, %p94
    %p96 = scmp.ne.s32.totalorder %s85, %s88
    %p97 = scmp.eq.s32.totalorder %s14, 1
    %p98 = por %p96, %p97
    %p99 = scmp.ne.s32.totalorder %s88, %s89
    %p100 = scmp.eq.s32.totalorder %s14, 0
    %p101 = por %p99, %p100
    %p102 = scmp.ne.s32.totalorder %s88, %s89
    %p103 = scmp.eq.s32.totalorder %s15, 1
    %p104 = por %p102, %p103
    %p106 = scmp.ne.s32.totalorder %s89, %s105
    %p107 = scmp.eq.s32.totalorder %s15, 0
    %p108 = por %p106, %p107
    %s109 = ssub.s32 %s16, %s28
    %s110 = ssub.s32 %s17, %s24
    %s111 = sor.u32 %s109, %s110
    %p112 = scmp.eq.s32.totalorder %s111, 0
    %s114 = sadd.s32 %s113, 1
    %s115 = scalar_select %p112, %s113, %s114
    %p118 = pneg %p112
    %p119 = scmp.eq.s32.totalorder %s9, 1
    %p120 = por %p118, %p119
    %p121 = scmp.ne.s32.totalorder %s113, %s116
    %p122 = scmp.eq.s32.totalorder %s9, 0
    %p123 = por %p121, %p122
    %p124 = scmp.ne.s32.totalorder %s113, %s116
    %p125 = scmp.eq.s32.totalorder %s14, 1
    %p126 = por %p124, %p125
    %p127 = scmp.ne.s32.totalorder %s116, %s117
    %p128 = scmp.eq.s32.totalorder %s14, 0
    %p129 = por %p127, %p128
    %p130 = scmp.ne.s32.totalorder %s116, %s117
    %p131 = scmp.eq.s32.totalorder %s15, 1
    %p132 = por %p130, %p131
    %p134 = scmp.ne.s32.totalorder %s117, %s133
    %p135 = scmp.eq.s32.totalorder %s15, 0
    %p136 = por %p134, %p135
    %p137 = scmp.le.s32.totalorder 1, %s9
    %p138 = scmp.lt.s32.totalorder %s9, 3
    %p139 = pnand %p137, %p138
    %p140 = pneg %p139
    // Predicated region
    $region9: #{nlayer_discriminator_forward.10} parent=5 // pred_check
      _
    $region10: #{nlayer_discriminator_forward.10} parent=5 // pred_check_branch
      %142 = sbr.rel (%p139) target = $region12
    $region11: #{nlayer_discriminator_forward.10} parent=5 // pred_region
      %s143 = ssub.s32 %s9, 1
      // Predicated region
      $region13: #{nlayer_discriminator_forward.10} parent=11 // pred_check
        %p144 = pneg %p75
      $region14: #{nlayer_discriminator_forward.10} parent=11 // pred_check_branch
        %146 = sbr.rel (%p144) target = $region16
      $region15: #{nlayer_discriminator_forward.10} parent=11 // pred_region
        %p147 = scmp.lt.s32.totalorder %s19, 0
        %s148 = scalar_select %p147, %s19, 0
        %s149 = scalar_lea.vmem %s1, %s148
      $region16: #{nlayer_discriminator_forward.10} parent=11 // pred_fallthru
        _
      // Predicated region
      $region17: #{nlayer_discriminator_forward.10} parent=11 // pred_check
        %p150 = pneg %p101
      $region18: #{nlayer_discriminator_forward.10} parent=11 // pred_check_branch
        %152 = sbr.rel (%p150) target = $region20
      $region19: #{nlayer_discriminator_forward.10} parent=11 // pred_region
        %p153 = scmp.lt.s32.totalorder %s19, 0
        %s154 = scalar_select %p153, %s19, 0
        %s155 = scalar_lea.vmem %s2, %s154
      $region20: #{nlayer_discriminator_forward.10} parent=11 // pred_fallthru
        _
    $region12: #{nlayer_discriminator_forward.10} parent=5 // pred_fallthru
      _
    %p156 = scmp.lt.s32.totalorder %s9, 2
    // Predicated region
    $region21: #{nlayer_discriminator_forward.10} parent=5 // pred_check
      %p157 = pneg %p156
    $region22: #{nlayer_discriminator_forward.10} parent=5 // pred_check_branch
      %159 = sbr.rel (%p157) target = $region24
    $region23: #{nlayer_discriminator_forward.10} parent=5 // pred_region
      // Predicated region
      $region25: #{nlayer_discriminator_forward.10} parent=23 // pred_check
        %p160 = pneg %p43
      $region26: #{nlayer_discriminator_forward.10} parent=23 // pred_check_branch
        %162 = sbr.rel (%p160) target = $region28
      $region27: #{nlayer_discriminator_forward.10} parent=23 // pred_region
        %s163 = smul.u32 4, %s16
        %p164 = scmp.lt.s32.totalorder %s163, 7
        %s165 = scalar_select %p164, %s163, 7
        %p166 = scmp.lt.s32.totalorder %s17, 0
        %s167 = scalar_select %p166, %s17, 0
        %s168 = sadd.s32 %s167, %s165
        %s169 = smul.addr %s168, 4
        %s170 = scalar_lea.vmem %s0, %s169
        %s171 = smul.u32 4, %s16
      $region28: #{nlayer_discriminator_forward.10} parent=23 // pred_fallthru
        _
    $region24: #{nlayer_discriminator_forward.10} parent=5 // pred_fallthru
      _
    %p172 = scmp.le.s32.totalorder 1, %s9
    %p173 = scmp.lt.s32.totalorder %s9, 3
    %p174 = pnand %p172, %p173
    %p175 = pneg %p174
    // Predicated region
    $region29: #{nlayer_discriminator_forward.10} parent=5 // pred_check
      _
    $region30: #{nlayer_discriminator_forward.10} parent=5 // pred_check_branch
      %177 = sbr.rel (%p174) target = $region32
    $region31: #{nlayer_discriminator_forward.10} parent=5 // pred_region
      %s178 = ssub.s32 %s9, 1
      %s179 = smul.u32 4, %s18
      %p180 = scmp.lt.s32.totalorder %s179, 7
      %s181 = scalar_select %p180, %s179, 7
      %p182 = scmp.lt.s32.totalorder %s19, 0
      %s183 = scalar_select %p182, %s19, 0
      %s184 = sadd.s32 %s183, %s181
      %s185 = smul.addr %s184, 4
      %s186 = scalar_lea.vmem %s0, %s185
      %p187 = pneg %p49
      %p188 = pneg %p46
      %p189 = scmp.lt.s32.totalorder %s19, 0
      %s190 = scalar_select %p189, %s19, 0
      %s191 = scalar_lea.vmem %s1, %s190
      %p192 = pneg %p75
      %p193 = pneg %p72
      %p194 = scmp.lt.s32.totalorder %s19, 0
      %s195 = scalar_select %p194, %s19, 0
      %s196 = scalar_lea.vmem %s2, %s195
      %p197 = pneg %p101
      %p198 = pneg %p98
      %p199 = pneg %p129
      %p200 = pneg %p126
      %s201 = smul.u32 4, %s18
      %p202 = scmp.lt.s32.totalorder %s201, 7
      %s203 = scalar_select %p202, %s201, 7
      %p204 = scmp.lt.s32.totalorder %s19, 0
      %s205 = scalar_select %p204, %s19, 0
      %s206 = sadd.s32 %s205, %s203
      %s207 = smul.addr %s206, 4
      %s208 = scalar_lea.vmem %s3, %s207
      %s209 = smul.u32 4, %s18
      %p210 = scmp.lt.s32.totalorder %s209, 7
      %s211 = scalar_select %p210, %s209, 7
      %p212 = scmp.lt.s32.totalorder %s19, 0
      %s213 = scalar_select %p212, %s19, 0
      %s214 = sadd.s32 %s213, %s211
      %s215 = smul.addr %s214, 4
      %s216 = scalar_lea.vmem %s0, %s215
      %s217 = smul.u32 4, %s18
      %p218 = scmp.lt.s32.totalorder %s19, 0
      %s219 = scalar_select %p218, %s19, 0
      %s220 = scalar_lea.vmem %s1, %s219
      %p221 = scmp.lt.s32.totalorder %s19, 0
      %s222 = scalar_select %p221, %s19, 0
      %s223 = scalar_lea.vmem %s2, %s222
      %s224 = smul.u32 4, %s18
      %p225 = scmp.lt.s32.totalorder %s224, 7
      %s226 = scalar_select %p225, %s224, 7
      %p227 = scmp.lt.s32.totalorder %s19, 0
      %s228 = scalar_select %p227, %s19, 0
      %s229 = sadd.s32 %s228, %s226
      %s230 = smul.addr %s229, 4
      %s231 = scalar_lea.vmem %s3, %s230
      %s232 = smul.u32 4, %s18
      %v233 = vld [vmem:[%s216] sm:$0xf]
      %v234 = vld [vmem:[%s216 + $0x4] sm:$0xf]
      %v235 = vld [vmem:[%s216 + $0x8] sm:$0xf]
      %v236 = vld [vmem:[%s216 + $0xc] sm:$0xf]
      %v237 = vunpack.c.l.bf16 %v233
      %v238 = vunpack.c.l.bf16 %v234
      %v239 = vunpack.c.l.bf16 %v235
      %v240 = vunpack.c.l.bf16 %v236
      %v241 = vld [vmem:[%s220] sm:$0x1]
      %v243 = vlaneseq
      %v244 = vshrl.u32 %v243, 7
      %v245 = vsub.s32 0, %v244
      %v246 = vrot.slane %v241, %v245
      %v248 = vmul.f32 %v237, %v246
      %v249 = vmul.f32 %v238, %v246
      %v250 = vmul.f32 %v239, %v246
      %v251 = vmul.f32 %v240, %v246
      %v252 = vld [vmem:[%s223] sm:$0x1]
      %v254 = vlaneseq
      %v255 = vshrl.u32 %v254, 7
      %v256 = vsub.s32 0, %v255
      %v257 = vrot.slane %v252, %v256
      %v259 = vadd.f32 %v248, %v257
      %v260 = vadd.f32 %v249, %v257
      %v261 = vadd.f32 %v250, %v257
      %v262 = vadd.f32 %v251, %v257
      %vm263 = vcmp.gt.f32.partialorder %v259, 0.0
      %vm264 = vcmp.gt.f32.partialorder %v260, 0.0
      %vm265 = vcmp.gt.f32.partialorder %v261, 0.0
      %vm266 = vcmp.gt.f32.partialorder %v262, 0.0
      %v267 = vmul.f32 %v259, 0.2
      %v268 = vmul.f32 %v260, 0.2
      %v269 = vmul.f32 %v261, 0.2
      %v270 = vmul.f32 %v262, 0.2
      %v271 = vsel %vm263, %v259, %v267
      %v272 = vsel %vm264, %v260, %v268
      %v273 = vsel %vm265, %v261, %v269
      %v274 = vsel %vm266, %v262, %v270
      %v275 = vpack.c.bf16 %v272, %v271
      %v276 = vpack.c.bf16 %v274, %v273
      %v279 = vunpack.c.l.b16 %v275
      %v280 = vunpack.c.h.b16 %v275
      %v281 = vunpack.c.l.b16 %v276
      %v282 = vunpack.c.h.b16 %v276
      %v283 = vpack.c.b16 %v279, %v279
      %v284 = vpack.c.b16 %v280, %v280
      %v285 = vpack.c.b16 %v281, %v281
      %v286 = vpack.c.b16 %v282, %v282
      %291 = vst [vmem:[%s231] sm:$0xf] %v283
      %292 = vst [vmem:[%s231 + $0x4] sm:$0xf] %v284
      %293 = vst [vmem:[%s231 + $0x8] sm:$0xf] %v285
      %294 = vst [vmem:[%s231 + $0xc] sm:$0xf] %v286
      %s295 = smul.u32 4, %s18
      %p296 = scmp.lt.s32.totalorder %s295, 7
      %s297 = scalar_select %p296, %s295, 7
      %p298 = scmp.lt.s32.totalorder %s19, 0
      %s299 = scalar_select %p298, %s19, 0
      %s300 = sadd.s32 %s299, %s297
      %s301 = smul.addr %s300, 4
      %s302 = scalar_lea.vmem %s3, %s301
      // Predicated region
      $region33: #{nlayer_discriminator_forward.10} parent=31 // pred_check
        %p303 = pneg %p126
      $region34: #{nlayer_discriminator_forward.10} parent=31 // pred_check_branch
        %305 = sbr.rel (%p303) target = $region36
      $region35: #{nlayer_discriminator_forward.10} parent=31 // pred_region
        %s306 = smul.u32 4, %s18
      $region36: #{nlayer_discriminator_forward.10} parent=31 // pred_fallthru
        _
    $region32: #{nlayer_discriminator_forward.10} parent=5 // pred_fallthru
      _
    %p307 = scmp.le.s32.totalorder 2, %s9
    // Predicated region
    $region37: #{nlayer_discriminator_forward.10} parent=5 // pred_check
      %p308 = pneg %p307
    $region38: #{nlayer_discriminator_forward.10} parent=5 // pred_check_branch
      %310 = sbr.rel (%p308) target = $region40
    $region39: #{nlayer_discriminator_forward.10} parent=5 // pred_region
      %s311 = ssub.s32 %s9, 2
      // Predicated region
      $region41: #{nlayer_discriminator_forward.10} parent=39 // pred_check
        %p312 = pneg %p132
      $region42: #{nlayer_discriminator_forward.10} parent=39 // pred_check_branch
        %314 = sbr.rel (%p312) target = $region44
      $region43: #{nlayer_discriminator_forward.10} parent=39 // pred_region
        %s315 = smul.u32 4, %s20
        %p316 = scmp.lt.s32.totalorder %s315, 7
        %s317 = scalar_select %p316, %s315, 7
        %p318 = scmp.lt.s32.totalorder %s21, 0
        %s319 = scalar_select %p318, %s21, 0
        %s320 = sadd.s32 %s319, %s317
        %s321 = smul.addr %s320, 4
        %s322 = scalar_lea.vmem %s3, %s321
      $region44: #{nlayer_discriminator_forward.10} parent=39 // pred_fallthru
        _
    $region40: #{nlayer_discriminator_forward.10} parent=5 // pred_fallthru
      _
  $region6: #{nlayer_discriminator_forward.10} parent=0 // loop_footer
    %s13 = sadd.s32 1, %s9
  $region7: #{nlayer_discriminator_forward.10} parent=0 // loop_footer_branch
    %8 = sbr.rel target = $region3
  $region8: #{nlayer_discriminator_forward.10} parent=0 // loop_exit
    _

// kernel: nlayer_discriminator_forward.8
$region0: #{nlayer_discriminator_forward.8}
  #allocation0 [shape = 'u32[]', space=smem, size = 0x4, offset = 0x4, fixed_abs, tag = 'smem constant byte address 0x4 - core index']
  #allocation1 [shape = 'u32[144,128]{1,0:T(1,128)}', space=vmem, size = 0x12000, scoped, tag = 'internal scratch']
  #allocation2 [shape = 'f32[96,128]{1,0:T(8,128)}', space=vmem, size = 0xc000, scoped, tag = 'scratch operand']
  %s0 = inlined_call_operand.vmem [shape: bf16[192,48], index: 0, kind: input, shape index: {}]
  %s1 = inlined_call_operand.vmem [shape: bf16[48,128], index: 1, kind: input, shape index: {}]
  %s2 = inlined_call_operand.vmem [shape: f32[1,128], index: 2, kind: input, shape index: {}]
  %s3 = inlined_call_operand.vmem [shape: bf16[192,128], index: 3, kind: output, shape index: {}]
  %s4 = sld [smem:[#allocation0]]
  $region53: #{nlayer_discriminator_forward.8} parent=0
    _
  %s6 = ssub.s32 1, %s4
  %s7 = scalar_select 0, %s6, %s4
  loop: start=0, step=1, limit=4
  $region2: #{nlayer_discriminator_forward.8} parent=0 // loop_pre_header
    _
  $region3: #{nlayer_discriminator_forward.8} parent=0 // loop_header
    %s9 = sphi 0, %s13
    %p10 = scmp.ge.s32.totalorder %s9, 4
    %s16 = sphi 0, %s35
    %s17 = sphi 0, %s31
    %s18 = sphi 0, %s27
    %s19 = sphi 0, %s16
    %s20 = sphi 0, %s17
    %s21 = sphi 0, %s18
    %s22 = sphi 0, %s19
    %s23 = sphi 0, %s20
    %s24 = sphi 0, %s21
    %s40 = sphi 0, %s42
    %s43 = sphi 0, %s40
    %s44 = sphi 0, %s43
    %s60 = sphi 0, %s44
    %s68 = sphi 0, %s70
    %s71 = sphi 0, %s68
    %s72 = sphi 0, %s71
    %s88 = sphi 0, %s72
    %s94 = sphi 0, %s96
    %s97 = sphi 0, %s94
    %s98 = sphi 0, %s97
    %s114 = sphi 0, %s98
    %s122 = sphi 0, %s124
    %s125 = sphi 0, %s122
    %s126 = sphi 0, %s125
    %s142 = sphi 0, %s126
  $region4: #{nlayer_discriminator_forward.8} parent=0 // loop_header_branch
    %12 = sbr.rel (%p10) target = $region8
  $region5: #{nlayer_discriminator_forward.8} parent=0 // loop_body
    %s14 = ssub.s32 %s9, 1
    %s15 = ssub.s32 %s9, 2
    %s25 = sadd.s32 1, %s18
    %p26 = scmp.ge.s32.totalorder %s25, 1
    %s27 = scalar_select %p26, 0, %s25
    %s28 = sadd.s32 1, %s17
    %s29 = scalar_select %p26, %s28, %s17
    %p30 = scmp.ge.s32.totalorder %s29, 1
    %s31 = scalar_select %p30, 0, %s29
    %s32 = sadd.s32 1, %s16
    %s33 = scalar_select %p30, %s32, %s16
    %p34 = scmp.ge.s32.totalorder %s33, 2
    %s35 = scalar_select %p34, 0, %s33
    %s36 = ssub.s32 %s16, %s35
    %s37 = ssub.s32 %s18, %s27
    %s38 = sor.u32 %s36, %s37
    %p39 = scmp.eq.s32.totalorder %s38, 0
    %s41 = sadd.s32 %s40, 1
    %s42 = scalar_select %p39, %s40, %s41
    %p45 = pneg %p39
    %p46 = scmp.eq.s32.totalorder %s9, 1
    %p47 = por %p45, %p46
    %p48 = scmp.ne.s32.totalorder %s40, %s43
    %p49 = scmp.eq.s32.totalorder %s9, 0
    %p50 = por %p48, %p49
    %p51 = scmp.ne.s32.totalorder %s40, %s43
    %p52 = scmp.eq.s32.totalorder %s14, 1
    %p53 = por %p51, %p52
    %p54 = scmp.ne.s32.totalorder %s43, %s44
    %p55 = scmp.eq.s32.totalorder %s14, 0
    %p56 = por %p54, %p55
    %p57 = scmp.ne.s32.totalorder %s43, %s44
    %p58 = scmp.eq.s32.totalorder %s15, 1
    %p59 = por %p57, %p58
    %p61 = scmp.ne.s32.totalorder %s44, %s60
    %p62 = scmp.eq.s32.totalorder %s15, 0
    %p63 = por %p61, %p62
    %s64 = ssub.s32 %s18, %s27
    %s65 = ssub.s32 %s17, %s31
    %s66 = sor.u32 %s64, %s65
    %p67 = scmp.eq.s32.totalorder %s66, 0
    %s69 = sadd.s32 %s68, 1
    %s70 = scalar_select %p67, %s68, %s69
    %p73 = pneg %p67
    %p74 = scmp.eq.s32.totalorder %s9, 1
    %p75 = por %p73, %p74
    %p76 = scmp.ne.s32.totalorder %s68, %s71
    %p77 = scmp.eq.s32.totalorder %s9, 0
    %p78 = por %p76, %p77
    %p79 = scmp.ne.s32.totalorder %s68, %s71
    %p80 = scmp.eq.s32.totalorder %s14, 1
    %p81 = por %p79, %p80
    %p82 = scmp.ne.s32.totalorder %s71, %s72
    %p83 = scmp.eq.s32.totalorder %s14, 0
    %p84 = por %p82, %p83
    %p85 = scmp.ne.s32.totalorder %s71, %s72
    %p86 = scmp.eq.s32.totalorder %s15, 1
    %p87 = por %p85, %p86
    %p89 = scmp.ne.s32.totalorder %s72, %s88
    %p90 = scmp.eq.s32.totalorder %s15, 0
    %p91 = por %p89, %p90
    %s92 = ssub.s32 %s17, %s31
    %p93 = scmp.eq.s32.totalorder %s92, 0
    %s95 = sadd.s32 %s94, 1
    %s96 = scalar_select %p93, %s94, %s95
    %p99 = pneg %p93
    %p100 = scmp.eq.s32.totalorder %s9, 1
    %p101 = por %p99, %p100
    %p102 = scmp.ne.s32.totalorder %s94, %s97
    %p103 = scmp.eq.s32.totalorder %s9, 0
    %p104 = por %p102, %p103
    %p105 = scmp.ne.s32.totalorder %s94, %s97
    %p106 = scmp.eq.s32.totalorder %s14, 1
    %p107 = por %p105, %p106
    %p108 = scmp.ne.s32.totalorder %s97, %s98
    %p109 = scmp.eq.s32.totalorder %s14, 0
    %p110 = por %p108, %p109
    %p111 = scmp.ne.s32.totalorder %s97, %s98
    %p112 = scmp.eq.s32.totalorder %s15, 1
    %p113 = por %p111, %p112
    %p115 = scmp.ne.s32.totalorder %s98, %s114
    %p116 = scmp.eq.s32.totalorder %s15, 0
    %p117 = por %p115, %p116
    %s118 = ssub.s32 %s16, %s35
    %s119 = ssub.s32 %s17, %s31
    %s120 = sor.u32 %s118, %s119
    %p121 = scmp.eq.s32.totalorder %s120, 0
    %s123 = sadd.s32 %s122, 1
    %s124 = scalar_select %p121, %s122, %s123
    %p127 = pneg %p121
    %p128 = scmp.eq.s32.totalorder %s9, 1
    %p129 = por %p127, %p128
    %p130 = scmp.ne.s32.totalorder %s122, %s125
    %p131 = scmp.eq.s32.totalorder %s9, 0
    %p132 = por %p130, %p131
    %p133 = scmp.ne.s32.totalorder %s122, %s125
    %p134 = scmp.eq.s32.totalorder %s14, 1
    %p135 = por %p133, %p134
    %p136 = scmp.ne.s32.totalorder %s125, %s126
    %p137 = scmp.eq.s32.totalorder %s14, 0
    %p138 = por %p136, %p137
    %p139 = scmp.ne.s32.totalorder %s125, %s126
    %p140 = scmp.eq.s32.totalorder %s15, 1
    %p141 = por %p139, %p140
    %p143 = scmp.ne.s32.totalorder %s126, %s142
    %p144 = scmp.eq.s32.totalorder %s15, 0
    %p145 = por %p143, %p144
    %p146 = scmp.le.s32.totalorder 1, %s9
    %p147 = scmp.lt.s32.totalorder %s9, 3
    %p148 = pnand %p146, %p147
    %p149 = pneg %p148
    // Predicated region
    $region9: #{nlayer_discriminator_forward.8} parent=5 // pred_check
      _
    $region10: #{nlayer_discriminator_forward.8} parent=5 // pred_check_branch
      %151 = sbr.rel (%p148) target = $region12
    $region11: #{nlayer_discriminator_forward.8} parent=5 // pred_region
      %s152 = ssub.s32 %s9, 1
      // Predicated region
      $region13: #{nlayer_discriminator_forward.8} parent=11 // pred_check
        %p153 = pneg %p84
      $region14: #{nlayer_discriminator_forward.8} parent=11 // pred_check_branch
        %155 = sbr.rel (%p153) target = $region16
      $region15: #{nlayer_discriminator_forward.8} parent=11 // pred_region
        %s156 = smul.u32 6, %s21
        %p157 = scmp.lt.s32.totalorder %s156, 5
        %s158 = scalar_select %p157, %s156, 5
        %p159 = scmp.lt.s32.totalorder %s20, 0
        %s160 = scalar_select %p159, %s20, 0
        %s161 = sadd.s32 %s160, %s158
        %s162 = smul.addr %s161, 4
        %s163 = scalar_lea.vmem %s1, %s162
        %s164 = smul.u32 6, %s21
      $region16: #{nlayer_discriminator_forward.8} parent=11 // pred_fallthru
        _
      // Predicated region
      $region17: #{nlayer_discriminator_forward.8} parent=11 // pred_check
        %p165 = pneg %p110
      $region18: #{nlayer_discriminator_forward.8} parent=11 // pred_check_branch
        %167 = sbr.rel (%p165) target = $region20
      $region19: #{nlayer_discriminator_forward.8} parent=11 // pred_region
        %p168 = scmp.lt.s32.totalorder %s20, 0
        %s169 = scalar_select %p168, %s20, 0
        %s170 = scalar_lea.vmem %s2, %s169
      $region20: #{nlayer_discriminator_forward.8} parent=11 // pred_fallthru
        _
    $region12: #{nlayer_discriminator_forward.8} parent=5 // pred_fallthru
      _
    %p171 = scmp.lt.s32.totalorder %s9, 2
    // Predicated region
    $region21: #{nlayer_discriminator_forward.8} parent=5 // pred_check
      %p172 = pneg %p171
    $region22: #{nlayer_discriminator_forward.8} parent=5 // pred_check_branch
      %174 = sbr.rel (%p172) target = $region24
    $region23: #{nlayer_discriminator_forward.8} parent=5 // pred_region
      // Predicated region
      $region25: #{nlayer_discriminator_forward.8} parent=23 // pred_check
        %p175 = pneg %p50
      $region26: #{nlayer_discriminator_forward.8} parent=23 // pred_check_branch
        %177 = sbr.rel (%p175) target = $region28
      $region27: #{nlayer_discriminator_forward.8} parent=23 // pred_region
        %s178 = smul.u32 12, %s16
        %p179 = scmp.lt.s32.totalorder %s178, 23
        %s180 = scalar_select %p179, %s178, 23
        %p181 = scmp.lt.s32.totalorder %s18, 0
        %s182 = scalar_select %p181, %s18, 0
        %s183 = sadd.s32 %s182, %s180
        %s184 = smul.addr %s183, 4
        %s185 = scalar_lea.vmem %s0, %s184
        %s186 = smul.u32 12, %s16
      $region28: #{nlayer_discriminator_forward.8} parent=23 // pred_fallthru
        _
    $region24: #{nlayer_discriminator_forward.8} parent=5 // pred_fallthru
      _
    %p187 = scmp.le.s32.totalorder 1, %s9
    %p188 = scmp.lt.s32.totalorder %s9, 3
    %p189 = pnand %p187, %p188
    %p190 = pneg %p189
    // Predicated region
    $region29: #{nlayer_discriminator_forward.8} parent=5 // pred_check
      _
    $region30: #{nlayer_discriminator_forward.8} parent=5 // pred_check_branch
      %192 = sbr.rel (%p189) target = $region32
    $region31: #{nlayer_discriminator_forward.8} parent=5 // pred_region
      %s193 = ssub.s32 %s9, 1
      %s194 = smul.u32 12, %s19
      %p195 = scmp.lt.s32.totalorder %s194, 23
      %s196 = scalar_select %p195, %s194, 23
      %p197 = scmp.lt.s32.totalorder %s21, 0
      %s198 = scalar_select %p197, %s21, 0
      %s199 = sadd.s32 %s198, %s196
      %s200 = smul.addr %s199, 4
      %s201 = scalar_lea.vmem %s0, %s200
      %p202 = pneg %p56
      %p203 = pneg %p53
      %s204 = smul.u32 6, %s21
      %p205 = scmp.lt.s32.totalorder %s204, 5
      %s206 = scalar_select %p205, %s204, 5
      %p207 = scmp.lt.s32.totalorder %s20, 0
      %s208 = scalar_select %p207, %s20, 0
      %s209 = sadd.s32 %s208, %s206
      %s210 = smul.addr %s209, 4
      %s211 = scalar_lea.vmem %s1, %s210
      %p212 = pneg %p84
      %p213 = pneg %p81
      %p214 = scmp.lt.s32.totalorder %s20, 0
      %s215 = scalar_select %p214, %s20, 0
      %s216 = scalar_lea.vmem %s2, %s215
      %p217 = pneg %p110
      %p218 = pneg %p107
      %p219 = pneg %p138
      %p220 = pneg %p135
      %s221 = smul.u32 12, %s19
      %p222 = scmp.lt.s32.totalorder %s221, 23
      %s223 = scalar_select %p222, %s221, 23
      %p224 = scmp.lt.s32.totalorder %s20, 0
      %s225 = scalar_select %p224, %s20, 0
      %s226 = sadd.s32 %s225, %s223
      %s227 = smul.addr %s226, 4
      %s228 = scalar_lea.vmem %s3, %s227
      %s229 = smul.u32 12, %s19
      %p230 = scmp.lt.s32.totalorder %s229, 23
      %s231 = scalar_select %p230, %s229, 23
      %p232 = scmp.lt.s32.totalorder %s21, 0
      %s233 = scalar_select %p232, %s21, 0
      %s234 = sadd.s32 %s233, %s231
      %s235 = smul.addr %s234, 4
      %s236 = scalar_lea.vmem %s0, %s235
      %s237 = smul.u32 12, %s19
      %s238 = smul.u32 6, %s21
      %p239 = scmp.lt.s32.totalorder %s238, 5
      %s240 = scalar_select %p239, %s238, 5
      %p241 = scmp.lt.s32.totalorder %s20, 0
      %s242 = scalar_select %p241, %s20, 0
      %s243 = sadd.s32 %s242, %s240
      %s244 = smul.addr %s243, 4
      %s245 = scalar_lea.vmem %s1, %s244
      %s246 = smul.u32 6, %s21
      %p247 = scmp.lt.s32.totalorder %s20, 0
      %s248 = scalar_select %p247, %s20, 0
      %s249 = scalar_lea.vmem %s2, %s248
      %s250 = smul.u32 12, %s19
      %p251 = scmp.lt.s32.totalorder %s250, 23
      %s252 = scalar_select %p251, %s250, 23
      %p253 = scmp.lt.s32.totalorder %s20, 0
      %s254 = scalar_select %p253, %s20, 0
      %s255 = sadd.s32 %s254, %s252
      %s256 = smul.addr %s255, 4
      %s257 = scalar_lea.vmem %s3, %s256
      %s258 = smul.u32 12, %s19
      %p260 = scmp.eq.s32.totalorder %s21, 0
      // Predicated region
      $region33: #{nlayer_discriminator_forward.8} parent=31 // pred_check
        %p261 = pneg %p260
      $region34: #{nlayer_discriminator_forward.8} parent=31 // pred_check_branch
        %263 = sbr.rel (%p261) target = $region36
      $region35: #{nlayer_discriminator_forward.8} parent=31 // pred_region
        %264 = vst [vmem:[#allocation2] sm:$0xff] 0.0
        %265 = vst [vmem:[#allocation2 + $0x8] sm:$0xff] 0.0
        %266 = vst [vmem:[#allocation2 + $0x10] sm:$0xff] 0.0
        %267 = vst [vmem:[#allocation2 + $0x18] sm:$0xff] 0.0
        %268 = vst [vmem:[#allocation2 + $0x20] sm:$0xff] 0.0
        %269 = vst [vmem:[#allocation2 + $0x28] sm:$0xff] 0.0
        %270 = vst [vmem:[#allocation2 + $0x30] sm:$0xff] 0.0
        %271 = vst [vmem:[#allocation2 + $0x38] sm:$0xff] 0.0
        %272 = vst [vmem:[#allocation2 + $0x40] sm:$0xff] 0.0
        %273 = vst [vmem:[#allocation2 + $0x48] sm:$0xff] 0.0
        %274 = vst [vmem:[#allocation2 + $0x50] sm:$0xff] 0.0
        %275 = vst [vmem:[#allocation2 + $0x58] sm:$0xff] 0.0
      $region36: #{nlayer_discriminator_forward.8} parent=31 // pred_fallthru
        _
      %v276 = vld [vmem:[#allocation2] sm:$0xff]
      %v277 = vld [vmem:[#allocation2 + $0x8] sm:$0xff]
      %v278 = vld [vmem:[#allocation2 + $0x10] sm:$0xff]
      %v279 = vld [vmem:[#allocation2 + $0x18] sm:$0xff]
      %v280 = vld [vmem:[#allocation2 + $0x20] sm:$0xff]
      %v281 = vld [vmem:[#allocation2 + $0x28] sm:$0xff]
      %v282 = vld [vmem:[#allocation2 + $0x30] sm:$0xff]
      %v283 = vld [vmem:[#allocation2 + $0x38] sm:$0xff]
      %v284 = vld [vmem:[#allocation2 + $0x40] sm:$0xff]
      %v285 = vld [vmem:[#allocation2 + $0x48] sm:$0xff]
      %v286 = vld [vmem:[#allocation2 + $0x50] sm:$0xff]
      %v287 = vld [vmem:[#allocation2 + $0x58] sm:$0xff]
      %v288 = vld [vmem:[%s236] sm:$0xf]
      %v289 = vld [vmem:[%s236 + $0x4] sm:$0xf]
      %v290 = vld [vmem:[%s236 + $0x8] sm:$0xf]
      %v291 = vld [vmem:[%s236 + $0xc] sm:$0xf]
      %v292 = vld [vmem:[%s236 + $0x10] sm:$0xf]
      %v293 = vld [vmem:[%s236 + $0x14] sm:$0xf]
      %v294 = vld [vmem:[%s236 + $0x18] sm:$0xf]
      %v295 = vld [vmem:[%s236 + $0x1c] sm:$0xf]
      %v296 = vld [vmem:[%s236 + $0x20] sm:$0xf]
      %v297 = vld [vmem:[%s236 + $0x24] sm:$0xf]
      %v298 = vld [vmem:[%s236 + $0x28] sm:$0xf]
      %v299 = vld [vmem:[%s236 + $0x2c] sm:$0xf]
      %v300 = vld [vmem:[%s245] sm:$0xf]
      %v301 = vld [vmem:[%s245 + $0x4] sm:$0xf]
      %v302 = vld [vmem:[%s245 + $0x8] sm:$0xf]
      %v303 = vld [vmem:[%s245 + $0xc] sm:$0xf]
      %v304 = vld [vmem:[%s245 + $0x10] sm:$0xf]
      %v305 = vld [vmem:[%s245 + $0x14] sm:$0xf]
      %v318 = vunpack.c.l.b16 %v288
      %v319 = vunpack.c.l.b16 %v289
      %v320 = vunpack.c.l.b16 %v290
      %v321 = vunpack.c.l.b16 %v291
      %v322 = vunpack.c.l.b16 %v292
      %v323 = vunpack.c.l.b16 %v293
      %v324 = vunpack.c.l.b16 %v294
      %v325 = vunpack.c.l.b16 %v295
      %v326 = vunpack.c.l.b16 %v296
      %v327 = vunpack.c.l.b16 %v297
      %v328 = vunpack.c.l.b16 %v298
      %v329 = vunpack.c.l.b16 %v299
      %v330 = vpack.c.b16 %v319, %v318
      %v331 = vpack.c.b16 %v321, %v320
      %v332 = vpack.c.b16 %v323, %v322
      %v333 = vpack.c.b16 %v325, %v324
      %v334 = vpack.c.b16 %v327, %v326
      %v335 = vpack.c.b16 %v329, %v328
      %v342 = vunpack.c.l.b16 %v300
      %v343 = vunpack.c.l.b16 %v301
      %v344 = vunpack.c.l.b16 %v302
      %v345 = vunpack.c.l.b16 %v303
      %v346 = vunpack.c.l.b16 %v304
      %v347 = vunpack.c.l.b16 %v305
      %v348 = vpack.c.b16 %v343, %v342
      %v349 = vpack.c.b16 %v345, %v344
      %v350 = vpack.c.b16 %v347, %v346
      %vm354 = vcmask 392192
      %v356 = vsel %vm354, %v330, 0
      %v359 = vsel %vm354, %v331, 0
      %v362 = vsel %vm354, %v332, 0
      %v365 = vsel %vm354, %v333, 0
      %v368 = vsel %vm354, %v334, 0
      %v371 = vsel %vm354, %v335, 0
      %373 = vmatprep.subr.bf16.mxu0 0
      %374 = vmatpush1.bf16.msra.mxu0 0
      %375 = vmatprep.subr.bf16.mxu0 0
      %376 = vmatpush1.bf16.msra.mxu0 0
      %377 = vmatprep.subr.bf16.mxu0 0
      %378 = vmatpush1.bf16.msra.mxu0 0
      %379 = vmatprep.subr.bf16.mxu0 0
      %380 = vmatpush1.bf16.msra.mxu0 0
      %381 = vmatprep.subr.bf16.mxu0 0
      %382 = vmatpush1.bf16.msra.mxu0 0
      %383 = vmatprep.subr.bf16.mxu0 0
      %384 = vmatpush1.bf16.msra.mxu0 %v350
      %385 = vmatprep.subr.bf16.mxu0 0
      %386 = vmatpush1.bf16.msra.mxu0 %v349
      %387 = vmatprep.subr.bf16.mxu0 0
      %388 = vmatpush1.bf16.msra.mxu0 %v348
      %389 = vmatprep.subr.bf16.mxu0 0
      %390 = vmatpush2.bf16.msra.mxu0 0
      %391 = vmatprep.subr.bf16.mxu0 0
      %392 = vmatpush2.bf16.msra.mxu0 0
      %393 = vmatprep.subr.bf16.mxu0 0
      %394 = vmatpush2.bf16.msra.mxu0 0
      %395 = vmatprep.subr.bf16.mxu0 0
      %396 = vmatpush2.bf16.msra.mxu0 0
      %397 = vmatprep.subr.bf16.mxu0 0
      %398 = vmatpush2.bf16.msra.mxu0 0
      %399 = vmatprep.subr.bf16.mxu0 0
      %400 = vmatpush2.bf16.msra.mxu0 0
      %401 = vmatprep.subr.bf16.mxu0 0
      %402 = vmatpush2.bf16.msra.mxu0 0
      %403 = vmatprep.subr.bf16.mxu0 0
      %404 = vmatpush2.bf16.msra.mxu0 0
      %405 = vmatprep.mubr.bf16.mxu0 0
      %406 = vmatmul.mubr.bf16.gmra.mxu0 %v356
      %v407 = vpop.f32.mrf.mxu0
      %v408 = vadd.f32 0.0, %v407
      %v409 = vpop.f32.mrf.mxu0
      %v410 = vpop.f32.mrf.mxu0
      %v411 = vadd.f32 0.0, %v410
      %v412 = vpop.f32.mrf.mxu0
      %413 = vmatprep.mubr.bf16.mxu0 0
      %414 = vmatmul.mubr.bf16.gmra.mxu0 %v359
      %v415 = vpop.f32.mrf.mxu0
      %v416 = vadd.f32 0.0, %v415
      %v417 = vpop.f32.mrf.mxu0
      %v418 = vpop.f32.mrf.mxu0
      %v419 = vadd.f32 0.0, %v418
      %v420 = vpop.f32.mrf.mxu0
      %421 = vmatprep.mubr.bf16.mxu0 0
      %422 = vmatmul.mubr.bf16.gmra.mxu0 %v362
      %v423 = vpop.f32.mrf.mxu0
      %v424 = vadd.f32 0.0, %v423
      %v425 = vpop.f32.mrf.mxu0
      %v426 = vpop.f32.mrf.mxu0
      %v427 = vadd.f32 0.0, %v426
      %v428 = vpop.f32.mrf.mxu0
      %429 = vmatprep.mubr.bf16.mxu0 0
      %430 = vmatmul.mubr.bf16.gmra.mxu0 %v365
      %v431 = vpop.f32.mrf.mxu0
      %v432 = vadd.f32 0.0, %v431
      %v433 = vpop.f32.mrf.mxu0
      %v434 = vpop.f32.mrf.mxu0
      %v435 = vadd.f32 0.0, %v434
      %v436 = vpop.f32.mrf.mxu0
      %437 = vmatprep.mubr.bf16.mxu0 0
      %438 = vmatmul.mubr.bf16.gmra.mxu0 %v368
      %v439 = vpop.f32.mrf.mxu0
      %v440 = vadd.f32 0.0, %v439
      %v441 = vpop.f32.mrf.mxu0
      %v442 = vpop.f32.mrf.mxu0
      %v443 = vadd.f32 0.0, %v442
      %v444 = vpop.f32.mrf.mxu0
      %445 = vmatprep.mubr.bf16.mxu0 0
      %446 = vmatmul.mubr.bf16.gmra.mxu0 %v371
      %v447 = vpop.f32.mrf.mxu0
      %v448 = vadd.f32 0.0, %v447
      %v449 = vpop.f32.mrf.mxu0
      %v450 = vpop.f32.mrf.mxu0
      %v451 = vadd.f32 0.0, %v450
      %v452 = vpop.f32.mrf.mxu0
      %453 = vdwg.mxu0
      %v454 = vadd.f32 %v276, %v408
      %v455 = vadd.f32 %v277, %v411
      %v456 = vadd.f32 %v278, %v416
      %v457 = vadd.f32 %v279, %v419
      %v458 = vadd.f32 %v280, %v424
      %v459 = vadd.f32 %v281, %v427
      %v460 = vadd.f32 %v282, %v432
      %v461 = vadd.f32 %v283, %v435
      %v462 = vadd.f32 %v284, %v440
      %v463 = vadd.f32 %v285, %v443
      %v464 = vadd.f32 %v286, %v448
      %v465 = vadd.f32 %v287, %v451
      %466 = vst [vmem:[#allocation2] sm:$0xff] %v454
      %467 = vst [vmem:[#allocation2 + $0x8] sm:$0xff] %v455
      %468 = vst [vmem:[#allocation2 + $0x10] sm:$0xff] %v456
      %469 = vst [vmem:[#allocation2 + $0x18] sm:$0xff] %v457
      %470 = vst [vmem:[#allocation2 + $0x20] sm:$0xff] %v458
      %471 = vst [vmem:[#allocation2 + $0x28] sm:$0xff] %v459
      %472 = vst [vmem:[#allocation2 + $0x30] sm:$0xff] %v460
      %473 = vst [vmem:[#allocation2 + $0x38] sm:$0xff] %v461
      %474 = vst [vmem:[#allocation2 + $0x40] sm:$0xff] %v462
      %475 = vst [vmem:[#allocation2 + $0x48] sm:$0xff] %v463
      %476 = vst [vmem:[#allocation2 + $0x50] sm:$0xff] %v464
      %477 = vst [vmem:[#allocation2 + $0x58] sm:$0xff] %v465
      // Predicated region
      $region37: #{nlayer_discriminator_forward.8} parent=31 // pred_check
        %p478 = pneg %p260
      $region38: #{nlayer_discriminator_forward.8} parent=31 // pred_check_branch
        %480 = sbr.rel (%p478) target = $region40
      $region39: #{nlayer_discriminator_forward.8} parent=31 // pred_region
        %v481 = vld [vmem:[#allocation2] sm:$0xff]
        %v482 = vld [vmem:[#allocation2 + $0x8] sm:$0xff]
        %v483 = vld [vmem:[#allocation2 + $0x10] sm:$0xff]
        %v484 = vld [vmem:[#allocation2 + $0x18] sm:$0xff]
        %v485 = vld [vmem:[#allocation2 + $0x20] sm:$0xff]
        %v486 = vld [vmem:[#allocation2 + $0x28] sm:$0xff]
        %v487 = vld [vmem:[#allocation2 + $0x30] sm:$0xff]
        %v488 = vld [vmem:[#allocation2 + $0x38] sm:$0xff]
        %v489 = vld [vmem:[#allocation2 + $0x40] sm:$0xff]
        %v490 = vld [vmem:[#allocation2 + $0x48] sm:$0xff]
        %v491 = vld [vmem:[#allocation2 + $0x50] sm:$0xff]
        %v492 = vld [vmem:[#allocation2 + $0x58] sm:$0xff]
        %v493 = vld [vmem:[%s249] sm:$0x1]
        %v495 = vlaneseq
        %v496 = vshrl.u32 %v495, 7
        %v497 = vsub.s32 0, %v496
        %v498 = vrot.slane %v493, %v497
        %v500 = vadd.f32 %v481, %v498
        %v501 = vadd.f32 %v482, %v498
        %v502 = vadd.f32 %v483, %v498
        %v503 = vadd.f32 %v484, %v498
        %v504 = vadd.f32 %v485, %v498
        %v505 = vadd.f32 %v486, %v498
        %v506 = vadd.f32 %v487, %v498
        %v507 = vadd.f32 %v488, %v498
        %v508 = vadd.f32 %v489, %v498
        %v509 = vadd.f32 %v490, %v498
        %v510 = vadd.f32 %v491, %v498
        %v511 = vadd.f32 %v492, %v498
        %vm512 = vcmp.gt.f32.partialorder %v500, 0.0
        %vm513 = vcmp.gt.f32.partialorder %v501, 0.0
        %vm514 = vcmp.gt.f32.partialorder %v502, 0.0
        %vm515 = vcmp.gt.f32.partialorder %v503, 0.0
        %vm516 = vcmp.gt.f32.partialorder %v504, 0.0
        %vm517 = vcmp.gt.f32.partialorder %v505, 0.0
        %vm518 = vcmp.gt.f32.partialorder %v506, 0.0
        %vm519 = vcmp.gt.f32.partialorder %v507, 0.0
        %vm520 = vcmp.gt.f32.partialorder %v508, 0.0
        %vm521 = vcmp.gt.f32.partialorder %v509, 0.0
        %vm522 = vcmp.gt.f32.partialorder %v510, 0.0
        %vm523 = vcmp.gt.f32.partialorder %v511, 0.0
        %v524 = vmul.f32 %v500, 0.2
        %v525 = vmul.f32 %v501, 0.2
        %v526 = vmul.f32 %v502, 0.2
        %v527 = vmul.f32 %v503, 0.2
        %v528 = vmul.f32 %v504, 0.2
        %v529 = vmul.f32 %v505, 0.2
        %v530 = vmul.f32 %v506, 0.2
        %v531 = vmul.f32 %v507, 0.2
        %v532 = vmul.f32 %v508, 0.2
        %v533 = vmul.f32 %v509, 0.2
        %v534 = vmul.f32 %v510, 0.2
        %v535 = vmul.f32 %v511, 0.2
        %v536 = vsel %vm512, %v500, %v524
        %v537 = vsel %vm513, %v501, %v525
        %v538 = vsel %vm514, %v502, %v526
        %v539 = vsel %vm515, %v503, %v527
        %v540 = vsel %vm516, %v504, %v528
        %v541 = vsel %vm517, %v505, %v529
        %v542 = vsel %vm518, %v506, %v530
        %v543 = vsel %vm519, %v507, %v531
        %v544 = vsel %vm520, %v508, %v532
        %v545 = vsel %vm521, %v509, %v533
        %v546 = vsel %vm522, %v510, %v534
        %v547 = vsel %vm523, %v511, %v535
        %v548 = vpack.c.bf16 %v537, %v536
        %v549 = vpack.c.bf16 %v539, %v538
        %v550 = vpack.c.bf16 %v541, %v540
        %v551 = vpack.c.bf16 %v543, %v542
        %v552 = vpack.c.bf16 %v545, %v544
        %v553 = vpack.c.bf16 %v547, %v546
        %v560 = vunpack.c.l.b16 %v548
        %v561 = vunpack.c.h.b16 %v548
        %v562 = vunpack.c.l.b16 %v549
        %v563 = vunpack.c.h.b16 %v549
        %v564 = vunpack.c.l.b16 %v550
        %v565 = vunpack.c.h.b16 %v550
        %v566 = vunpack.c.l.b16 %v551
        %v567 = vunpack.c.h.b16 %v551
        %v568 = vunpack.c.l.b16 %v552
        %v569 = vunpack.c.h.b16 %v552
        %v570 = vunpack.c.l.b16 %v553
        %v571 = vunpack.c.h.b16 %v553
        %v572 = vpack.c.b16 %v560, %v560
        %v573 = vpack.c.b16 %v561, %v561
        %v574 = vpack.c.b16 %v562, %v562
        %v575 = vpack.c.b16 %v563, %v563
        %v576 = vpack.c.b16 %v564, %v564
        %v577 = vpack.c.b16 %v565, %v565
        %v578 = vpack.c.b16 %v566, %v566
        %v579 = vpack.c.b16 %v567, %v567
        %v580 = vpack.c.b16 %v568, %v568
        %v581 = vpack.c.b16 %v569, %v569
        %v582 = vpack.c.b16 %v570, %v570
        %v583 = vpack.c.b16 %v571, %v571
        %596 = vst [vmem:[%s257] sm:$0xf] %v572
        %597 = vst [vmem:[%s257 + $0x4] sm:$0xf] %v573
        %598 = vst [vmem:[%s257 + $0x8] sm:$0xf] %v574
        %599 = vst [vmem:[%s257 + $0xc] sm:$0xf] %v575
        %600 = vst [vmem:[%s257 + $0x10] sm:$0xf] %v576
        %601 = vst [vmem:[%s257 + $0x14] sm:$0xf] %v577
        %602 = vst [vmem:[%s257 + $0x18] sm:$0xf] %v578
        %603 = vst [vmem:[%s257 + $0x1c] sm:$0xf] %v579
        %604 = vst [vmem:[%s257 + $0x20] sm:$0xf] %v580
        %605 = vst [vmem:[%s257 + $0x24] sm:$0xf] %v581
        %606 = vst [vmem:[%s257 + $0x28] sm:$0xf] %v582
        %607 = vst [vmem:[%s257 + $0x2c] sm:$0xf] %v583
      $region40: #{nlayer_discriminator_forward.8} parent=31 // pred_fallthru
        _
      %s608 = smul.u32 12, %s19
      %p609 = scmp.lt.s32.totalorder %s608, 23
      %s610 = scalar_select %p609, %s608, 23
      %p611 = scmp.lt.s32.totalorder %s20, 0
      %s612 = scalar_select %p611, %s20, 0
      %s613 = sadd.s32 %s612, %s610
      %s614 = smul.addr %s613, 4
      %s615 = scalar_lea.vmem %s3, %s614
      // Predicated region
      $region41: #{nlayer_discriminator_forward.8} parent=31 // pred_check
        %p616 = pneg %p135
      $region42: #{nlayer_discriminator_forward.8} parent=31 // pred_check_branch
        %618 = sbr.rel (%p616) target = $region44
      $region43: #{nlayer_discriminator_forward.8} parent=31 // pred_region
        %s619 = smul.u32 12, %s19
      $region44: #{nlayer_discriminator_forward.8} parent=31 // pred_fallthru
        _
    $region32: #{nlayer_discriminator_forward.8} parent=5 // pred_fallthru
      _
    %p620 = scmp.le.s32.totalorder 2, %s9
    // Predicated region
    $region45: #{nlayer_discriminator_forward.8} parent=5 // pred_check
      %p621 = pneg %p620
    $region46: #{nlayer_discriminator_forward.8} parent=5 // pred_check_branch
      %623 = sbr.rel (%p621) target = $region48
    $region47: #{nlayer_discriminator_forward.8} parent=5 // pred_region
      %s624 = ssub.s32 %s9, 2
      // Predicated region
      $region49: #{nlayer_discriminator_forward.8} parent=47 // pred_check
        %p625 = pneg %p141
      $region50: #{nlayer_discriminator_forward.8} parent=47 // pred_check_branch
        %627 = sbr.rel (%p625) target = $region52
      $region51: #{nlayer_discriminator_forward.8} parent=47 // pred_region
        %s628 = smul.u32 12, %s22
        %p629 = scmp.lt.s32.totalorder %s628, 23
        %s630 = scalar_select %p629, %s628, 23
        %p631 = scmp.lt.s32.totalorder %s23, 0
        %s632 = scalar_select %p631, %s23, 0
        %s633 = sadd.s32 %s632, %s630
        %s634 = smul.addr %s633, 4
        %s635 = scalar_lea.vmem %s3, %s634
      $region52: #{nlayer_discriminator_forward.8} parent=47 // pred_fallthru
        _
    $region48: #{nlayer_discriminator_forward.8} parent=5 // pred_fallthru
      _
  $region6: #{nlayer_discriminator_forward.8} parent=0 // loop_footer
    %s13 = sadd.s32 1, %s9
  $region7: #{nlayer_discriminator_forward.8} parent=0 // loop_footer_branch
    %8 = sbr.rel target = $region3
  $region8: #{nlayer_discriminator_forward.8} parent=0 // loop_exit
    _

// kernel: reverse
$region0: #{reverse}
  #allocation0 [shape = 's32[1]{0}', space=sflag, size = 0x4, scoped, tag = 'scoped memory for reverse']
  %s0 = inlined_call_operand.vmem [shape: bf16[4,4,32,512], index: 0, kind: input, shape index: {}]
  %s1 = inlined_call_operand.vmem [shape: bf16[4,4,32,512], index: 1, kind: output, shape index: {}]
  %s2 = scalar_lea.vmem %s0, 960
  %v3 = vld [vmem:[%s2] sm:$0xf]
  %v4 = vunpack.c.l.bf16 %v3
  %v5 = vunpack.c.h.bf16 %v3
  %s6 = scalar_lea.vmem %s0, 704
  %v7 = vld [vmem:[%s6] sm:$0xf]
  %v8 = vunpack.c.l.bf16 %v7
  %v9 = vunpack.c.h.bf16 %v7
  %s10 = scalar_lea.vmem %s1, 256
  %s11 = scalar_lea.vmem %s0, 448
  %v12 = vld [vmem:[%s11] sm:$0xf]
  %v13 = vunpack.c.l.bf16 %v12
  %v14 = vunpack.c.h.bf16 %v12
  %s15 = scalar_lea.vmem %s1, 512
  %s16 = scalar_lea.vmem %s0, 192
  %v17 = vld [vmem:[%s16] sm:$0xf]
  %v18 = vunpack.c.l.bf16 %v17
  %v19 = vunpack.c.h.bf16 %v17
  %s20 = scalar_lea.vmem %s1, 768
  %s21 = scalar_lea.vmem %s0, 896
  %v22 = vld [vmem:[%s21] sm:$0xf]
  %v23 = vunpack.c.l.bf16 %v22
  %v24 = vunpack.c.h.bf16 %v22
  %s25 = scalar_lea.vmem %s1, 64
  %s26 = scalar_lea.vmem %s0, 640
  %v27 = vld [vmem:[%s26] sm:$0xf]
  %v28 = vunpack.c.l.bf16 %v27
  %v29 = vunpack.c.h.bf16 %v27
  %s30 = scalar_lea.vmem %s1, 320
  %s31 = scalar_lea.vmem %s0, 384
  %v32 = vld [vmem:[%s31] sm:$0xf]
  %v33 = vunpack.c.l.bf16 %v32
  %v34 = vunpack.c.h.bf16 %v32
  %s35 = scalar_lea.vmem %s1, 576
  %s36 = scalar_lea.vmem %s0, 128
  %v37 = vld [vmem:[%s36] sm:$0xf]
  %v38 = vunpack.c.l.bf16 %v37
  %v39 = vunpack.c.h.bf16 %v37
  %s40 = scalar_lea.vmem %s1, 832
  %s41 = scalar_lea.vmem %s0, 832
  %v42 = vld [vmem:[%s41] sm:$0xf]
  %v43 = vunpack.c.l.bf16 %v42
  %v44 = vunpack.c.h.bf16 %v42
  %s45 = scalar_lea.vmem %s1, 128
  %s46 = scalar_lea.vmem %s0, 576
  %v47 = vld [vmem:[%s46] sm:$0xf]
  %v48 = vunpack.c.l.bf16 %v47
  %v49 = vunpack.c.h.bf16 %v47
  %s50 = scalar_lea.vmem %s1, 384
  %s51 = scalar_lea.vmem %s0, 320
  %v52 = vld [vmem:[%s51] sm:$0xf]
  %v53 = vunpack.c.l.bf16 %v52
  %v54 = vunpack.c.h.bf16 %v52
  %s55 = scalar_lea.vmem %s1, 640
  %s56 = scalar_lea.vmem %s0, 64
  %v57 = vld [vmem:[%s56] sm:$0xf]
  %v58 = vunpack.c.l.bf16 %v57
  %v59 = vunpack.c.h.bf16 %v57
  %s60 = scalar_lea.vmem %s1, 896
  %s61 = scalar_lea.vmem %s0, 768
  %v62 = vld [vmem:[%s61] sm:$0xf]
  %v63 = vunpack.c.l.bf16 %v62
  %v64 = vunpack.c.h.bf16 %v62
  %s65 = scalar_lea.vmem %s1, 192
  %s66 = scalar_lea.vmem %s0, 512
  %v67 = vld [vmem:[%s66] sm:$0xf]
  %v68 = vunpack.c.l.bf16 %v67
  %v69 = vunpack.c.h.bf16 %v67
  %s70 = scalar_lea.vmem %s1, 448
  %s71 = scalar_lea.vmem %s0, 256
  %v72 = vld [vmem:[%s71] sm:$0xf]
  %v73 = vunpack.c.l.bf16 %v72
  %v74 = vunpack.c.h.bf16 %v72
  %s75 = scalar_lea.vmem %s1, 704
  %v76 = vld [vmem:[%s0] sm:$0xf]
  %v77 = vunpack.c.l.bf16 %v76
  %v78 = vunpack.c.h.bf16 %v76
  %s79 = scalar_lea.vmem %s1, 960
  %s80 = scalar_lea.vmem %s0, 976
  %v81 = vld [vmem:[%s80] sm:$0xf]
  %v82 = vunpack.c.l.bf16 %v81
  %v83 = vunpack.c.h.bf16 %v81
  %s84 = scalar_lea.vmem %s1, 16
  %s85 = scalar_lea.vmem %s0, 720
  %v86 = vld [vmem:[%s85] sm:$0xf]
  %v87 = vunpack.c.l.bf16 %v86
  %v88 = vunpack.c.h.bf16 %v86
  %s89 = scalar_lea.vmem %s1, 272
  %s90 = scalar_lea.vmem %s0, 464
  %v91 = vld [vmem:[%s90] sm:$0xf]
  %v92 = vunpack.c.l.bf16 %v91
  %v93 = vunpack.c.h.bf16 %v91
  %s94 = scalar_lea.vmem %s1, 528
  %s95 = scalar_lea.vmem %s0, 208
  %v96 = vld [vmem:[%s95] sm:$0xf]
  %v97 = vunpack.c.l.bf16 %v96
  %v98 = vunpack.c.h.bf16 %v96
  %s99 = scalar_lea.vmem %s1, 784
  %s100 = scalar_lea.vmem %s0, 912
  %v101 = vld [vmem:[%s100] sm:$0xf]
  %v102 = vunpack.c.l.bf16 %v101
  %v103 = vunpack.c.h.bf16 %v101
  %s104 = scalar_lea.vmem %s1, 80
  %s105 = scalar_lea.vmem %s0, 656
  %v106 = vld [vmem:[%s105] sm:$0xf]
  %v107 = vunpack.c.l.bf16 %v106
  %v108 = vunpack.c.h.bf16 %v106
  %s109 = scalar_lea.vmem %s1, 336
  %s110 = scalar_lea.vmem %s0, 400
  %v111 = vld [vmem:[%s110] sm:$0xf]
  %v112 = vunpack.c.l.bf16 %v111
  %v113 = vunpack.c.h.bf16 %v111
  %s114 = scalar_lea.vmem %s1, 592
  %s115 = scalar_lea.vmem %s0, 144
  %v116 = vld [vmem:[%s115] sm:$0xf]
  %v117 = vunpack.c.l.bf16 %v116
  %v118 = vunpack.c.h.bf16 %v116
  %s119 = scalar_lea.vmem %s1, 848
  %s120 = scalar_lea.vmem %s0, 848
  %v121 = vld [vmem:[%s120] sm:$0xf]
  %v122 = vunpack.c.l.bf16 %v121
  %v123 = vunpack.c.h.bf16 %v121
  %s124 = scalar_lea.vmem %s1, 144
  %s125 = scalar_lea.vmem %s0, 592
  %v126 = vld [vmem:[%s125] sm:$0xf]
  %v127 = vunpack.c.l.bf16 %v126
  %v128 = vunpack.c.h.bf16 %v126
  %s129 = scalar_lea.vmem %s1, 400
  %s130 = scalar_lea.vmem %s0, 336
  %v131 = vld [vmem:[%s130] sm:$0xf]
  %v132 = vunpack.c.l.bf16 %v131
  %v133 = vunpack.c.h.bf16 %v131
  %s134 = scalar_lea.vmem %s1, 656
  %s135 = scalar_lea.vmem %s0, 80
  %v136 = vld [vmem:[%s135] sm:$0xf]
  %v137 = vunpack.c.l.bf16 %v136
  %v138 = vunpack.c.h.bf16 %v136
  %s139 = scalar_lea.vmem %s1, 912
  %s140 = scalar_lea.vmem %s0, 784
  %v141 = vld [vmem:[%s140] sm:$0xf]
  %v142 = vunpack.c.l.bf16 %v141
  %v143 = vunpack.c.h.bf16 %v141
  %s144 = scalar_lea.vmem %s1, 208
  %s145 = scalar_lea.vmem %s0, 528
  %v146 = vld [vmem:[%s145] sm:$0xf]
  %v147 = vunpack.c.l.bf16 %v146
  %v148 = vunpack.c.h.bf16 %v146
  %s149 = scalar_lea.vmem %s1, 464
  %s150 = scalar_lea.vmem %s0, 272
  %v151 = vld [vmem:[%s150] sm:$0xf]
  %v152 = vunpack.c.l.bf16 %v151
  %v153 = vunpack.c.h.bf16 %v151
  %s154 = scalar_lea.vmem %s1, 720
  %s155 = scalar_lea.vmem %s0, 16
  %v156 = vld [vmem:[%s155] sm:$0xf]
  %v157 = vunpack.c.l.bf16 %v156
  %v158 = vunpack.c.h.bf16 %v156
  %s159 = scalar_lea.vmem %s1, 976
  %s160 = scalar_lea.vmem %s0, 992
  %v161 = vld [vmem:[%s160] sm:$0xf]
  %v162 = vunpack.c.l.bf16 %v161
  %v163 = vunpack.c.h.bf16 %v161
  %s164 = scalar_lea.vmem %s1, 32
  %s165 = scalar_lea.vmem %s0, 736
  %v166 = vld [vmem:[%s165] sm:$0xf]
  %v167 = vunpack.c.l.bf16 %v166
  %v168 = vunpack.c.h.bf16 %v166
  %s169 = scalar_lea.vmem %s1, 288
  %s170 = scalar_lea.vmem %s0, 480
  %v171 = vld [vmem:[%s170] sm:$0xf]
  %v172 = vunpack.c.l.bf16 %v171
  %v173 = vunpack.c.h.bf16 %v171
  %s174 = scalar_lea.vmem %s1, 544
  %s175 = scalar_lea.vmem %s0, 224
  %v176 = vld [vmem:[%s175] sm:$0xf]
  %v177 = vunpack.c.l.bf16 %v176
  %v178 = vunpack.c.h.bf16 %v176
  %s179 = scalar_lea.vmem %s1, 800
  %s180 = scalar_lea.vmem %s0, 928
  %v181 = vld [vmem:[%s180] sm:$0xf]
  %v182 = vunpack.c.l.bf16 %v181
  %v183 = vunpack.c.h.bf16 %v181
  %s184 = scalar_lea.vmem %s1, 96
  %s185 = scalar_lea.vmem %s0, 672
  %v186 = vld [vmem:[%s185] sm:$0xf]
  %v187 = vunpack.c.l.bf16 %v186
  %v188 = vunpack.c.h.bf16 %v186
  %s189 = scalar_lea.vmem %s1, 352
  %s190 = scalar_lea.vmem %s0, 416
  %v191 = vld [vmem:[%s190] sm:$0xf]
  %v192 = vunpack.c.l.bf16 %v191
  %v193 = vunpack.c.h.bf16 %v191
  %s194 = scalar_lea.vmem %s1, 608
  %s195 = scalar_lea.vmem %s0, 160
  %v196 = vld [vmem:[%s195] sm:$0xf]
  %v197 = vunpack.c.l.bf16 %v196
  %v198 = vunpack.c.h.bf16 %v196
  %s199 = scalar_lea.vmem %s1, 864
  %s200 = scalar_lea.vmem %s0, 864
  %v201 = vld [vmem:[%s200] sm:$0xf]
  %v202 = vunpack.c.l.bf16 %v201
  %v203 = vunpack.c.h.bf16 %v201
  %s204 = scalar_lea.vmem %s1, 160
  %s205 = scalar_lea.vmem %s0, 608
  %v206 = vld [vmem:[%s205] sm:$0xf]
  %v207 = vunpack.c.l.bf16 %v206
  %v208 = vunpack.c.h.bf16 %v206
  %s209 = scalar_lea.vmem %s1, 416
  %s210 = scalar_lea.vmem %s0, 352
  %v211 = vld [vmem:[%s210] sm:$0xf]
  %v212 = vunpack.c.l.bf16 %v211
  %v213 = vunpack.c.h.bf16 %v211
  %s214 = scalar_lea.vmem %s1, 672
  %s215 = scalar_lea.vmem %s0, 96
  %v216 = vld [vmem:[%s215] sm:$0xf]
  %v217 = vunpack.c.l.bf16 %v216
  %v218 = vunpack.c.h.bf16 %v216
  %s219 = scalar_lea.vmem %s1, 928
  %s220 = scalar_lea.vmem %s0, 800
  %v221 = vld [vmem:[%s220] sm:$0xf]
  %v222 = vunpack.c.l.bf16 %v221
  %v223 = vunpack.c.h.bf16 %v221
  %s224 = scalar_lea.vmem %s1, 224
  %s225 = scalar_lea.vmem %s0, 544
  %v226 = vld [vmem:[%s225] sm:$0xf]
  %v227 = vunpack.c.l.bf16 %v226
  %v228 = vunpack.c.h.bf16 %v226
  %s229 = scalar_lea.vmem %s1, 480
  %s230 = scalar_lea.vmem %s0, 288
  %v231 = vld [vmem:[%s230] sm:$0xf]
  %v232 = vunpack.c.l.bf16 %v231
  %v233 = vunpack.c.h.bf16 %v231
  %s234 = scalar_lea.vmem %s1, 736
  %s235 = scalar_lea.vmem %s0, 32
  %v236 = vld [vmem:[%s235] sm:$0xf]
  %v237 = vunpack.c.l.bf16 %v236
  %v238 = vunpack.c.h.bf16 %v236
  %s239 = scalar_lea.vmem %s1, 992
  %s240 = scalar_lea.vmem %s0, 1008
  %v241 = vld [vmem:[%s240] sm:$0xf]
  %v242 = vunpack.c.l.bf16 %v241
  %v243 = vunpack.c.h.bf16 %v241
  %s244 = scalar_lea.vmem %s1, 48
  %s245 = scalar_lea.vmem %s0, 752
  %v246 = vld [vmem:[%s245] sm:$0xf]
  %v247 = vunpack.c.l.bf16 %v246
  %v248 = vunpack.c.h.bf16 %v246
  %s249 = scalar_lea.vmem %s1, 304
  %s250 = scalar_lea.vmem %s0, 496
  %v251 = vld [vmem:[%s250] sm:$0xf]
  %v252 = vunpack.c.l.bf16 %v251
  %v253 = vunpack.c.h.bf16 %v251
  %s254 = scalar_lea.vmem %s1, 560
  %s255 = scalar_lea.vmem %s0, 240
  %v256 = vld [vmem:[%s255] sm:$0xf]
  %v257 = vunpack.c.l.bf16 %v256
  %v258 = vunpack.c.h.bf16 %v256
  %s259 = scalar_lea.vmem %s1, 816
  %s260 = scalar_lea.vmem %s0, 944
  %v261 = vld [vmem:[%s260] sm:$0xf]
  %v262 = vunpack.c.l.bf16 %v261
  %v263 = vunpack.c.h.bf16 %v261
  %s264 = scalar_lea.vmem %s1, 112
  %s265 = scalar_lea.vmem %s0, 688
  %v266 = vld [vmem:[%s265] sm:$0xf]
  %v267 = vunpack.c.l.bf16 %v266
  %v268 = vunpack.c.h.bf16 %v266
  %s269 = scalar_lea.vmem %s1, 368
  %s270 = scalar_lea.vmem %s0, 432
  %v271 = vld [vmem:[%s270] sm:$0xf]
  %v272 = vunpack.c.l.bf16 %v271
  %v273 = vunpack.c.h.bf16 %v271
  %s274 = scalar_lea.vmem %s1, 624
  %s275 = scalar_lea.vmem %s0, 176
  %v276 = vld [vmem:[%s275] sm:$0xf]
  %v277 = vunpack.c.l.bf16 %v276
  %v278 = vunpack.c.h.bf16 %v276
  %s279 = scalar_lea.vmem %s1, 880
  %s280 = scalar_lea.vmem %s0, 880
  %v281 = vld [vmem:[%s280] sm:$0xf]
  %v282 = vunpack.c.l.bf16 %v281
  %v283 = vunpack.c.h.bf16 %v281
  %s284 = scalar_lea.vmem %s1, 176
  %s285 = scalar_lea.vmem %s0, 624
  %v286 = vld [vmem:[%s285] sm:$0xf]
  %v287 = vunpack.c.l.bf16 %v286
  %v288 = vunpack.c.h.bf16 %v286
  %s289 = scalar_lea.vmem %s1, 432
  %s290 = scalar_lea.vmem %s0, 368
  %v291 = vld [vmem:[%s290] sm:$0xf]
  %v292 = vunpack.c.l.bf16 %v291
  %v293 = vunpack.c.h.bf16 %v291
  %s294 = scalar_lea.vmem %s1, 688
  %s295 = scalar_lea.vmem %s0, 112
  %v296 = vld [vmem:[%s295] sm:$0xf]
  %v297 = vunpack.c.l.bf16 %v296
  %v298 = vunpack.c.h.bf16 %v296
  %s299 = scalar_lea.vmem %s1, 944
  %s300 = scalar_lea.vmem %s0, 816
  %v301 = vld [vmem:[%s300] sm:$0xf]
  %v302 = vunpack.c.l.bf16 %v301
  %v303 = vunpack.c.h.bf16 %v301
  %s304 = scalar_lea.vmem %s1, 240
  %s305 = scalar_lea.vmem %s0, 560
  %v306 = vld [vmem:[%s305] sm:$0xf]
  %v307 = vunpack.c.l.bf16 %v306
  %v308 = vunpack.c.h.bf16 %v306
  %s309 = scalar_lea.vmem %s1, 496
  %s310 = scalar_lea.vmem %s0, 304
  %v311 = vld [vmem:[%s310] sm:$0xf]
  %v312 = vunpack.c.l.bf16 %v311
  %v313 = vunpack.c.h.bf16 %v311
  %s314 = scalar_lea.vmem %s1, 752
  %s315 = scalar_lea.vmem %s0, 48
  %v316 = vld [vmem:[%s315] sm:$0xf]
  %v317 = vunpack.c.l.bf16 %v316
  %v318 = vunpack.c.h.bf16 %v316
  %s319 = scalar_lea.vmem %s1, 1008
  %s320 = scalar_lea.vmem %s0, 964
  %v321 = vld [vmem:[%s320] sm:$0xf]
  %v322 = vunpack.c.l.bf16 %v321
  %v323 = vunpack.c.h.bf16 %v321
  %s324 = scalar_lea.vmem %s1, 4
  %s326 = ssub.s32 0, 4
  %s327 = scalar_lea.vmem %s324, %s326
  %v328 = vpack.c.bf16 %v322, %v4
  %329 = vst [vmem:[%s327] sm:$0xff] %v328
  %s330 = scalar_lea.vmem %s0, 708
  %v331 = vld [vmem:[%s330] sm:$0xf]
  %v332 = vunpack.c.l.bf16 %v331
  %v333 = vunpack.c.h.bf16 %v331
  %s334 = scalar_lea.vmem %s1, 260
  %s336 = ssub.s32 0, 4
  %s337 = scalar_lea.vmem %s334, %s336
  %v338 = vpack.c.bf16 %v332, %v8
  %339 = vst [vmem:[%s337] sm:$0xff] %v338
  %s340 = scalar_lea.vmem %s0, 452
  %v341 = vld [vmem:[%s340] sm:$0xf]
  %v342 = vunpack.c.l.bf16 %v341
  %v343 = vunpack.c.h.bf16 %v341
  %s344 = scalar_lea.vmem %s1, 516
  %s346 = ssub.s32 0, 4
  %s347 = scalar_lea.vmem %s344, %s346
  %v348 = vpack.c.bf16 %v342, %v13
  %349 = vst [vmem:[%s347] sm:$0xff] %v348
  %s350 = scalar_lea.vmem %s0, 196
  %v351 = vld [vmem:[%s350] sm:$0xf]
  %v352 = vunpack.c.l.bf16 %v351
  %v353 = vunpack.c.h.bf16 %v351
  %s354 = scalar_lea.vmem %s1, 772
  %s356 = ssub.s32 0, 4
  %s357 = scalar_lea.vmem %s354, %s356
  %v358 = vpack.c.bf16 %v352, %v18
  %359 = vst [vmem:[%s357] sm:$0xff] %v358
  %s360 = scalar_lea.vmem %s0, 900
  %v361 = vld [vmem:[%s360] sm:$0xf]
  %v362 = vunpack.c.l.bf16 %v361
  %v363 = vunpack.c.h.bf16 %v361
  %s364 = scalar_lea.vmem %s1, 68
  %s366 = ssub.s32 0, 4
  %s367 = scalar_lea.vmem %s364, %s366
  %v368 = vpack.c.bf16 %v362, %v23
  %369 = vst [vmem:[%s367] sm:$0xff] %v368
  %s370 = scalar_lea.vmem %s0, 644
  %v371 = vld [vmem:[%s370] sm:$0xf]
  %v372 = vunpack.c.l.bf16 %v371
  %v373 = vunpack.c.h.bf16 %v371
  %s374 = scalar_lea.vmem %s1, 324
  %s376 = ssub.s32 0, 4
  %s377 = scalar_lea.vmem %s374, %s376
  %v378 = vpack.c.bf16 %v372, %v28
  %379 = vst [vmem:[%s377] sm:$0xff] %v378
  %s380 = scalar_lea.vmem %s0, 388
  %v381 = vld [vmem:[%s380] sm:$0xf]
  %v382 = vunpack.c.l.bf16 %v381
  %v383 = vunpack.c.h.bf16 %v381
  %s384 = scalar_lea.vmem %s1, 580
  %s386 = ssub.s32 0, 4
  %s387 = scalar_lea.vmem %s384, %s386
  %v388 = vpack.c.bf16 %v382, %v33
  %389 = vst [vmem:[%s387] sm:$0xff] %v388
  %s390 = scalar_lea.vmem %s0, 132
  %v391 = vld [vmem:[%s390] sm:$0xf]
  %v392 = vunpack.c.l.bf16 %v391
  %v393 = vunpack.c.h.bf16 %v391
  %s394 = scalar_lea.vmem %s1, 836
  %s396 = ssub.s32 0, 4
  %s397 = scalar_lea.vmem %s394, %s396
  %v398 = vpack.c.bf16 %v392, %v38
  %399 = vst [vmem:[%s397] sm:$0xff] %v398
  %s400 = scalar_lea.vmem %s0, 836
  %v401 = vld [vmem:[%s400] sm:$0xf]
  %v402 = vunpack.c.l.bf16 %v401
  %v403 = vunpack.c.h.bf16 %v401
  %s404 = scalar_lea.vmem %s1, 132
  %s406 = ssub.s32 0, 4
  %s407 = scalar_lea.vmem %s404, %s406
  %v408 = vpack.c.bf16 %v402, %v43
  %409 = vst [vmem:[%s407] sm:$0xff] %v408
  %s410 = scalar_lea.vmem %s0, 580
  %v411 = vld [vmem:[%s410] sm:$0xf]
  %v412 = vunpack.c.l.bf16 %v411
  %v413 = vunpack.c.h.bf16 %v411
  %s414 = scalar_lea.vmem %s1, 388
  %s416 = ssub.s32 0, 4
  %s417 = scalar_lea.vmem %s414, %s416
  %v418 = vpack.c.bf16 %v412, %v48
  %419 = vst [vmem:[%s417] sm:$0xff] %v418
  %s420 = scalar_lea.vmem %s0, 324
  %v421 = vld [vmem:[%s420] sm:$0xf]
  %v422 = vunpack.c.l.bf16 %v421
  %v423 = vunpack.c.h.bf16 %v421
  %s424 = scalar_lea.vmem %s1, 644
  %s426 = ssub.s32 0, 4
  %s427 = scalar_lea.vmem %s424, %s426
  %v428 = vpack.c.bf16 %v422, %v53
  %429 = vst [vmem:[%s427] sm:$0xff] %v428
  %s430 = scalar_lea.vmem %s0, 68
  %v431 = vld [vmem:[%s430] sm:$0xf]
  %v432 = vunpack.c.l.bf16 %v431
  %v433 = vunpack.c.h.bf16 %v431
  %s434 = scalar_lea.vmem %s1, 900
  %s436 = ssub.s32 0, 4
  %s437 = scalar_lea.vmem %s434, %s436
  %v438 = vpack.c.bf16 %v432, %v58
  %439 = vst [vmem:[%s437] sm:$0xff] %v438
  %s440 = scalar_lea.vmem %s0, 772
  %v441 = vld [vmem:[%s440] sm:$0xf]
  %v442 = vunpack.c.l.bf16 %v441
  %v443 = vunpack.c.h.bf16 %v441
  %s444 = scalar_lea.vmem %s1, 196
  %s446 = ssub.s32 0, 4
  %s447 = scalar_lea.vmem %s444, %s446
  %v448 = vpack.c.bf16 %v442, %v63
  %449 = vst [vmem:[%s447] sm:$0xff] %v448
  %s450 = scalar_lea.vmem %s0, 516
  %v451 = vld [vmem:[%s450] sm:$0xf]
  %v452 = vunpack.c.l.bf16 %v451
  %v453 = vunpack.c.h.bf16 %v451
  %s454 = scalar_lea.vmem %s1, 452
  %s456 = ssub.s32 0, 4
  %s457 = scalar_lea.vmem %s454, %s456
  %v458 = vpack.c.bf16 %v452, %v68
  %459 = vst [vmem:[%s457] sm:$0xff] %v458
  %s460 = scalar_lea.vmem %s0, 260
  %v461 = vld [vmem:[%s460] sm:$0xf]
  %v462 = vunpack.c.l.bf16 %v461
  %v463 = vunpack.c.h.bf16 %v461
  %s464 = scalar_lea.vmem %s1, 708
  %s466 = ssub.s32 0, 4
  %s467 = scalar_lea.vmem %s464, %s466
  %v468 = vpack.c.bf16 %v462, %v73
  %469 = vst [vmem:[%s467] sm:$0xff] %v468
  %s470 = scalar_lea.vmem %s0, 4
  %v471 = vld [vmem:[%s470] sm:$0xf]
  %v472 = vunpack.c.l.bf16 %v471
  %v473 = vunpack.c.h.bf16 %v471
  %s474 = scalar_lea.vmem %s1, 964
  %s476 = ssub.s32 0, 4
  %s477 = scalar_lea.vmem %s474, %s476
  %v478 = vpack.c.bf16 %v472, %v77
  %479 = vst [vmem:[%s477] sm:$0xff] %v478
  %s480 = scalar_lea.vmem %s0, 980
  %v481 = vld [vmem:[%s480] sm:$0xf]
  %v482 = vunpack.c.l.bf16 %v481
  %v483 = vunpack.c.h.bf16 %v481
  %s484 = scalar_lea.vmem %s1, 20
  %s486 = ssub.s32 0, 4
  %s487 = scalar_lea.vmem %s484, %s486
  %v488 = vpack.c.bf16 %v482, %v82
  %489 = vst [vmem:[%s487] sm:$0xff] %v488
  %s490 = scalar_lea.vmem %s0, 724
  %v491 = vld [vmem:[%s490] sm:$0xf]
  %v492 = vunpack.c.l.bf16 %v491
  %v493 = vunpack.c.h.bf16 %v491
  %s494 = scalar_lea.vmem %s1, 276
  %s496 = ssub.s32 0, 4
  %s497 = scalar_lea.vmem %s494, %s496
  %v498 = vpack.c.bf16 %v492, %v87
  %499 = vst [vmem:[%s497] sm:$0xff] %v498
  %s500 = scalar_lea.vmem %s0, 468
  %v501 = vld [vmem:[%s500] sm:$0xf]
  %v502 = vunpack.c.l.bf16 %v501
  %v503 = vunpack.c.h.bf16 %v501
  %s504 = scalar_lea.vmem %s1, 532
  %s506 = ssub.s32 0, 4
  %s507 = scalar_lea.vmem %s504, %s506
  %v508 = vpack.c.bf16 %v502, %v92
  %509 = vst [vmem:[%s507] sm:$0xff] %v508
  %s510 = scalar_lea.vmem %s0, 212
  %v511 = vld [vmem:[%s510] sm:$0xf]
  %v512 = vunpack.c.l.bf16 %v511
  %v513 = vunpack.c.h.bf16 %v511
  %s514 = scalar_lea.vmem %s1, 788
  %s516 = ssub.s32 0, 4
  %s517 = scalar_lea.vmem %s514, %s516
  %v518 = vpack.c.bf16 %v512, %v97
  %519 = vst [vmem:[%s517] sm:$0xff] %v518
  %s520 = scalar_lea.vmem %s0, 916
  %v521 = vld [vmem:[%s520] sm:$0xf]
  %v522 = vunpack.c.l.bf16 %v521
  %v523 = vunpack.c.h.bf16 %v521
  %s524 = scalar_lea.vmem %s1, 84
  %s526 = ssub.s32 0, 4
  %s527 = scalar_lea.vmem %s524, %s526
  %v528 = vpack.c.bf16 %v522, %v102
  %529 = vst [vmem:[%s527] sm:$0xff] %v528
  %s530 = scalar_lea.vmem %s0, 660
  %v531 = vld [vmem:[%s530] sm:$0xf]
  %v532 = vunpack.c.l.bf16 %v531
  %v533 = vunpack.c.h.bf16 %v531
  %s534 = scalar_lea.vmem %s1, 340
  %s536 = ssub.s32 0, 4
  %s537 = scalar_lea.vmem %s534, %s536
  %v538 = vpack.c.bf16 %v532, %v107
  %539 = vst [vmem:[%s537] sm:$0xff] %v538
  %s540 = scalar_lea.vmem %s0, 404
  %v541 = vld [vmem:[%s540] sm:$0xf]
  %v542 = vunpack.c.l.bf16 %v541
  %v543 = vunpack.c.h.bf16 %v541
  %s544 = scalar_lea.vmem %s1, 596
  %s546 = ssub.s32 0, 4
  %s547 = scalar_lea.vmem %s544, %s546
  %v548 = vpack.c.bf16 %v542, %v112
  %549 = vst [vmem:[%s547] sm:$0xff] %v548
  %s550 = scalar_lea.vmem %s0, 148
  %v551 = vld [vmem:[%s550] sm:$0xf]
  %v552 = vunpack.c.l.bf16 %v551
  %v553 = vunpack.c.h.bf16 %v551
  %s554 = scalar_lea.vmem %s1, 852
  %s556 = ssub.s32 0, 4
  %s557 = scalar_lea.vmem %s554, %s556
  %v558 = vpack.c.bf16 %v552, %v117
  %559 = vst [vmem:[%s557] sm:$0xff] %v558
  %s560 = scalar_lea.vmem %s0, 852
  %v561 = vld [vmem:[%s560] sm:$0xf]
  %v562 = vunpack.c.l.bf16 %v561
  %v563 = vunpack.c.h.bf16 %v561
  %s564 = scalar_lea.vmem %s1, 148
  %s566 = ssub.s32 0, 4
  %s567 = scalar_lea.vmem %s564, %s566
  %v568 = vpack.c.bf16 %v562, %v122
  %569 = vst [vmem:[%s567] sm:$0xff] %v568
  %s570 = scalar_lea.vmem %s0, 596
  %v571 = vld [vmem:[%s570] sm:$0xf]
  %v572 = vunpack.c.l.bf16 %v571
  %v573 = vunpack.c.h.bf16 %v571
  %s574 = scalar_lea.vmem %s1, 404
  %s576 = ssub.s32 0, 4
  %s577 = scalar_lea.vmem %s574, %s576
  %v578 = vpack.c.bf16 %v572, %v127
  %579 = vst [vmem:[%s577] sm:$0xff] %v578
  %s580 = scalar_lea.vmem %s0, 340
  %v581 = vld [vmem:[%s580] sm:$0xf]
  %v582 = vunpack.c.l.bf16 %v581
  %v583 = vunpack.c.h.bf16 %v581
  %s584 = scalar_lea.vmem %s1, 660
  %s586 = ssub.s32 0, 4
  %s587 = scalar_lea.vmem %s584, %s586
  %v588 = vpack.c.bf16 %v582, %v132
  %589 = vst [vmem:[%s587] sm:$0xff] %v588
  %s590 = scalar_lea.vmem %s0, 84
  %v591 = vld [vmem:[%s590] sm:$0xf]
  %v592 = vunpack.c.l.bf16 %v591
  %v593 = vunpack.c.h.bf16 %v591
  %s594 = scalar_lea.vmem %s1, 916
  %s596 = ssub.s32 0, 4
  %s597 = scalar_lea.vmem %s594, %s596
  %v598 = vpack.c.bf16 %v592, %v137
  %599 = vst [vmem:[%s597] sm:$0xff] %v598
  %s600 = scalar_lea.vmem %s0, 788
  %v601 = vld [vmem:[%s600] sm:$0xf]
  %v602 = vunpack.c.l.bf16 %v601
  %v603 = vunpack.c.h.bf16 %v601
  %s604 = scalar_lea.vmem %s1, 212
  %s606 = ssub.s32 0, 4
  %s607 = scalar_lea.vmem %s604, %s606
  %v608 = vpack.c.bf16 %v602, %v142
  %609 = vst [vmem:[%s607] sm:$0xff] %v608
  %s610 = scalar_lea.vmem %s0, 532
  %v611 = vld [vmem:[%s610] sm:$0xf]
  %v612 = vunpack.c.l.bf16 %v611
  %v613 = vunpack.c.h.bf16 %v611
  %s614 = scalar_lea.vmem %s1, 468
  %s616 = ssub.s32 0, 4
  %s617 = scalar_lea.vmem %s614, %s616
  %v618 = vpack.c.bf16 %v612, %v147
  %619 = vst [vmem:[%s617] sm:$0xff] %v618
  %s620 = scalar_lea.vmem %s0, 276
  %v621 = vld [vmem:[%s620] sm:$0xf]
  %v622 = vunpack.c.l.bf16 %v621
  %v623 = vunpack.c.h.bf16 %v621
  %s624 = scalar_lea.vmem %s1, 724
  %s626 = ssub.s32 0, 4
  %s627 = scalar_lea.vmem %s624, %s626
  %v628 = vpack.c.bf16 %v622, %v152
  %629 = vst [vmem:[%s627] sm:$0xff] %v628
  %s630 = scalar_lea.vmem %s0, 20
  %v631 = vld [vmem:[%s630] sm:$0xf]
  %v632 = vunpack.c.l.bf16 %v631
  %v633 = vunpack.c.h.bf16 %v631
  %s634 = scalar_lea.vmem %s1, 980
  %s636 = ssub.s32 0, 4
  %s637 = scalar_lea.vmem %s634, %s636
  %v638 = vpack.c.bf16 %v632, %v157
  %639 = vst [vmem:[%s637] sm:$0xff] %v638
  %s640 = scalar_lea.vmem %s0, 996
  %v641 = vld [vmem:[%s640] sm:$0xf]
  %v642 = vunpack.c.l.bf16 %v641
  %v643 = vunpack.c.h.bf16 %v641
  %s644 = scalar_lea.vmem %s1, 36
  %s646 = ssub.s32 0, 4
  %s647 = scalar_lea.vmem %s644, %s646
  %v648 = vpack.c.bf16 %v642, %v162
  %649 = vst [vmem:[%s647] sm:$0xff] %v648
  %s650 = scalar_lea.vmem %s0, 740
  %v651 = vld [vmem:[%s650] sm:$0xf]
  %v652 = vunpack.c.l.bf16 %v651
  %v653 = vunpack.c.h.bf16 %v651
  %s654 = scalar_lea.vmem %s1, 292
  %s656 = ssub.s32 0, 4
  %s657 = scalar_lea.vmem %s654, %s656
  %v658 = vpack.c.bf16 %v652, %v167
  %659 = vst [vmem:[%s657] sm:$0xff] %v658
  %s660 = scalar_lea.vmem %s0, 484
  %v661 = vld [vmem:[%s660] sm:$0xf]
  %v662 = vunpack.c.l.bf16 %v661
  %v663 = vunpack.c.h.bf16 %v661
  %s664 = scalar_lea.vmem %s1, 548
  %s666 = ssub.s32 0, 4
  %s667 = scalar_lea.vmem %s664, %s666
  %v668 = vpack.c.bf16 %v662, %v172
  %669 = vst [vmem:[%s667] sm:$0xff] %v668
  %s670 = scalar_lea.vmem %s0, 228
  %v671 = vld [vmem:[%s670] sm:$0xf]
  %v672 = vunpack.c.l.bf16 %v671
  %v673 = vunpack.c.h.bf16 %v671
  %s674 = scalar_lea.vmem %s1, 804
  %s676 = ssub.s32 0, 4
  %s677 = scalar_lea.vmem %s674, %s676
  %v678 = vpack.c.bf16 %v672, %v177
  %679 = vst [vmem:[%s677] sm:$0xff] %v678
  %s680 = scalar_lea.vmem %s0, 932
  %v681 = vld [vmem:[%s680] sm:$0xf]
  %v682 = vunpack.c.l.bf16 %v681
  %v683 = vunpack.c.h.bf16 %v681
  %s684 = scalar_lea.vmem %s1, 100
  %s686 = ssub.s32 0, 4
  %s687 = scalar_lea.vmem %s684, %s686
  %v688 = vpack.c.bf16 %v682, %v182
  %689 = vst [vmem:[%s687] sm:$0xff] %v688
  %s690 = scalar_lea.vmem %s0, 676
  %v691 = vld [vmem:[%s690] sm:$0xf]
  %v692 = vunpack.c.l.bf16 %v691
  %v693 = vunpack.c.h.bf16 %v691
  %s694 = scalar_lea.vmem %s1, 356
  %s696 = ssub.s32 0, 4
  %s697 = scalar_lea.vmem %s694, %s696
  %v698 = vpack.c.bf16 %v692, %v187
  %699 = vst [vmem:[%s697] sm:$0xff] %v698
  %s700 = scalar_lea.vmem %s0, 420
  %v701 = vld [vmem:[%s700] sm:$0xf]
  %v702 = vunpack.c.l.bf16 %v701
  %v703 = vunpack.c.h.bf16 %v701
  %s704 = scalar_lea.vmem %s1, 612
  %s706 = ssub.s32 0, 4
  %s707 = scalar_lea.vmem %s704, %s706
  %v708 = vpack.c.bf16 %v702, %v192
  %709 = vst [vmem:[%s707] sm:$0xff] %v708
  %s710 = scalar_lea.vmem %s0, 164
  %v711 = vld [vmem:[%s710] sm:$0xf]
  %v712 = vunpack.c.l.bf16 %v711
  %v713 = vunpack.c.h.bf16 %v711
  %s714 = scalar_lea.vmem %s1, 868
  %s716 = ssub.s32 0, 4
  %s717 = scalar_lea.vmem %s714, %s716
  %v718 = vpack.c.bf16 %v712, %v197
  %719 = vst [vmem:[%s717] sm:$0xff] %v718
  %s720 = scalar_lea.vmem %s0, 868
  %v721 = vld [vmem:[%s720] sm:$0xf]
  %v722 = vunpack.c.l.bf16 %v721
  %v723 = vunpack.c.h.bf16 %v721
  %s724 = scalar_lea.vmem %s1, 164
  %s726 = ssub.s32 0, 4
  %s727 = scalar_lea.vmem %s724, %s726
  %v728 = vpack.c.bf16 %v722, %v202
  %729 = vst [vmem:[%s727] sm:$0xff] %v728
  %s730 = scalar_lea.vmem %s0, 612
  %v731 = vld [vmem:[%s730] sm:$0xf]
  %v732 = vunpack.c.l.bf16 %v731
  %v733 = vunpack.c.h.bf16 %v731
  %s734 = scalar_lea.vmem %s1, 420
  %s736 = ssub.s32 0, 4
  %s737 = scalar_lea.vmem %s734, %s736
  %v738 = vpack.c.bf16 %v732, %v207
  %739 = vst [vmem:[%s737] sm:$0xff] %v738
  %s740 = scalar_lea.vmem %s0, 356
  %v741 = vld [vmem:[%s740] sm:$0xf]
  %v742 = vunpack.c.l.bf16 %v741
  %v743 = vunpack.c.h.bf16 %v741
  %s744 = scalar_lea.vmem %s1, 676
  %s746 = ssub.s32 0, 4
  %s747 = scalar_lea.vmem %s744, %s746
  %v748 = vpack.c.bf16 %v742, %v212
  %749 = vst [vmem:[%s747] sm:$0xff] %v748
  %s750 = scalar_lea.vmem %s0, 100
  %v751 = vld [vmem:[%s750] sm:$0xf]
  %v752 = vunpack.c.l.bf16 %v751
  %v753 = vunpack.c.h.bf16 %v751
  %s754 = scalar_lea.vmem %s1, 932
  %s756 = ssub.s32 0, 4
  %s757 = scalar_lea.vmem %s754, %s756
  %v758 = vpack.c.bf16 %v752, %v217
  %759 = vst [vmem:[%s757] sm:$0xff] %v758
  %s760 = scalar_lea.vmem %s0, 804
  %v761 = vld [vmem:[%s760] sm:$0xf]
  %v762 = vunpack.c.l.bf16 %v761
  %v763 = vunpack.c.h.bf16 %v761
  %s764 = scalar_lea.vmem %s1, 228
  %s766 = ssub.s32 0, 4
  %s767 = scalar_lea.vmem %s764, %s766
  %v768 = vpack.c.bf16 %v762, %v222
  %769 = vst [vmem:[%s767] sm:$0xff] %v768
  %s770 = scalar_lea.vmem %s0, 548
  %v771 = vld [vmem:[%s770] sm:$0xf]
  %v772 = vunpack.c.l.bf16 %v771
  %v773 = vunpack.c.h.bf16 %v771
  %s774 = scalar_lea.vmem %s1, 484
  %s776 = ssub.s32 0, 4
  %s777 = scalar_lea.vmem %s774, %s776
  %v778 = vpack.c.bf16 %v772, %v227
  %779 = vst [vmem:[%s777] sm:$0xff] %v778
  %s780 = scalar_lea.vmem %s0, 292
  %v781 = vld [vmem:[%s780] sm:$0xf]
  %v782 = vunpack.c.l.bf16 %v781
  %v783 = vunpack.c.h.bf16 %v781
  %s784 = scalar_lea.vmem %s1, 740
  %s786 = ssub.s32 0, 4
  %s787 = scalar_lea.vmem %s784, %s786
  %v788 = vpack.c.bf16 %v782, %v232
  %789 = vst [vmem:[%s787] sm:$0xff] %v788
  %s790 = scalar_lea.vmem %s0, 36
  %v791 = vld [vmem:[%s790] sm:$0xf]
  %v792 = vunpack.c.l.bf16 %v791
  %v793 = vunpack.c.h.bf16 %v791
  %s794 = scalar_lea.vmem %s1, 996
  %s796 = ssub.s32 0, 4
  %s797 = scalar_lea.vmem %s794, %s796
  %v798 = vpack.c.bf16 %v792, %v237
  %799 = vst [vmem:[%s797] sm:$0xff] %v798
  %s800 = scalar_lea.vmem %s0, 1012
  %v801 = vld [vmem:[%s800] sm:$0xf]
  %v802 = vunpack.c.l.bf16 %v801
  %v803 = vunpack.c.h.bf16 %v801
  %s804 = scalar_lea.vmem %s1, 52
  %s806 = ssub.s32 0, 4
  %s807 = scalar_lea.vmem %s804, %s806
  %v808 = vpack.c.bf16 %v802, %v242
  %809 = vst [vmem:[%s807] sm:$0xff] %v808
  %s810 = scalar_lea.vmem %s0, 756
  %v811 = vld [vmem:[%s810] sm:$0xf]
  %v812 = vunpack.c.l.bf16 %v811
  %v813 = vunpack.c.h.bf16 %v811
  %s814 = scalar_lea.vmem %s1, 308
  %s816 = ssub.s32 0, 4
  %s817 = scalar_lea.vmem %s814, %s816
  %v818 = vpack.c.bf16 %v812, %v247
  %819 = vst [vmem:[%s817] sm:$0xff] %v818
  %s820 = scalar_lea.vmem %s0, 500
  %v821 = vld [vmem:[%s820] sm:$0xf]
  %v822 = vunpack.c.l.bf16 %v821
  %v823 = vunpack.c.h.bf16 %v821
  %s824 = scalar_lea.vmem %s1, 564
  %s826 = ssub.s32 0, 4
  %s827 = scalar_lea.vmem %s824, %s826
  %v828 = vpack.c.bf16 %v822, %v252
  %829 = vst [vmem:[%s827] sm:$0xff] %v828
  %s830 = scalar_lea.vmem %s0, 244
  %v831 = vld [vmem:[%s830] sm:$0xf]
  %v832 = vunpack.c.l.bf16 %v831
  %v833 = vunpack.c.h.bf16 %v831
  %s834 = scalar_lea.vmem %s1, 820
  %s836 = ssub.s32 0, 4
  %s837 = scalar_lea.vmem %s834, %s836
  %v838 = vpack.c.bf16 %v832, %v257
  %839 = vst [vmem:[%s837] sm:$0xff] %v838
  %s840 = scalar_lea.vmem %s0, 948
  %v841 = vld [vmem:[%s840] sm:$0xf]
  %v842 = vunpack.c.l.bf16 %v841
  %v843 = vunpack.c.h.bf16 %v841
  %s844 = scalar_lea.vmem %s1, 116
  %s846 = ssub.s32 0, 4
  %s847 = scalar_lea.vmem %s844, %s846
  %v848 = vpack.c.bf16 %v842, %v262
  %849 = vst [vmem:[%s847] sm:$0xff] %v848
  %s850 = scalar_lea.vmem %s0, 692
  %v851 = vld [vmem:[%s850] sm:$0xf]
  %v852 = vunpack.c.l.bf16 %v851
  %v853 = vunpack.c.h.bf16 %v851
  %s854 = scalar_lea.vmem %s1, 372
  %s856 = ssub.s32 0, 4
  %s857 = scalar_lea.vmem %s854, %s856
  %v858 = vpack.c.bf16 %v852, %v267
  %859 = vst [vmem:[%s857] sm:$0xff] %v858
  %s860 = scalar_lea.vmem %s0, 436
  %v861 = vld [vmem:[%s860] sm:$0xf]
  %v862 = vunpack.c.l.bf16 %v861
  %v863 = vunpack.c.h.bf16 %v861
  %s864 = scalar_lea.vmem %s1, 628
  %s866 = ssub.s32 0, 4
  %s867 = scalar_lea.vmem %s864, %s866
  %v868 = vpack.c.bf16 %v862, %v272
  %869 = vst [vmem:[%s867] sm:$0xff] %v868
  %s870 = scalar_lea.vmem %s0, 180
  %v871 = vld [vmem:[%s870] sm:$0xf]
  %v872 = vunpack.c.l.bf16 %v871
  %v873 = vunpack.c.h.bf16 %v871
  %s874 = scalar_lea.vmem %s1, 884
  %s876 = ssub.s32 0, 4
  %s877 = scalar_lea.vmem %s874, %s876
  %v878 = vpack.c.bf16 %v872, %v277
  %879 = vst [vmem:[%s877] sm:$0xff] %v878
  %s880 = scalar_lea.vmem %s0, 884
  %v881 = vld [vmem:[%s880] sm:$0xf]
  %v882 = vunpack.c.l.bf16 %v881
  %v883 = vunpack.c.h.bf16 %v881
  %s884 = scalar_lea.vmem %s1, 180
  %s886 = ssub.s32 0, 4
  %s887 = scalar_lea.vmem %s884, %s886
  %v888 = vpack.c.bf16 %v882, %v282
  %889 = vst [vmem:[%s887] sm:$0xff] %v888
  %s890 = scalar_lea.vmem %s0, 628
  %v891 = vld [vmem:[%s890] sm:$0xf]
  %v892 = vunpack.c.l.bf16 %v891
  %v893 = vunpack.c.h.bf16 %v891
  %s894 = scalar_lea.vmem %s1, 436
  %s896 = ssub.s32 0, 4
  %s897 = scalar_lea.vmem %s894, %s896
  %v898 = vpack.c.bf16 %v892, %v287
  %899 = vst [vmem:[%s897] sm:$0xff] %v898
  %s900 = scalar_lea.vmem %s0, 372
  %v901 = vld [vmem:[%s900] sm:$0xf]
  %v902 = vunpack.c.l.bf16 %v901
  %v903 = vunpack.c.h.bf16 %v901
  %s904 = scalar_lea.vmem %s1, 692
  %s906 = ssub.s32 0, 4
  %s907 = scalar_lea.vmem %s904, %s906
  %v908 = vpack.c.bf16 %v902, %v292
  %909 = vst [vmem:[%s907] sm:$0xff] %v908
  %s910 = scalar_lea.vmem %s0, 116
  %v911 = vld [vmem:[%s910] sm:$0xf]
  %v912 = vunpack.c.l.bf16 %v911
  %v913 = vunpack.c.h.bf16 %v911
  %s914 = scalar_lea.vmem %s1, 948
  %s916 = ssub.s32 0, 4
  %s917 = scalar_lea.vmem %s914, %s916
  %v918 = vpack.c.bf16 %v912, %v297
  %919 = vst [vmem:[%s917] sm:$0xff] %v918
  %s920 = scalar_lea.vmem %s0, 820
  %v921 = vld [vmem:[%s920] sm:$0xf]
  %v922 = vunpack.c.l.bf16 %v921
  %v923 = vunpack.c.h.bf16 %v921
  %s924 = scalar_lea.vmem %s1, 244
  %s926 = ssub.s32 0, 4
  %s927 = scalar_lea.vmem %s924, %s926
  %v928 = vpack.c.bf16 %v922, %v302
  %929 = vst [vmem:[%s927] sm:$0xff] %v928
  %s930 = scalar_lea.vmem %s0, 564
  %v931 = vld [vmem:[%s930] sm:$0xf]
  %v932 = vunpack.c.l.bf16 %v931
  %v933 = vunpack.c.h.bf16 %v931
  %s934 = scalar_lea.vmem %s1, 500
  %s936 = ssub.s32 0, 4
  %s937 = scalar_lea.vmem %s934, %s936
  %v938 = vpack.c.bf16 %v932, %v307
  %939 = vst [vmem:[%s937] sm:$0xff] %v938
  %s940 = scalar_lea.vmem %s0, 308
  %v941 = vld [vmem:[%s940] sm:$0xf]
  %v942 = vunpack.c.l.bf16 %v941
  %v943 = vunpack.c.h.bf16 %v941
  %s944 = scalar_lea.vmem %s1, 756
  %s946 = ssub.s32 0, 4
  %s947 = scalar_lea.vmem %s944, %s946
  %v948 = vpack.c.bf16 %v942, %v312
  %949 = vst [vmem:[%s947] sm:$0xff] %v948
  %s950 = scalar_lea.vmem %s0, 52
  %v951 = vld [vmem:[%s950] sm:$0xf]
  %v952 = vunpack.c.l.bf16 %v951
  %v953 = vunpack.c.h.bf16 %v951
  %s954 = scalar_lea.vmem %s1, 1012
  %s956 = ssub.s32 0, 4
  %s957 = scalar_lea.vmem %s954, %s956
  %v958 = vpack.c.bf16 %v952, %v317
  %959 = vst [vmem:[%s957] sm:$0xff] %v958
  %s960 = scalar_lea.vmem %s0, 968
  %v961 = vld [vmem:[%s960] sm:$0xf]
  %v962 = vunpack.c.l.bf16 %v961
  %v963 = vunpack.c.h.bf16 %v961
  %s964 = scalar_lea.vmem %s1, 8
  %s965 = scalar_lea.vmem %s0, 712
  %v966 = vld [vmem:[%s965] sm:$0xf]
  %v967 = vunpack.c.l.bf16 %v966
  %v968 = vunpack.c.h.bf16 %v966
  %s969 = scalar_lea.vmem %s1, 264
  %s970 = scalar_lea.vmem %s0, 456
  %v971 = vld [vmem:[%s970] sm:$0xf]
  %v972 = vunpack.c.l.bf16 %v971
  %v973 = vunpack.c.h.bf16 %v971
  %s974 = scalar_lea.vmem %s1, 520
  %s975 = scalar_lea.vmem %s0, 200
  %v976 = vld [vmem:[%s975] sm:$0xf]
  %v977 = vunpack.c.l.bf16 %v976
  %v978 = vunpack.c.h.bf16 %v976
  %s979 = scalar_lea.vmem %s1, 776
  %s980 = scalar_lea.vmem %s0, 904
  %v981 = vld [vmem:[%s980] sm:$0xf]
  %v982 = vunpack.c.l.bf16 %v981
  %v983 = vunpack.c.h.bf16 %v981
  %s984 = scalar_lea.vmem %s1, 72
  %s985 = scalar_lea.vmem %s0, 648
  %v986 = vld [vmem:[%s985] sm:$0xf]
  %v987 = vunpack.c.l.bf16 %v986
  %v988 = vunpack.c.h.bf16 %v986
  %s989 = scalar_lea.vmem %s1, 328
  %s990 = scalar_lea.vmem %s0, 392
  %v991 = vld [vmem:[%s990] sm:$0xf]
  %v992 = vunpack.c.l.bf16 %v991
  %v993 = vunpack.c.h.bf16 %v991
  %s994 = scalar_lea.vmem %s1, 584
  %s995 = scalar_lea.vmem %s0, 136
  %v996 = vld [vmem:[%s995] sm:$0xf]
  %v997 = vunpack.c.l.bf16 %v996
  %v998 = vunpack.c.h.bf16 %v996
  %s999 = scalar_lea.vmem %s1, 840
  %s1000 = scalar_lea.vmem %s0, 840
  %v1001 = vld [vmem:[%s1000] sm:$0xf]
  %v1002 = vunpack.c.l.bf16 %v1001
  %v1003 = vunpack.c.h.bf16 %v1001
  %s1004 = scalar_lea.vmem %s1, 136
  %s1005 = scalar_lea.vmem %s0, 584
  %v1006 = vld [vmem:[%s1005] sm:$0xf]
  %v1007 = vunpack.c.l.bf16 %v1006
  %v1008 = vunpack.c.h.bf16 %v1006
  %s1009 = scalar_lea.vmem %s1, 392
  %s1010 = scalar_lea.vmem %s0, 328
  %v1011 = vld [vmem:[%s1010] sm:$0xf]
  %v1012 = vunpack.c.l.bf16 %v1011
  %v1013 = vunpack.c.h.bf16 %v1011
  %s1014 = scalar_lea.vmem %s1, 648
  %s1015 = scalar_lea.vmem %s0, 72
  %v1016 = vld [vmem:[%s1015] sm:$0xf]
  %v1017 = vunpack.c.l.bf16 %v1016
  %v1018 = vunpack.c.h.bf16 %v1016
  %s1019 = scalar_lea.vmem %s1, 904
  %s1020 = scalar_lea.vmem %s0, 776
  %v1021 = vld [vmem:[%s1020] sm:$0xf]
  %v1022 = vunpack.c.l.bf16 %v1021
  %v1023 = vunpack.c.h.bf16 %v1021
  %s1024 = scalar_lea.vmem %s1, 200
  %s1025 = scalar_lea.vmem %s0, 520
  %v1026 = vld [vmem:[%s1025] sm:$0xf]
  %v1027 = vunpack.c.l.bf16 %v1026
  %v1028 = vunpack.c.h.bf16 %v1026
  %s1029 = scalar_lea.vmem %s1, 456
  %s1030 = scalar_lea.vmem %s0, 264
  %v1031 = vld [vmem:[%s1030] sm:$0xf]
  %v1032 = vunpack.c.l.bf16 %v1031
  %v1033 = vunpack.c.h.bf16 %v1031
  %s1034 = scalar_lea.vmem %s1, 712
  %s1035 = scalar_lea.vmem %s0, 8
  %v1036 = vld [vmem:[%s1035] sm:$0xf]
  %v1037 = vunpack.c.l.bf16 %v1036
  %v1038 = vunpack.c.h.bf16 %v1036
  %s1039 = scalar_lea.vmem %s1, 968
  %s1040 = scalar_lea.vmem %s0, 984
  %v1041 = vld [vmem:[%s1040] sm:$0xf]
  %v1042 = vunpack.c.l.bf16 %v1041
  %v1043 = vunpack.c.h.bf16 %v1041
  %s1044 = scalar_lea.vmem %s1, 24
  %s1045 = scalar_lea.vmem %s0, 728
  %v1046 = vld [vmem:[%s1045] sm:$0xf]
  %v1047 = vunpack.c.l.bf16 %v1046
  %v1048 = vunpack.c.h.bf16 %v1046
  %s1049 = scalar_lea.vmem %s1, 280
  %s1050 = scalar_lea.vmem %s0, 472
  %v1051 = vld [vmem:[%s1050] sm:$0xf]
  %v1052 = vunpack.c.l.bf16 %v1051
  %v1053 = vunpack.c.h.bf16 %v1051
  %s1054 = scalar_lea.vmem %s1, 536
  %s1055 = scalar_lea.vmem %s0, 216
  %v1056 = vld [vmem:[%s1055] sm:$0xf]
  %v1057 = vunpack.c.l.bf16 %v1056
  %v1058 = vunpack.c.h.bf16 %v1056
  %s1059 = scalar_lea.vmem %s1, 792
  %s1060 = scalar_lea.vmem %s0, 920
  %v1061 = vld [vmem:[%s1060] sm:$0xf]
  %v1062 = vunpack.c.l.bf16 %v1061
  %v1063 = vunpack.c.h.bf16 %v1061
  %s1064 = scalar_lea.vmem %s1, 88
  %s1065 = scalar_lea.vmem %s0, 664
  %v1066 = vld [vmem:[%s1065] sm:$0xf]
  %v1067 = vunpack.c.l.bf16 %v1066
  %v1068 = vunpack.c.h.bf16 %v1066
  %s1069 = scalar_lea.vmem %s1, 344
  %s1070 = scalar_lea.vmem %s0, 408
  %v1071 = vld [vmem:[%s1070] sm:$0xf]
  %v1072 = vunpack.c.l.bf16 %v1071
  %v1073 = vunpack.c.h.bf16 %v1071
  %s1074 = scalar_lea.vmem %s1, 600
  %s1075 = scalar_lea.vmem %s0, 152
  %v1076 = vld [vmem:[%s1075] sm:$0xf]
  %v1077 = vunpack.c.l.bf16 %v1076
  %v1078 = vunpack.c.h.bf16 %v1076
  %s1079 = scalar_lea.vmem %s1, 856
  %s1080 = scalar_lea.vmem %s0, 856
  %v1081 = vld [vmem:[%s1080] sm:$0xf]
  %v1082 = vunpack.c.l.bf16 %v1081
  %v1083 = vunpack.c.h.bf16 %v1081
  %s1084 = scalar_lea.vmem %s1, 152
  %s1085 = scalar_lea.vmem %s0, 600
  %v1086 = vld [vmem:[%s1085] sm:$0xf]
  %v1087 = vunpack.c.l.bf16 %v1086
  %v1088 = vunpack.c.h.bf16 %v1086
  %s1089 = scalar_lea.vmem %s1, 408
  %s1090 = scalar_lea.vmem %s0, 344
  %v1091 = vld [vmem:[%s1090] sm:$0xf]
  %v1092 = vunpack.c.l.bf16 %v1091
  %v1093 = vunpack.c.h.bf16 %v1091
  %s1094 = scalar_lea.vmem %s1, 664
  %s1095 = scalar_lea.vmem %s0, 88
  %v1096 = vld [vmem:[%s1095] sm:$0xf]
  %v1097 = vunpack.c.l.bf16 %v1096
  %v1098 = vunpack.c.h.bf16 %v1096
  %s1099 = scalar_lea.vmem %s1, 920
  %s1100 = scalar_lea.vmem %s0, 792
  %v1101 = vld [vmem:[%s1100] sm:$0xf]
  %v1102 = vunpack.c.l.bf16 %v1101
  %v1103 = vunpack.c.h.bf16 %v1101
  %s1104 = scalar_lea.vmem %s1, 216
  %s1105 = scalar_lea.vmem %s0, 536
  %v1106 = vld [vmem:[%s1105] sm:$0xf]
  %v1107 = vunpack.c.l.bf16 %v1106
  %v1108 = vunpack.c.h.bf16 %v1106
  %s1109 = scalar_lea.vmem %s1, 472
  %s1110 = scalar_lea.vmem %s0, 280
  %v1111 = vld [vmem:[%s1110] sm:$0xf]
  %v1112 = vunpack.c.l.bf16 %v1111
  %v1113 = vunpack.c.h.bf16 %v1111
  %s1114 = scalar_lea.vmem %s1, 728
  %s1115 = scalar_lea.vmem %s0, 24
  %v1116 = vld [vmem:[%s1115] sm:$0xf]
  %v1117 = vunpack.c.l.bf16 %v1116
  %v1118 = vunpack.c.h.bf16 %v1116
  %s1119 = scalar_lea.vmem %s1, 984
  %s1120 = scalar_lea.vmem %s0, 1000
  %v1121 = vld [vmem:[%s1120] sm:$0xf]
  %v1122 = vunpack.c.l.bf16 %v1121
  %v1123 = vunpack.c.h.bf16 %v1121
  %s1124 = scalar_lea.vmem %s1, 40
  %s1125 = scalar_lea.vmem %s0, 744
  %v1126 = vld [vmem:[%s1125] sm:$0xf]
  %v1127 = vunpack.c.l.bf16 %v1126
  %v1128 = vunpack.c.h.bf16 %v1126
  %s1129 = scalar_lea.vmem %s1, 296
  %s1130 = scalar_lea.vmem %s0, 488
  %v1131 = vld [vmem:[%s1130] sm:$0xf]
  %v1132 = vunpack.c.l.bf16 %v1131
  %v1133 = vunpack.c.h.bf16 %v1131
  %s1134 = scalar_lea.vmem %s1, 552
  %s1135 = scalar_lea.vmem %s0, 232
  %v1136 = vld [vmem:[%s1135] sm:$0xf]
  %v1137 = vunpack.c.l.bf16 %v1136
  %v1138 = vunpack.c.h.bf16 %v1136
  %s1139 = scalar_lea.vmem %s1, 808
  %s1140 = scalar_lea.vmem %s0, 936
  %v1141 = vld [vmem:[%s1140] sm:$0xf]
  %v1142 = vunpack.c.l.bf16 %v1141
  %v1143 = vunpack.c.h.bf16 %v1141
  %s1144 = scalar_lea.vmem %s1, 104
  %s1145 = scalar_lea.vmem %s0, 680
  %v1146 = vld [vmem:[%s1145] sm:$0xf]
  %v1147 = vunpack.c.l.bf16 %v1146
  %v1148 = vunpack.c.h.bf16 %v1146
  %s1149 = scalar_lea.vmem %s1, 360
  %s1150 = scalar_lea.vmem %s0, 424
  %v1151 = vld [vmem:[%s1150] sm:$0xf]
  %v1152 = vunpack.c.l.bf16 %v1151
  %v1153 = vunpack.c.h.bf16 %v1151
  %s1154 = scalar_lea.vmem %s1, 616
  %s1155 = scalar_lea.vmem %s0, 168
  %v1156 = vld [vmem:[%s1155] sm:$0xf]
  %v1157 = vunpack.c.l.bf16 %v1156
  %v1158 = vunpack.c.h.bf16 %v1156
  %s1159 = scalar_lea.vmem %s1, 872
  %s1160 = scalar_lea.vmem %s0, 872
  %v1161 = vld [vmem:[%s1160] sm:$0xf]
  %v1162 = vunpack.c.l.bf16 %v1161
  %v1163 = vunpack.c.h.bf16 %v1161
  %s1164 = scalar_lea.vmem %s1, 168
  %s1165 = scalar_lea.vmem %s0, 616
  %v1166 = vld [vmem:[%s1165] sm:$0xf]
  %v1167 = vunpack.c.l.bf16 %v1166
  %v1168 = vunpack.c.h.bf16 %v1166
  %s1169 = scalar_lea.vmem %s1, 424
  %s1170 = scalar_lea.vmem %s0, 360
  %v1171 = vld [vmem:[%s1170] sm:$0xf]
  %v1172 = vunpack.c.l.bf16 %v1171
  %v1173 = vunpack.c.h.bf16 %v1171
  %s1174 = scalar_lea.vmem %s1, 680
  %s1175 = scalar_lea.vmem %s0, 104
  %v1176 = vld [vmem:[%s1175] sm:$0xf]
  %v1177 = vunpack.c.l.bf16 %v1176
  %v1178 = vunpack.c.h.bf16 %v1176
  %s1179 = scalar_lea.vmem %s1, 936
  %s1180 = scalar_lea.vmem %s0, 808
  %v1181 = vld [vmem:[%s1180] sm:$0xf]
  %v1182 = vunpack.c.l.bf16 %v1181
  %v1183 = vunpack.c.h.bf16 %v1181
  %s1184 = scalar_lea.vmem %s1, 232
  %s1185 = scalar_lea.vmem %s0, 552
  %v1186 = vld [vmem:[%s1185] sm:$0xf]
  %v1187 = vunpack.c.l.bf16 %v1186
  %v1188 = vunpack.c.h.bf16 %v1186
  %s1189 = scalar_lea.vmem %s1, 488
  %s1190 = scalar_lea.vmem %s0, 296
  %v1191 = vld [vmem:[%s1190] sm:$0xf]
  %v1192 = vunpack.c.l.bf16 %v1191
  %v1193 = vunpack.c.h.bf16 %v1191
  %s1194 = scalar_lea.vmem %s1, 744
  %s1195 = scalar_lea.vmem %s0, 40
  %v1196 = vld [vmem:[%s1195] sm:$0xf]
  %v1197 = vunpack.c.l.bf16 %v1196
  %v1198 = vunpack.c.h.bf16 %v1196
  %s1199 = scalar_lea.vmem %s1, 1000
  %s1200 = scalar_lea.vmem %s0, 1016
  %v1201 = vld [vmem:[%s1200] sm:$0xf]
  %v1202 = vunpack.c.l.bf16 %v1201
  %v1203 = vunpack.c.h.bf16 %v1201
  %s1204 = scalar_lea.vmem %s1, 56
  %s1205 = scalar_lea.vmem %s0, 760
  %v1206 = vld [vmem:[%s1205] sm:$0xf]
  %v1207 = vunpack.c.l.bf16 %v1206
  %v1208 = vunpack.c.h.bf16 %v1206
  %s1209 = scalar_lea.vmem %s1, 312
  %s1210 = scalar_lea.vmem %s0, 504
  %v1211 = vld [vmem:[%s1210] sm:$0xf]
  %v1212 = vunpack.c.l.bf16 %v1211
  %v1213 = vunpack.c.h.bf16 %v1211
  %s1214 = scalar_lea.vmem %s1, 568
  %s1215 = scalar_lea.vmem %s0, 248
  %v1216 = vld [vmem:[%s1215] sm:$0xf]
  %v1217 = vunpack.c.l.bf16 %v1216
  %v1218 = vunpack.c.h.bf16 %v1216
  %s1219 = scalar_lea.vmem %s1, 824
  %s1220 = scalar_lea.vmem %s0, 952
  %v1221 = vld [vmem:[%s1220] sm:$0xf]
  %v1222 = vunpack.c.l.bf16 %v1221
  %v1223 = vunpack.c.h.bf16 %v1221
  %s1224 = scalar_lea.vmem %s1, 120
  %s1225 = scalar_lea.vmem %s0, 696
  %v1226 = vld [vmem:[%s1225] sm:$0xf]
  %v1227 = vunpack.c.l.bf16 %v1226
  %v1228 = vunpack.c.h.bf16 %v1226
  %s1229 = scalar_lea.vmem %s1, 376
  %s1230 = scalar_lea.vmem %s0, 440
  %v1231 = vld [vmem:[%s1230] sm:$0xf]
  %v1232 = vunpack.c.l.bf16 %v1231
  %v1233 = vunpack.c.h.bf16 %v1231
  %s1234 = scalar_lea.vmem %s1, 632
  %s1235 = scalar_lea.vmem %s0, 184
  %v1236 = vld [vmem:[%s1235] sm:$0xf]
  %v1237 = vunpack.c.l.bf16 %v1236
  %v1238 = vunpack.c.h.bf16 %v1236
  %s1239 = scalar_lea.vmem %s1, 888
  %s1240 = scalar_lea.vmem %s0, 888
  %v1241 = vld [vmem:[%s1240] sm:$0xf]
  %v1242 = vunpack.c.l.bf16 %v1241
  %v1243 = vunpack.c.h.bf16 %v1241
  %s1244 = scalar_lea.vmem %s1, 184
  %s1245 = scalar_lea.vmem %s0, 632
  %v1246 = vld [vmem:[%s1245] sm:$0xf]
  %v1247 = vunpack.c.l.bf16 %v1246
  %v1248 = vunpack.c.h.bf16 %v1246
  %s1249 = scalar_lea.vmem %s1, 440
  %s1250 = scalar_lea.vmem %s0, 376
  %v1251 = vld [vmem:[%s1250] sm:$0xf]
  %v1252 = vunpack.c.l.bf16 %v1251
  %v1253 = vunpack.c.h.bf16 %v1251
  %s1254 = scalar_lea.vmem %s1, 696
  %s1255 = scalar_lea.vmem %s0, 120
  %v1256 = vld [vmem:[%s1255] sm:$0xf]
  %v1257 = vunpack.c.l.bf16 %v1256
  %v1258 = vunpack.c.h.bf16 %v1256
  %s1259 = scalar_lea.vmem %s1, 952
  %s1260 = scalar_lea.vmem %s0, 824
  %v1261 = vld [vmem:[%s1260] sm:$0xf]
  %v1262 = vunpack.c.l.bf16 %v1261
  %v1263 = vunpack.c.h.bf16 %v1261
  %s1264 = scalar_lea.vmem %s1, 248
  %s1265 = scalar_lea.vmem %s0, 568
  %v1266 = vld [vmem:[%s1265] sm:$0xf]
  %v1267 = vunpack.c.l.bf16 %v1266
  %v1268 = vunpack.c.h.bf16 %v1266
  %s1269 = scalar_lea.vmem %s1, 504
  %s1270 = scalar_lea.vmem %s0, 312
  %v1271 = vld [vmem:[%s1270] sm:$0xf]
  %v1272 = vunpack.c.l.bf16 %v1271
  %v1273 = vunpack.c.h.bf16 %v1271
  %s1274 = scalar_lea.vmem %s1, 760
  %s1275 = scalar_lea.vmem %s0, 56
  %v1276 = vld [vmem:[%s1275] sm:$0xf]
  %v1277 = vunpack.c.l.bf16 %v1276
  %v1278 = vunpack.c.h.bf16 %v1276
  %s1279 = scalar_lea.vmem %s1, 1016
  %s1280 = scalar_lea.vmem %s0, 972
  %v1281 = vld [vmem:[%s1280] sm:$0xf]
  %v1282 = vunpack.c.l.bf16 %v1281
  %v1283 = vunpack.c.h.bf16 %v1281
  %s1284 = scalar_lea.vmem %s1, 12
  %s1286 = ssub.s32 0, 4
  %s1287 = scalar_lea.vmem %s1284, %s1286
  %v1288 = vpack.c.bf16 %v1282, %v962
  %1289 = vst [vmem:[%s1287] sm:$0xff] %v1288
  %s1290 = scalar_lea.vmem %s0, 716
  %v1291 = vld [vmem:[%s1290] sm:$0xf]
  %v1292 = vunpack.c.l.bf16 %v1291
  %v1293 = vunpack.c.h.bf16 %v1291
  %s1294 = scalar_lea.vmem %s1, 268
  %s1296 = ssub.s32 0, 4
  %s1297 = scalar_lea.vmem %s1294, %s1296
  %v1298 = vpack.c.bf16 %v1292, %v967
  %1299 = vst [vmem:[%s1297] sm:$0xff] %v1298
  %s1300 = scalar_lea.vmem %s0, 460
  %v1301 = vld [vmem:[%s1300] sm:$0xf]
  %v1302 = vunpack.c.l.bf16 %v1301
  %v1303 = vunpack.c.h.bf16 %v1301
  %s1304 = scalar_lea.vmem %s1, 524
  %s1306 = ssub.s32 0, 4
  %s1307 = scalar_lea.vmem %s1304, %s1306
  %v1308 = vpack.c.bf16 %v1302, %v972
  %1309 = vst [vmem:[%s1307] sm:$0xff] %v1308
  %s1310 = scalar_lea.vmem %s0, 204
  %v1311 = vld [vmem:[%s1310] sm:$0xf]
  %v1312 = vunpack.c.l.bf16 %v1311
  %v1313 = vunpack.c.h.bf16 %v1311
  %s1314 = scalar_lea.vmem %s1, 780
  %s1316 = ssub.s32 0, 4
  %s1317 = scalar_lea.vmem %s1314, %s1316
  %v1318 = vpack.c.bf16 %v1312, %v977
  %1319 = vst [vmem:[%s1317] sm:$0xff] %v1318
  %s1320 = scalar_lea.vmem %s0, 908
  %v1321 = vld [vmem:[%s1320] sm:$0xf]
  %v1322 = vunpack.c.l.bf16 %v1321
  %v1323 = vunpack.c.h.bf16 %v1321
  %s1324 = scalar_lea.vmem %s1, 76
  %s1326 = ssub.s32 0, 4
  %s1327 = scalar_lea.vmem %s1324, %s1326
  %v1328 = vpack.c.bf16 %v1322, %v982
  %1329 = vst [vmem:[%s1327] sm:$0xff] %v1328
  %s1330 = scalar_lea.vmem %s0, 652
  %v1331 = vld [vmem:[%s1330] sm:$0xf]
  %v1332 = vunpack.c.l.bf16 %v1331
  %v1333 = vunpack.c.h.bf16 %v1331
  %s1334 = scalar_lea.vmem %s1, 332
  %s1336 = ssub.s32 0, 4
  %s1337 = scalar_lea.vmem %s1334, %s1336
  %v1338 = vpack.c.bf16 %v1332, %v987
  %1339 = vst [vmem:[%s1337] sm:$0xff] %v1338
  %s1340 = scalar_lea.vmem %s0, 396
  %v1341 = vld [vmem:[%s1340] sm:$0xf]
  %v1342 = vunpack.c.l.bf16 %v1341
  %v1343 = vunpack.c.h.bf16 %v1341
  %s1344 = scalar_lea.vmem %s1, 588
  %s1346 = ssub.s32 0, 4
  %s1347 = scalar_lea.vmem %s1344, %s1346
  %v1348 = vpack.c.bf16 %v1342, %v992
  %1349 = vst [vmem:[%s1347] sm:$0xff] %v1348
  %s1350 = scalar_lea.vmem %s0, 140
  %v1351 = vld [vmem:[%s1350] sm:$0xf]
  %v1352 = vunpack.c.l.bf16 %v1351
  %v1353 = vunpack.c.h.bf16 %v1351
  %s1354 = scalar_lea.vmem %s1, 844
  %s1356 = ssub.s32 0, 4
  %s1357 = scalar_lea.vmem %s1354, %s1356
  %v1358 = vpack.c.bf16 %v1352, %v997
  %1359 = vst [vmem:[%s1357] sm:$0xff] %v1358
  %s1360 = scalar_lea.vmem %s0, 844
  %v1361 = vld [vmem:[%s1360] sm:$0xf]
  %v1362 = vunpack.c.l.bf16 %v1361
  %v1363 = vunpack.c.h.bf16 %v1361
  %s1364 = scalar_lea.vmem %s1, 140
  %s1366 = ssub.s32 0, 4
  %s1367 = scalar_lea.vmem %s1364, %s1366
  %v1368 = vpack.c.bf16 %v1362, %v1002
  %1369 = vst [vmem:[%s1367] sm:$0xff] %v1368
  %s1370 = scalar_lea.vmem %s0, 588
  %v1371 = vld [vmem:[%s1370] sm:$0xf]
  %v1372 = vunpack.c.l.bf16 %v1371
  %v1373 = vunpack.c.h.bf16 %v1371
  %s1374 = scalar_lea.vmem %s1, 396
  %s1376 = ssub.s32 0, 4
  %s1377 = scalar_lea.vmem %s1374, %s1376
  %v1378 = vpack.c.bf16 %v1372, %v1007
  %1379 = vst [vmem:[%s1377] sm:$0xff] %v1378
  %s1380 = scalar_lea.vmem %s0, 332
  %v1381 = vld [vmem:[%s1380] sm:$0xf]
  %v1382 = vunpack.c.l.bf16 %v1381
  %v1383 = vunpack.c.h.bf16 %v1381
  %s1384 = scalar_lea.vmem %s1, 652
  %s1386 = ssub.s32 0, 4
  %s1387 = scalar_lea.vmem %s1384, %s1386
  %v1388 = vpack.c.bf16 %v1382, %v1012
  %1389 = vst [vmem:[%s1387] sm:$0xff] %v1388
  %s1390 = scalar_lea.vmem %s0, 76
  %v1391 = vld [vmem:[%s1390] sm:$0xf]
  %v1392 = vunpack.c.l.bf16 %v1391
  %v1393 = vunpack.c.h.bf16 %v1391
  %s1394 = scalar_lea.vmem %s1, 908
  %s1396 = ssub.s32 0, 4
  %s1397 = scalar_lea.vmem %s1394, %s1396
  %v1398 = vpack.c.bf16 %v1392, %v1017
  %1399 = vst [vmem:[%s1397] sm:$0xff] %v1398
  %s1400 = scalar_lea.vmem %s0, 780
  %v1401 = vld [vmem:[%s1400] sm:$0xf]
  %v1402 = vunpack.c.l.bf16 %v1401
  %v1403 = vunpack.c.h.bf16 %v1401
  %s1404 = scalar_lea.vmem %s1, 204
  %s1406 = ssub.s32 0, 4
  %s1407 = scalar_lea.vmem %s1404, %s1406
  %v1408 = vpack.c.bf16 %v1402, %v1022
  %1409 = vst [vmem:[%s1407] sm:$0xff] %v1408
  %s1410 = scalar_lea.vmem %s0, 524
  %v1411 = vld [vmem:[%s1410] sm:$0xf]
  %v1412 = vunpack.c.l.bf16 %v1411
  %v1413 = vunpack.c.h.bf16 %v1411
  %s1414 = scalar_lea.vmem %s1, 460
  %s1416 = ssub.s32 0, 4
  %s1417 = scalar_lea.vmem %s1414, %s1416
  %v1418 = vpack.c.bf16 %v1412, %v1027
  %1419 = vst [vmem:[%s1417] sm:$0xff] %v1418
  %s1420 = scalar_lea.vmem %s0, 268
  %v1421 = vld [vmem:[%s1420] sm:$0xf]
  %v1422 = vunpack.c.l.bf16 %v1421
  %v1423 = vunpack.c.h.bf16 %v1421
  %s1424 = scalar_lea.vmem %s1, 716
  %s1426 = ssub.s32 0, 4
  %s1427 = scalar_lea.vmem %s1424, %s1426
  %v1428 = vpack.c.bf16 %v1422, %v1032
  %1429 = vst [vmem:[%s1427] sm:$0xff] %v1428
  %s1430 = scalar_lea.vmem %s0, 12
  %v1431 = vld [vmem:[%s1430] sm:$0xf]
  %v1432 = vunpack.c.l.bf16 %v1431
  %v1433 = vunpack.c.h.bf16 %v1431
  %s1434 = scalar_lea.vmem %s1, 972
  %s1436 = ssub.s32 0, 4
  %s1437 = scalar_lea.vmem %s1434, %s1436
  %v1438 = vpack.c.bf16 %v1432, %v1037
  %1439 = vst [vmem:[%s1437] sm:$0xff] %v1438
  %s1440 = scalar_lea.vmem %s0, 988
  %v1441 = vld [vmem:[%s1440] sm:$0xf]
  %v1442 = vunpack.c.l.bf16 %v1441
  %v1443 = vunpack.c.h.bf16 %v1441
  %s1444 = scalar_lea.vmem %s1, 28
  %s1446 = ssub.s32 0, 4
  %s1447 = scalar_lea.vmem %s1444, %s1446
  %v1448 = vpack.c.bf16 %v1442, %v1042
  %1449 = vst [vmem:[%s1447] sm:$0xff] %v1448
  %s1450 = scalar_lea.vmem %s0, 732
  %v1451 = vld [vmem:[%s1450] sm:$0xf]
  %v1452 = vunpack.c.l.bf16 %v1451
  %v1453 = vunpack.c.h.bf16 %v1451
  %s1454 = scalar_lea.vmem %s1, 284
  %s1456 = ssub.s32 0, 4
  %s1457 = scalar_lea.vmem %s1454, %s1456
  %v1458 = vpack.c.bf16 %v1452, %v1047
  %1459 = vst [vmem:[%s1457] sm:$0xff] %v1458
  %s1460 = scalar_lea.vmem %s0, 476
  %v1461 = vld [vmem:[%s1460] sm:$0xf]
  %v1462 = vunpack.c.l.bf16 %v1461
  %v1463 = vunpack.c.h.bf16 %v1461
  %s1464 = scalar_lea.vmem %s1, 540
  %s1466 = ssub.s32 0, 4
  %s1467 = scalar_lea.vmem %s1464, %s1466
  %v1468 = vpack.c.bf16 %v1462, %v1052
  %1469 = vst [vmem:[%s1467] sm:$0xff] %v1468
  %s1470 = scalar_lea.vmem %s0, 220
  %v1471 = vld [vmem:[%s1470] sm:$0xf]
  %v1472 = vunpack.c.l.bf16 %v1471
  %v1473 = vunpack.c.h.bf16 %v1471
  %s1474 = scalar_lea.vmem %s1, 796
  %s1476 = ssub.s32 0, 4
  %s1477 = scalar_lea.vmem %s1474, %s1476
  %v1478 = vpack.c.bf16 %v1472, %v1057
  %1479 = vst [vmem:[%s1477] sm:$0xff] %v1478
  %s1480 = scalar_lea.vmem %s0, 924
  %v1481 = vld [vmem:[%s1480] sm:$0xf]
  %v1482 = vunpack.c.l.bf16 %v1481
  %v1483 = vunpack.c.h.bf16 %v1481
  %s1484 = scalar_lea.vmem %s1, 92
  %s1486 = ssub.s32 0, 4
  %s1487 = scalar_lea.vmem %s1484, %s1486
  %v1488 = vpack.c.bf16 %v1482, %v1062
  %1489 = vst [vmem:[%s1487] sm:$0xff] %v1488
  %s1490 = scalar_lea.vmem %s0, 668
  %v1491 = vld [vmem:[%s1490] sm:$0xf]
  %v1492 = vunpack.c.l.bf16 %v1491
  %v1493 = vunpack.c.h.bf16 %v1491
  %s1494 = scalar_lea.vmem %s1, 348
  %s1496 = ssub.s32 0, 4
  %s1497 = scalar_lea.vmem %s1494, %s1496
  %v1498 = vpack.c.bf16 %v1492, %v1067
  %1499 = vst [vmem:[%s1497] sm:$0xff] %v1498
  %s1500 = scalar_lea.vmem %s0, 412
  %v1501 = vld [vmem:[%s1500] sm:$0xf]
  %v1502 = vunpack.c.l.bf16 %v1501
  %v1503 = vunpack.c.h.bf16 %v1501
  %s1504 = scalar_lea.vmem %s1, 604
  %s1506 = ssub.s32 0, 4
  %s1507 = scalar_lea.vmem %s1504, %s1506
  %v1508 = vpack.c.bf16 %v1502, %v1072
  %1509 = vst [vmem:[%s1507] sm:$0xff] %v1508
  %s1510 = scalar_lea.vmem %s0, 156
  %v1511 = vld [vmem:[%s1510] sm:$0xf]
  %v1512 = vunpack.c.l.bf16 %v1511
  %v1513 = vunpack.c.h.bf16 %v1511
  %s1514 = scalar_lea.vmem %s1, 860
  %s1516 = ssub.s32 0, 4
  %s1517 = scalar_lea.vmem %s1514, %s1516
  %v1518 = vpack.c.bf16 %v1512, %v1077
  %1519 = vst [vmem:[%s1517] sm:$0xff] %v1518
  %s1520 = scalar_lea.vmem %s0, 860
  %v1521 = vld [vmem:[%s1520] sm:$0xf]
  %v1522 = vunpack.c.l.bf16 %v1521
  %v1523 = vunpack.c.h.bf16 %v1521
  %s1524 = scalar_lea.vmem %s1, 156
  %s1526 = ssub.s32 0, 4
  %s1527 = scalar_lea.vmem %s1524, %s1526
  %v1528 = vpack.c.bf16 %v1522, %v1082
  %1529 = vst [vmem:[%s1527] sm:$0xff] %v1528
  %s1530 = scalar_lea.vmem %s0, 604
  %v1531 = vld [vmem:[%s1530] sm:$0xf]
  %v1532 = vunpack.c.l.bf16 %v1531
  %v1533 = vunpack.c.h.bf16 %v1531
  %s1534 = scalar_lea.vmem %s1, 412
  %s1536 = ssub.s32 0, 4
  %s1537 = scalar_lea.vmem %s1534, %s1536
  %v1538 = vpack.c.bf16 %v1532, %v1087
  %1539 = vst [vmem:[%s1537] sm:$0xff] %v1538
  %s1540 = scalar_lea.vmem %s0, 348
  %v1541 = vld [vmem:[%s1540] sm:$0xf]
  %v1542 = vunpack.c.l.bf16 %v1541
  %v1543 = vunpack.c.h.bf16 %v1541
  %s1544 = scalar_lea.vmem %s1, 668
  %s1546 = ssub.s32 0, 4
  %s1547 = scalar_lea.vmem %s1544, %s1546
  %v1548 = vpack.c.bf16 %v1542, %v1092
  %1549 = vst [vmem:[%s1547] sm:$0xff] %v1548
  %s1550 = scalar_lea.vmem %s0, 92
  %v1551 = vld [vmem:[%s1550] sm:$0xf]
  %v1552 = vunpack.c.l.bf16 %v1551
  %v1553 = vunpack.c.h.bf16 %v1551
  %s1554 = scalar_lea.vmem %s1, 924
  %s1556 = ssub.s32 0, 4
  %s1557 = scalar_lea.vmem %s1554, %s1556
  %v1558 = vpack.c.bf16 %v1552, %v1097
  %1559 = vst [vmem:[%s1557] sm:$0xff] %v1558
  %s1560 = scalar_lea.vmem %s0, 796
  %v1561 = vld [vmem:[%s1560] sm:$0xf]
  %v1562 = vunpack.c.l.bf16 %v1561
  %v1563 = vunpack.c.h.bf16 %v1561
  %s1564 = scalar_lea.vmem %s1, 220
  %s1566 = ssub.s32 0, 4
  %s1567 = scalar_lea.vmem %s1564, %s1566
  %v1568 = vpack.c.bf16 %v1562, %v1102
  %1569 = vst [vmem:[%s1567] sm:$0xff] %v1568
  %s1570 = scalar_lea.vmem %s0, 540
  %v1571 = vld [vmem:[%s1570] sm:$0xf]
  %v1572 = vunpack.c.l.bf16 %v1571
  %v1573 = vunpack.c.h.bf16 %v1571
  %s1574 = scalar_lea.vmem %s1, 476
  %s1576 = ssub.s32 0, 4
  %s1577 = scalar_lea.vmem %s1574, %s1576
  %v1578 = vpack.c.bf16 %v1572, %v1107
  %1579 = vst [vmem:[%s1577] sm:$0xff] %v1578
  %s1580 = scalar_lea.vmem %s0, 284
  %v1581 = vld [vmem:[%s1580] sm:$0xf]
  %v1582 = vunpack.c.l.bf16 %v1581
  %v1583 = vunpack.c.h.bf16 %v1581
  %s1584 = scalar_lea.vmem %s1, 732
  %s1586 = ssub.s32 0, 4
  %s1587 = scalar_lea.vmem %s1584, %s1586
  %v1588 = vpack.c.bf16 %v1582, %v1112
  %1589 = vst [vmem:[%s1587] sm:$0xff] %v1588
  %s1590 = scalar_lea.vmem %s0, 28
  %v1591 = vld [vmem:[%s1590] sm:$0xf]
  %v1592 = vunpack.c.l.bf16 %v1591
  %v1593 = vunpack.c.h.bf16 %v1591
  %s1594 = scalar_lea.vmem %s1, 988
  %s1596 = ssub.s32 0, 4
  %s1597 = scalar_lea.vmem %s1594, %s1596
  %v1598 = vpack.c.bf16 %v1592, %v1117
  %1599 = vst [vmem:[%s1597] sm:$0xff] %v1598
  %s1600 = scalar_lea.vmem %s0, 1004
  %v1601 = vld [vmem:[%s1600] sm:$0xf]
  %v1602 = vunpack.c.l.bf16 %v1601
  %v1603 = vunpack.c.h.bf16 %v1601
  %s1604 = scalar_lea.vmem %s1, 44
  %s1606 = ssub.s32 0, 4
  %s1607 = scalar_lea.vmem %s1604, %s1606
  %v1608 = vpack.c.bf16 %v1602, %v1122
  %1609 = vst [vmem:[%s1607] sm:$0xff] %v1608
  %s1610 = scalar_lea.vmem %s0, 748
  %v1611 = vld [vmem:[%s1610] sm:$0xf]
  %v1612 = vunpack.c.l.bf16 %v1611
  %v1613 = vunpack.c.h.bf16 %v1611
  %s1614 = scalar_lea.vmem %s1, 300
  %s1616 = ssub.s32 0, 4
  %s1617 = scalar_lea.vmem %s1614, %s1616
  %v1618 = vpack.c.bf16 %v1612, %v1127
  %1619 = vst [vmem:[%s1617] sm:$0xff] %v1618
  %s1620 = scalar_lea.vmem %s0, 492
  %v1621 = vld [vmem:[%s1620] sm:$0xf]
  %v1622 = vunpack.c.l.bf16 %v1621
  %v1623 = vunpack.c.h.bf16 %v1621
  %s1624 = scalar_lea.vmem %s1, 556
  %s1626 = ssub.s32 0, 4
  %s1627 = scalar_lea.vmem %s1624, %s1626
  %v1628 = vpack.c.bf16 %v1622, %v1132
  %1629 = vst [vmem:[%s1627] sm:$0xff] %v1628
  %s1630 = scalar_lea.vmem %s0, 236
  %v1631 = vld [vmem:[%s1630] sm:$0xf]
  %v1632 = vunpack.c.l.bf16 %v1631
  %v1633 = vunpack.c.h.bf16 %v1631
  %s1634 = scalar_lea.vmem %s1, 812
  %s1636 = ssub.s32 0, 4
  %s1637 = scalar_lea.vmem %s1634, %s1636
  %v1638 = vpack.c.bf16 %v1632, %v1137
  %1639 = vst [vmem:[%s1637] sm:$0xff] %v1638
  %s1640 = scalar_lea.vmem %s0, 940
  %v1641 = vld [vmem:[%s1640] sm:$0xf]
  %v1642 = vunpack.c.l.bf16 %v1641
  %v1643 = vunpack.c.h.bf16 %v1641
  %s1644 = scalar_lea.vmem %s1, 108
  %s1646 = ssub.s32 0, 4
  %s1647 = scalar_lea.vmem %s1644, %s1646
  %v1648 = vpack.c.bf16 %v1642, %v1142
  %1649 = vst [vmem:[%s1647] sm:$0xff] %v1648
  %s1650 = scalar_lea.vmem %s0, 684
  %v1651 = vld [vmem:[%s1650] sm:$0xf]
  %v1652 = vunpack.c.l.bf16 %v1651
  %v1653 = vunpack.c.h.bf16 %v1651
  %s1654 = scalar_lea.vmem %s1, 364
  %s1656 = ssub.s32 0, 4
  %s1657 = scalar_lea.vmem %s1654, %s1656
  %v1658 = vpack.c.bf16 %v1652, %v1147
  %1659 = vst [vmem:[%s1657] sm:$0xff] %v1658
  %s1660 = scalar_lea.vmem %s0, 428
  %v1661 = vld [vmem:[%s1660] sm:$0xf]
  %v1662 = vunpack.c.l.bf16 %v1661
  %v1663 = vunpack.c.h.bf16 %v1661
  %s1664 = scalar_lea.vmem %s1, 620
  %s1666 = ssub.s32 0, 4
  %s1667 = scalar_lea.vmem %s1664, %s1666
  %v1668 = vpack.c.bf16 %v1662, %v1152
  %1669 = vst [vmem:[%s1667] sm:$0xff] %v1668
  %s1670 = scalar_lea.vmem %s0, 172
  %v1671 = vld [vmem:[%s1670] sm:$0xf]
  %v1672 = vunpack.c.l.bf16 %v1671
  %v1673 = vunpack.c.h.bf16 %v1671
  %s1674 = scalar_lea.vmem %s1, 876
  %s1676 = ssub.s32 0, 4
  %s1677 = scalar_lea.vmem %s1674, %s1676
  %v1678 = vpack.c.bf16 %v1672, %v1157
  %1679 = vst [vmem:[%s1677] sm:$0xff] %v1678
  %s1680 = scalar_lea.vmem %s0, 876
  %v1681 = vld [vmem:[%s1680] sm:$0xf]
  %v1682 = vunpack.c.l.bf16 %v1681
  %v1683 = vunpack.c.h.bf16 %v1681
  %s1684 = scalar_lea.vmem %s1, 172
  %s1686 = ssub.s32 0, 4
  %s1687 = scalar_lea.vmem %s1684, %s1686
  %v1688 = vpack.c.bf16 %v1682, %v1162
  %1689 = vst [vmem:[%s1687] sm:$0xff] %v1688
  %s1690 = scalar_lea.vmem %s0, 620
  %v1691 = vld [vmem:[%s1690] sm:$0xf]
  %v1692 = vunpack.c.l.bf16 %v1691
  %v1693 = vunpack.c.h.bf16 %v1691
  %s1694 = scalar_lea.vmem %s1, 428
  %s1696 = ssub.s32 0, 4
  %s1697 = scalar_lea.vmem %s1694, %s1696
  %v1698 = vpack.c.bf16 %v1692, %v1167
  %1699 = vst [vmem:[%s1697] sm:$0xff] %v1698
  %s1700 = scalar_lea.vmem %s0, 364
  %v1701 = vld [vmem:[%s1700] sm:$0xf]
  %v1702 = vunpack.c.l.bf16 %v1701
  %v1703 = vunpack.c.h.bf16 %v1701
  %s1704 = scalar_lea.vmem %s1, 684
  %s1706 = ssub.s32 0, 4
  %s1707 = scalar_lea.vmem %s1704, %s1706
  %v1708 = vpack.c.bf16 %v1702, %v1172
  %1709 = vst [vmem:[%s1707] sm:$0xff] %v1708
  %s1710 = scalar_lea.vmem %s0, 108
  %v1711 = vld [vmem:[%s1710] sm:$0xf]
  %v1712 = vunpack.c.l.bf16 %v1711
  %v1713 = vunpack.c.h.bf16 %v1711
  %s1714 = scalar_lea.vmem %s1, 940
  %s1716 = ssub.s32 0, 4
  %s1717 = scalar_lea.vmem %s1714, %s1716
  %v1718 = vpack.c.bf16 %v1712, %v1177
  %1719 = vst [vmem:[%s1717] sm:$0xff] %v1718
  %s1720 = scalar_lea.vmem %s0, 812
  %v1721 = vld [vmem:[%s1720] sm:$0xf]
  %v1722 = vunpack.c.l.bf16 %v1721
  %v1723 = vunpack.c.h.bf16 %v1721
  %s1724 = scalar_lea.vmem %s1, 236
  %s1726 = ssub.s32 0, 4
  %s1727 = scalar_lea.vmem %s1724, %s1726
  %v1728 = vpack.c.bf16 %v1722, %v1182
  %1729 = vst [vmem:[%s1727] sm:$0xff] %v1728
  %s1730 = scalar_lea.vmem %s0, 556
  %v1731 = vld [vmem:[%s1730] sm:$0xf]
  %v1732 = vunpack.c.l.bf16 %v1731
  %v1733 = vunpack.c.h.bf16 %v1731
  %s1734 = scalar_lea.vmem %s1, 492
  %s1736 = ssub.s32 0, 4
  %s1737 = scalar_lea.vmem %s1734, %s1736
  %v1738 = vpack.c.bf16 %v1732, %v1187
  %1739 = vst [vmem:[%s1737] sm:$0xff] %v1738
  %s1740 = scalar_lea.vmem %s0, 300
  %v1741 = vld [vmem:[%s1740] sm:$0xf]
  %v1742 = vunpack.c.l.bf16 %v1741
  %v1743 = vunpack.c.h.bf16 %v1741
  %s1744 = scalar_lea.vmem %s1, 748
  %s1746 = ssub.s32 0, 4
  %s1747 = scalar_lea.vmem %s1744, %s1746
  %v1748 = vpack.c.bf16 %v1742, %v1192
  %1749 = vst [vmem:[%s1747] sm:$0xff] %v1748
  %s1750 = scalar_lea.vmem %s0, 44
  %v1751 = vld [vmem:[%s1750] sm:$0xf]
  %v1752 = vunpack.c.l.bf16 %v1751
  %v1753 = vunpack.c.h.bf16 %v1751
  %s1754 = scalar_lea.vmem %s1, 1004
  %s1756 = ssub.s32 0, 4
  %s1757 = scalar_lea.vmem %s1754, %s1756
  %v1758 = vpack.c.bf16 %v1752, %v1197
  %1759 = vst [vmem:[%s1757] sm:$0xff] %v1758
  %s1760 = scalar_lea.vmem %s0, 1020
  %v1761 = vld [vmem:[%s1760] sm:$0xf]
  %v1762 = vunpack.c.l.bf16 %v1761
  %v1763 = vunpack.c.h.bf16 %v1761
  %s1764 = scalar_lea.vmem %s1, 60
  %s1766 = ssub.s32 0, 4
  %s1767 = scalar_lea.vmem %s1764, %s1766
  %v1768 = vpack.c.bf16 %v1762, %v1202
  %1769 = vst [vmem:[%s1767] sm:$0xff] %v1768
  %s1770 = scalar_lea.vmem %s0, 764
  %v1771 = vld [vmem:[%s1770] sm:$0xf]
  %v1772 = vunpack.c.l.bf16 %v1771
  %v1773 = vunpack.c.h.bf16 %v1771
  %s1774 = scalar_lea.vmem %s1, 316
  %s1776 = ssub.s32 0, 4
  %s1777 = scalar_lea.vmem %s1774, %s1776
  %v1778 = vpack.c.bf16 %v1772, %v1207
  %1779 = vst [vmem:[%s1777] sm:$0xff] %v1778
  %s1780 = scalar_lea.vmem %s0, 508
  %v1781 = vld [vmem:[%s1780] sm:$0xf]
  %v1782 = vunpack.c.l.bf16 %v1781
  %v1783 = vunpack.c.h.bf16 %v1781
  %s1784 = scalar_lea.vmem %s1, 572
  %s1786 = ssub.s32 0, 4
  %s1787 = scalar_lea.vmem %s1784, %s1786
  %v1788 = vpack.c.bf16 %v1782, %v1212
  %1789 = vst [vmem:[%s1787] sm:$0xff] %v1788
  %s1790 = scalar_lea.vmem %s0, 252
  %v1791 = vld [vmem:[%s1790] sm:$0xf]
  %v1792 = vunpack.c.l.bf16 %v1791
  %v1793 = vunpack.c.h.bf16 %v1791
  %s1794 = scalar_lea.vmem %s1, 828
  %s1796 = ssub.s32 0, 4
  %s1797 = scalar_lea.vmem %s1794, %s1796
  %v1798 = vpack.c.bf16 %v1792, %v1217
  %1799 = vst [vmem:[%s1797] sm:$0xff] %v1798
  %s1800 = scalar_lea.vmem %s0, 956
  %v1801 = vld [vmem:[%s1800] sm:$0xf]
  %v1802 = vunpack.c.l.bf16 %v1801
  %v1803 = vunpack.c.h.bf16 %v1801
  %s1804 = scalar_lea.vmem %s1, 124
  %s1806 = ssub.s32 0, 4
  %s1807 = scalar_lea.vmem %s1804, %s1806
  %v1808 = vpack.c.bf16 %v1802, %v1222
  %1809 = vst [vmem:[%s1807] sm:$0xff] %v1808
  %s1810 = scalar_lea.vmem %s0, 700
  %v1811 = vld [vmem:[%s1810] sm:$0xf]
  %v1812 = vunpack.c.l.bf16 %v1811
  %v1813 = vunpack.c.h.bf16 %v1811
  %s1814 = scalar_lea.vmem %s1, 380
  %s1816 = ssub.s32 0, 4
  %s1817 = scalar_lea.vmem %s1814, %s1816
  %v1818 = vpack.c.bf16 %v1812, %v1227
  %1819 = vst [vmem:[%s1817] sm:$0xff] %v1818
  %s1820 = scalar_lea.vmem %s0, 444
  %v1821 = vld [vmem:[%s1820] sm:$0xf]
  %v1822 = vunpack.c.l.bf16 %v1821
  %v1823 = vunpack.c.h.bf16 %v1821
  %s1824 = scalar_lea.vmem %s1, 636
  %s1826 = ssub.s32 0, 4
  %s1827 = scalar_lea.vmem %s1824, %s1826
  %v1828 = vpack.c.bf16 %v1822, %v1232
  %1829 = vst [vmem:[%s1827] sm:$0xff] %v1828
  %s1830 = scalar_lea.vmem %s0, 188
  %v1831 = vld [vmem:[%s1830] sm:$0xf]
  %v1832 = vunpack.c.l.bf16 %v1831
  %v1833 = vunpack.c.h.bf16 %v1831
  %s1834 = scalar_lea.vmem %s1, 892
  %s1836 = ssub.s32 0, 4
  %s1837 = scalar_lea.vmem %s1834, %s1836
  %v1838 = vpack.c.bf16 %v1832, %v1237
  %1839 = vst [vmem:[%s1837] sm:$0xff] %v1838
  %s1840 = scalar_lea.vmem %s0, 892
  %v1841 = vld [vmem:[%s1840] sm:$0xf]
  %v1842 = vunpack.c.l.bf16 %v1841
  %v1843 = vunpack.c.h.bf16 %v1841
  %s1844 = scalar_lea.vmem %s1, 188
  %s1846 = ssub.s32 0, 4
  %s1847 = scalar_lea.vmem %s1844, %s1846
  %v1848 = vpack.c.bf16 %v1842, %v1242
  %1849 = vst [vmem:[%s1847] sm:$0xff] %v1848
  %s1850 = scalar_lea.vmem %s0, 636
  %v1851 = vld [vmem:[%s1850] sm:$0xf]
  %v1852 = vunpack.c.l.bf16 %v1851
  %v1853 = vunpack.c.h.bf16 %v1851
  %s1854 = scalar_lea.vmem %s1, 444
  %s1856 = ssub.s32 0, 4
  %s1857 = scalar_lea.vmem %s1854, %s1856
  %v1858 = vpack.c.bf16 %v1852, %v1247
  %1859 = vst [vmem:[%s1857] sm:$0xff] %v1858
  %s1860 = scalar_lea.vmem %s0, 380
  %v1861 = vld [vmem:[%s1860] sm:$0xf]
  %v1862 = vunpack.c.l.bf16 %v1861
  %v1863 = vunpack.c.h.bf16 %v1861
  %s1864 = scalar_lea.vmem %s1, 700
  %s1866 = ssub.s32 0, 4
  %s1867 = scalar_lea.vmem %s1864, %s1866
  %v1868 = vpack.c.bf16 %v1862, %v1252
  %1869 = vst [vmem:[%s1867] sm:$0xff] %v1868
  %s1870 = scalar_lea.vmem %s0, 124
  %v1871 = vld [vmem:[%s1870] sm:$0xf]
  %v1872 = vunpack.c.l.bf16 %v1871
  %v1873 = vunpack.c.h.bf16 %v1871
  %s1874 = scalar_lea.vmem %s1, 956
  %s1876 = ssub.s32 0, 4
  %s1877 = scalar_lea.vmem %s1874, %s1876
  %v1878 = vpack.c.bf16 %v1872, %v1257
  %1879 = vst [vmem:[%s1877] sm:$0xff] %v1878
  %s1880 = scalar_lea.vmem %s0, 828
  %v1881 = vld [vmem:[%s1880] sm:$0xf]
  %v1882 = vunpack.c.l.bf16 %v1881
  %v1883 = vunpack.c.h.bf16 %v1881
  %s1884 = scalar_lea.vmem %s1, 252
  %s1886 = ssub.s32 0, 4
  %s1887 = scalar_lea.vmem %s1884, %s1886
  %v1888 = vpack.c.bf16 %v1882, %v1262
  %1889 = vst [vmem:[%s1887] sm:$0xff] %v1888
  %s1890 = scalar_lea.vmem %s0, 572
  %v1891 = vld [vmem:[%s1890] sm:$0xf]
  %v1892 = vunpack.c.l.bf16 %v1891
  %v1893 = vunpack.c.h.bf16 %v1891
  %s1894 = scalar_lea.vmem %s1, 508
  %s1896 = ssub.s32 0, 4
  %s1897 = scalar_lea.vmem %s1894, %s1896
  %v1898 = vpack.c.bf16 %v1892, %v1267
  %1899 = vst [vmem:[%s1897] sm:$0xff] %v1898
  %s1900 = scalar_lea.vmem %s0, 316
  %v1901 = vld [vmem:[%s1900] sm:$0xf]
  %v1902 = vunpack.c.l.bf16 %v1901
  %v1903 = vunpack.c.h.bf16 %v1901
  %s1904 = scalar_lea.vmem %s1, 764
  %s1906 = ssub.s32 0, 4
  %s1907 = scalar_lea.vmem %s1904, %s1906
  %v1908 = vpack.c.bf16 %v1902, %v1272
  %1909 = vst [vmem:[%s1907] sm:$0xff] %v1908
  %s1910 = scalar_lea.vmem %s0, 60
  %v1911 = vld [vmem:[%s1910] sm:$0xf]
  %v1912 = vunpack.c.l.bf16 %v1911
  %v1913 = vunpack.c.h.bf16 %v1911
  %s1914 = scalar_lea.vmem %s1, 1020
  %s1916 = ssub.s32 0, 4
  %s1917 = scalar_lea.vmem %s1914, %s1916
  %v1918 = vpack.c.bf16 %v1912, %v1277
  %1919 = vst [vmem:[%s1917] sm:$0xff] %v1918

// kernel: nlayer_discriminator_forward.12
$region0: #{nlayer_discriminator_forward.12}
  #allocation0 [shape = 'u32[]', space=smem, size = 0x4, offset = 0x4, fixed_abs, tag = 'smem constant byte address 0x4 - core index']
  #allocation1 [shape = 'u32[144,128]{1,0:T(1,128)}', space=vmem, size = 0x12000, scoped, tag = 'internal scratch']
  %s0 = inlined_call_operand.vmem [shape: bf16[32,128], index: 0, kind: input, shape index: {}]
  %s1 = inlined_call_operand.vmem [shape: f32[1,128], index: 1, kind: input, shape index: {}]
  %s2 = inlined_call_operand.vmem [shape: f32[1,128], index: 2, kind: input, shape index: {}]
  %s3 = inlined_call_operand.vmem [shape: bf16[32,128], index: 3, kind: output, shape index: {}]
  %s4 = sld [smem:[#allocation0]]
  $region45: #{nlayer_discriminator_forward.12} parent=0
    _
  %s6 = ssub.s32 1, %s4
  %s7 = scalar_select 0, %s6, %s4
  loop: start=0, step=1, limit=4
  $region2: #{nlayer_discriminator_forward.12} parent=0 // loop_pre_header
    _
  $region3: #{nlayer_discriminator_forward.12} parent=0 // loop_header
    %s9 = sphi 0, %s13
    %p10 = scmp.ge.s32.totalorder %s9, 4
    %s16 = sphi 0, %s28
    %s17 = sphi 0, %s24
    %s18 = sphi 0, %s16
    %s19 = sphi 0, %s17
    %s20 = sphi 0, %s18
    %s21 = sphi 0, %s19
    %s33 = sphi 0, %s35
    %s36 = sphi 0, %s33
    %s37 = sphi 0, %s36
    %s53 = sphi 0, %s37
    %s59 = sphi 0, %s61
    %s62 = sphi 0, %s59
    %s63 = sphi 0, %s62
    %s79 = sphi 0, %s63
    %s85 = sphi 0, %s87
    %s88 = sphi 0, %s85
    %s89 = sphi 0, %s88
    %s105 = sphi 0, %s89
    %s113 = sphi 0, %s115
    %s116 = sphi 0, %s113
    %s117 = sphi 0, %s116
    %s133 = sphi 0, %s117
  $region4: #{nlayer_discriminator_forward.12} parent=0 // loop_header_branch
    %12 = sbr.rel (%p10) target = $region8
  $region5: #{nlayer_discriminator_forward.12} parent=0 // loop_body
    %s14 = ssub.s32 %s9, 1
    %s15 = ssub.s32 %s9, 2
    %s22 = sadd.s32 1, %s17
    %p23 = scmp.ge.s32.totalorder %s22, 1
    %s24 = scalar_select %p23, 0, %s22
    %s25 = sadd.s32 1, %s16
    %s26 = scalar_select %p23, %s25, %s16
    %p27 = scmp.ge.s32.totalorder %s26, 2
    %s28 = scalar_select %p27, 0, %s26
    %s29 = ssub.s32 %s16, %s28
    %s30 = ssub.s32 %s17, %s24
    %s31 = sor.u32 %s29, %s30
    %p32 = scmp.eq.s32.totalorder %s31, 0
    %s34 = sadd.s32 %s33, 1
    %s35 = scalar_select %p32, %s33, %s34
    %p38 = pneg %p32
    %p39 = scmp.eq.s32.totalorder %s9, 1
    %p40 = por %p38, %p39
    %p41 = scmp.ne.s32.totalorder %s33, %s36
    %p42 = scmp.eq.s32.totalorder %s9, 0
    %p43 = por %p41, %p42
    %p44 = scmp.ne.s32.totalorder %s33, %s36
    %p45 = scmp.eq.s32.totalorder %s14, 1
    %p46 = por %p44, %p45
    %p47 = scmp.ne.s32.totalorder %s36, %s37
    %p48 = scmp.eq.s32.totalorder %s14, 0
    %p49 = por %p47, %p48
    %p50 = scmp.ne.s32.totalorder %s36, %s37
    %p51 = scmp.eq.s32.totalorder %s15, 1
    %p52 = por %p50, %p51
    %p54 = scmp.ne.s32.totalorder %s37, %s53
    %p55 = scmp.eq.s32.totalorder %s15, 0
    %p56 = por %p54, %p55
    %s57 = ssub.s32 %s17, %s24
    %p58 = scmp.eq.s32.totalorder %s57, 0
    %s60 = sadd.s32 %s59, 1
    %s61 = scalar_select %p58, %s59, %s60
    %p64 = pneg %p58
    %p65 = scmp.eq.s32.totalorder %s9, 1
    %p66 = por %p64, %p65
    %p67 = scmp.ne.s32.totalorder %s59, %s62
    %p68 = scmp.eq.s32.totalorder %s9, 0
    %p69 = por %p67, %p68
    %p70 = scmp.ne.s32.totalorder %s59, %s62
    %p71 = scmp.eq.s32.totalorder %s14, 1
    %p72 = por %p70, %p71
    %p73 = scmp.ne.s32.totalorder %s62, %s63
    %p74 = scmp.eq.s32.totalorder %s14, 0
    %p75 = por %p73, %p74
    %p76 = scmp.ne.s32.totalorder %s62, %s63
    %p77 = scmp.eq.s32.totalorder %s15, 1
    %p78 = por %p76, %p77
    %p80 = scmp.ne.s32.totalorder %s63, %s79
    %p81 = scmp.eq.s32.totalorder %s15, 0
    %p82 = por %p80, %p81
    %s83 = ssub.s32 %s17, %s24
    %p84 = scmp.eq.s32.totalorder %s83, 0
    %s86 = sadd.s32 %s85, 1
    %s87 = scalar_select %p84, %s85, %s86
    %p90 = pneg %p84
    %p91 = scmp.eq.s32.totalorder %s9, 1
    %p92 = por %p90, %p91
    %p93 = scmp.ne.s32.totalorder %s85, %s88
    %p94 = scmp.eq.s32.totalorder %s9, 0
    %p95 = por %p93, %p94
    %p96 = scmp.ne.s32.totalorder %s85, %s88
    %p97 = scmp.eq.s32.totalorder %s14, 1
    %p98 = por %p96, %p97
    %p99 = scmp.ne.s32.totalorder %s88, %s89
    %p100 = scmp.eq.s32.totalorder %s14, 0
    %p101 = por %p99, %p100
    %p102 = scmp.ne.s32.totalorder %s88, %s89
    %p103 = scmp.eq.s32.totalorder %s15, 1
    %p104 = por %p102, %p103
    %p106 = scmp.ne.s32.totalorder %s89, %s105
    %p107 = scmp.eq.s32.totalorder %s15, 0
    %p108 = por %p106, %p107
    %s109 = ssub.s32 %s16, %s28
    %s110 = ssub.s32 %s17, %s24
    %s111 = sor.u32 %s109, %s110
    %p112 = scmp.eq.s32.totalorder %s111, 0
    %s114 = sadd.s32 %s113, 1
    %s115 = scalar_select %p112, %s113, %s114
    %p118 = pneg %p112
    %p119 = scmp.eq.s32.totalorder %s9, 1
    %p120 = por %p118, %p119
    %p121 = scmp.ne.s32.totalorder %s113, %s116
    %p122 = scmp.eq.s32.totalorder %s9, 0
    %p123 = por %p121, %p122
    %p124 = scmp.ne.s32.totalorder %s113, %s116
    %p125 = scmp.eq.s32.totalorder %s14, 1
    %p126 = por %p124, %p125
    %p127 = scmp.ne.s32.totalorder %s116, %s117
    %p128 = scmp.eq.s32.totalorder %s14, 0
    %p129 = por %p127, %p128
    %p130 = scmp.ne.s32.totalorder %s116, %s117
    %p131 = scmp.eq.s32.totalorder %s15, 1
    %p132 = por %p130, %p131
    %p134 = scmp.ne.s32.totalorder %s117, %s133
    %p135 = scmp.eq.s32.totalorder %s15, 0
    %p136 = por %p134, %p135
    %p137 = scmp.le.s32.totalorder 1, %s9
    %p138 = scmp.lt.s32.totalorder %s9, 3
    %p139 = pnand %p137, %p138
    %p140 = pneg %p139
    // Predicated region
    $region9: #{nlayer_discriminator_forward.12} parent=5 // pred_check
      _
    $region10: #{nlayer_discriminator_forward.12} parent=5 // pred_check_branch
      %142 = sbr.rel (%p139) target = $region12
    $region11: #{nlayer_discriminator_forward.12} parent=5 // pred_region
      %s143 = ssub.s32 %s9, 1
      // Predicated region
      $region13: #{nlayer_discriminator_forward.12} parent=11 // pred_check
        %p144 = pneg %p75
      $region14: #{nlayer_discriminator_forward.12} parent=11 // pred_check_branch
        %146 = sbr.rel (%p144) target = $region16
      $region15: #{nlayer_discriminator_forward.12} parent=11 // pred_region
        %p147 = scmp.lt.s32.totalorder %s19, 0
        %s148 = scalar_select %p147, %s19, 0
        %s149 = scalar_lea.vmem %s1, %s148
      $region16: #{nlayer_discriminator_forward.12} parent=11 // pred_fallthru
        _
      // Predicated region
      $region17: #{nlayer_discriminator_forward.12} parent=11 // pred_check
        %p150 = pneg %p101
      $region18: #{nlayer_discriminator_forward.12} parent=11 // pred_check_branch
        %152 = sbr.rel (%p150) target = $region20
      $region19: #{nlayer_discriminator_forward.12} parent=11 // pred_region
        %p153 = scmp.lt.s32.totalorder %s19, 0
        %s154 = scalar_select %p153, %s19, 0
        %s155 = scalar_lea.vmem %s2, %s154
      $region20: #{nlayer_discriminator_forward.12} parent=11 // pred_fallthru
        _
    $region12: #{nlayer_discriminator_forward.12} parent=5 // pred_fallthru
      _
    %p156 = scmp.lt.s32.totalorder %s9, 2
    // Predicated region
    $region21: #{nlayer_discriminator_forward.12} parent=5 // pred_check
      %p157 = pneg %p156
    $region22: #{nlayer_discriminator_forward.12} parent=5 // pred_check_branch
      %159 = sbr.rel (%p157) target = $region24
    $region23: #{nlayer_discriminator_forward.12} parent=5 // pred_region
      // Predicated region
      $region25: #{nlayer_discriminator_forward.12} parent=23 // pred_check
        %p160 = pneg %p43
      $region26: #{nlayer_discriminator_forward.12} parent=23 // pred_check_branch
        %162 = sbr.rel (%p160) target = $region28
      $region27: #{nlayer_discriminator_forward.12} parent=23 // pred_region
        %s163 = smul.u32 2, %s16
        %p164 = scmp.lt.s32.totalorder %s163, 3
        %s165 = scalar_select %p164, %s163, 3
        %p166 = scmp.lt.s32.totalorder %s17, 0
        %s167 = scalar_select %p166, %s17, 0
        %s168 = sadd.s32 %s167, %s165
        %s169 = smul.addr %s168, 4
        %s170 = scalar_lea.vmem %s0, %s169
        %s171 = smul.u32 2, %s16
      $region28: #{nlayer_discriminator_forward.12} parent=23 // pred_fallthru
        _
    $region24: #{nlayer_discriminator_forward.12} parent=5 // pred_fallthru
      _
    %p172 = scmp.le.s32.totalorder 1, %s9
    %p173 = scmp.lt.s32.totalorder %s9, 3
    %p174 = pnand %p172, %p173
    %p175 = pneg %p174
    // Predicated region
    $region29: #{nlayer_discriminator_forward.12} parent=5 // pred_check
      _
    $region30: #{nlayer_discriminator_forward.12} parent=5 // pred_check_branch
      %177 = sbr.rel (%p174) target = $region32
    $region31: #{nlayer_discriminator_forward.12} parent=5 // pred_region
      %s178 = ssub.s32 %s9, 1
      %s179 = smul.u32 2, %s18
      %p180 = scmp.lt.s32.totalorder %s179, 3
      %s181 = scalar_select %p180, %s179, 3
      %p182 = scmp.lt.s32.totalorder %s19, 0
      %s183 = scalar_select %p182, %s19, 0
      %s184 = sadd.s32 %s183, %s181
      %s185 = smul.addr %s184, 4
      %s186 = scalar_lea.vmem %s0, %s185
      %p187 = pneg %p49
      %p188 = pneg %p46
      %p189 = scmp.lt.s32.totalorder %s19, 0
      %s190 = scalar_select %p189, %s19, 0
      %s191 = scalar_lea.vmem %s1, %s190
      %p192 = pneg %p75
      %p193 = pneg %p72
      %p194 = scmp.lt.s32.totalorder %s19, 0
      %s195 = scalar_select %p194, %s19, 0
      %s196 = scalar_lea.vmem %s2, %s195
      %p197 = pneg %p101
      %p198 = pneg %p98
      %p199 = pneg %p129
      %p200 = pneg %p126
      %s201 = smul.u32 2, %s18
      %p202 = scmp.lt.s32.totalorder %s201, 3
      %s203 = scalar_select %p202, %s201, 3
      %p204 = scmp.lt.s32.totalorder %s19, 0
      %s205 = scalar_select %p204, %s19, 0
      %s206 = sadd.s32 %s205, %s203
      %s207 = smul.addr %s206, 4
      %s208 = scalar_lea.vmem %s3, %s207
      %s209 = smul.u32 2, %s18
      %p210 = scmp.lt.s32.totalorder %s209, 3
      %s211 = scalar_select %p210, %s209, 3
      %p212 = scmp.lt.s32.totalorder %s19, 0
      %s213 = scalar_select %p212, %s19, 0
      %s214 = sadd.s32 %s213, %s211
      %s215 = smul.addr %s214, 4
      %s216 = scalar_lea.vmem %s0, %s215
      %s217 = smul.u32 2, %s18
      %p218 = scmp.lt.s32.totalorder %s19, 0
      %s219 = scalar_select %p218, %s19, 0
      %s220 = scalar_lea.vmem %s1, %s219
      %p221 = scmp.lt.s32.totalorder %s19, 0
      %s222 = scalar_select %p221, %s19, 0
      %s223 = scalar_lea.vmem %s2, %s222
      %s224 = smul.u32 2, %s18
      %p225 = scmp.lt.s32.totalorder %s224, 3
      %s226 = scalar_select %p225, %s224, 3
      %p227 = scmp.lt.s32.totalorder %s19, 0
      %s228 = scalar_select %p227, %s19, 0
      %s229 = sadd.s32 %s228, %s226
      %s230 = smul.addr %s229, 4
      %s231 = scalar_lea.vmem %s3, %s230
      %s232 = smul.u32 2, %s18
      %v233 = vld [vmem:[%s216] sm:$0xf]
      %v234 = vld [vmem:[%s216 + $0x4] sm:$0xf]
      %v235 = vunpack.c.l.bf16 %v233
      %v236 = vunpack.c.l.bf16 %v234
      %v237 = vld [vmem:[%s220] sm:$0x1]
      %v239 = vlaneseq
      %v240 = vshrl.u32 %v239, 7
      %v241 = vsub.s32 0, %v240
      %v242 = vrot.slane %v237, %v241
      %v244 = vmul.f32 %v235, %v242
      %v245 = vmul.f32 %v236, %v242
      %v246 = vld [vmem:[%s223] sm:$0x1]
      %v248 = vlaneseq
      %v249 = vshrl.u32 %v248, 7
      %v250 = vsub.s32 0, %v249
      %v251 = vrot.slane %v246, %v250
      %v253 = vadd.f32 %v244, %v251
      %v254 = vadd.f32 %v245, %v251
      %vm255 = vcmp.gt.f32.partialorder %v253, 0.0
      %vm256 = vcmp.gt.f32.partialorder %v254, 0.0
      %v257 = vmul.f32 %v253, 0.2
      %v258 = vmul.f32 %v254, 0.2
      %v259 = vsel %vm255, %v253, %v257
      %v260 = vsel %vm256, %v254, %v258
      %v261 = vpack.c.bf16 %v260, %v259
      %v263 = vunpack.c.l.b16 %v261
      %v264 = vunpack.c.h.b16 %v261
      %v265 = vpack.c.b16 %v263, %v263
      %v266 = vpack.c.b16 %v264, %v264
      %269 = vst [vmem:[%s231] sm:$0xf] %v265
      %270 = vst [vmem:[%s231 + $0x4] sm:$0xf] %v266
      %s271 = smul.u32 2, %s18
      %p272 = scmp.lt.s32.totalorder %s271, 3
      %s273 = scalar_select %p272, %s271, 3
      %p274 = scmp.lt.s32.totalorder %s19, 0
      %s275 = scalar_select %p274, %s19, 0
      %s276 = sadd.s32 %s275, %s273
      %s277 = smul.addr %s276, 4
      %s278 = scalar_lea.vmem %s3, %s277
      // Predicated region
      $region33: #{nlayer_discriminator_forward.12} parent=31 // pred_check
        %p279 = pneg %p126
      $region34: #{nlayer_discriminator_forward.12} parent=31 // pred_check_branch
        %281 = sbr.rel (%p279) target = $region36
      $region35: #{nlayer_discriminator_forward.12} parent=31 // pred_region
        %s282 = smul.u32 2, %s18
      $region36: #{nlayer_discriminator_forward.12} parent=31 // pred_fallthru
        _
    $region32: #{nlayer_discriminator_forward.12} parent=5 // pred_fallthru
      _
    %p283 = scmp.le.s32.totalorder 2, %s9
    // Predicated region
    $region37: #{nlayer_discriminator_forward.12} parent=5 // pred_check
      %p284 = pneg %p283
    $region38: #{nlayer_discriminator_forward.12} parent=5 // pred_check_branch
      %286 = sbr.rel (%p284) target = $region40
    $region39: #{nlayer_discriminator_forward.12} parent=5 // pred_region
      %s287 = ssub.s32 %s9, 2
      // Predicated region
      $region41: #{nlayer_discriminator_forward.12} parent=39 // pred_check
        %p288 = pneg %p132
      $region42: #{nlayer_discriminator_forward.12} parent=39 // pred_check_branch
        %290 = sbr.rel (%p288) target = $region44
      $region43: #{nlayer_discriminator_forward.12} parent=39 // pred_region
        %s291 = smul.u32 2, %s20
        %p292 = scmp.lt.s32.totalorder %s291, 3
        %s293 = scalar_select %p292, %s291, 3
        %p294 = scmp.lt.s32.totalorder %s21, 0
        %s295 = scalar_select %p294, %s21, 0
        %s296 = sadd.s32 %s295, %s293
        %s297 = smul.addr %s296, 4
        %s298 = scalar_lea.vmem %s3, %s297
      $region44: #{nlayer_discriminator_forward.12} parent=39 // pred_fallthru
        _
    $region40: #{nlayer_discriminator_forward.12} parent=5 // pred_fallthru
      _
  $region6: #{nlayer_discriminator_forward.12} parent=0 // loop_footer
    %s13 = sadd.s32 1, %s9
  $region7: #{nlayer_discriminator_forward.12} parent=0 // loop_footer_branch
    %8 = sbr.rel target = $region3
  $region8: #{nlayer_discriminator_forward.12} parent=0 // loop_exit
    _

// kernel: nlayer_discriminator_forward.11
$region0: #{nlayer_discriminator_forward.11}
  #allocation0 [shape = 'u32[]', space=smem, size = 0x4, offset = 0x4, fixed_abs, tag = 'smem constant byte address 0x4 - core index']
  #allocation1 [shape = 'u32[144,128]{1,0:T(1,128)}', space=vmem, size = 0x12000, scoped, tag = 'internal scratch']
  #allocation2 [shape = 'f32[16,128]{1,0:T(8,128)}', space=vmem, size = 0x2000, scoped, tag = 'scratch operand']
  %s0 = inlined_call_operand.vmem [shape: bf16[32,256], index: 0, kind: input, shape index: {}]
  %s1 = inlined_call_operand.vmem [shape: bf16[256,128], index: 1, kind: input, shape index: {}]
  %s2 = inlined_call_operand.vmem [shape: bf16[32,128], index: 2, kind: output, shape index: {0}]
  %s3 = inlined_call_operand.vmem [shape: f32[16,128], index: 3, kind: output, shape index: {1}]
  %s4 = inlined_call_operand.vmem [shape: f32[16,128], index: 4, kind: output, shape index: {2}]
  %5 = xla_tuple %s2, %s3, %s4
  %s6 = sld [smem:[#allocation0]]
  $region65: #{nlayer_discriminator_forward.11} parent=0
    _
  %s8 = ssub.s32 1, %s6
  %s9 = scalar_select 0, %s8, %s6
  loop: start=0, step=1, limit=4
  $region2: #{nlayer_discriminator_forward.11} parent=0 // loop_pre_header
    _
  $region3: #{nlayer_discriminator_forward.11} parent=0 // loop_header
    %s11 = sphi 0, %s15
    %p12 = scmp.ge.s32.totalorder %s11, 4
    %s18 = sphi 0, %s37
    %s19 = sphi 0, %s33
    %s20 = sphi 0, %s29
    %s21 = sphi 0, %s18
    %s22 = sphi 0, %s19
    %s23 = sphi 0, %s20
    %s24 = sphi 0, %s21
    %s25 = sphi 0, %s22
    %s26 = sphi 0, %s23
    %s42 = sphi 0, %s44
    %s45 = sphi 0, %s42
    %s46 = sphi 0, %s45
    %s62 = sphi 0, %s46
    %s70 = sphi 0, %s72
    %s73 = sphi 0, %s70
    %s74 = sphi 0, %s73
    %s90 = sphi 0, %s74
    %s98 = sphi 0, %s100
    %s101 = sphi 0, %s98
    %s102 = sphi 0, %s101
    %s118 = sphi 0, %s102
    %s126 = sphi 0, %s128
    %s129 = sphi 0, %s126
    %s130 = sphi 0, %s129
    %s146 = sphi 0, %s130
    %s154 = sphi 0, %s156
    %s157 = sphi 0, %s154
    %s158 = sphi 0, %s157
    %s174 = sphi 0, %s158
  $region4: #{nlayer_discriminator_forward.11} parent=0 // loop_header_branch
    %14 = sbr.rel (%p12) target = $region8
  $region5: #{nlayer_discriminator_forward.11} parent=0 // loop_body
    %s16 = ssub.s32 %s11, 1
    %s17 = ssub.s32 %s11, 2
    %s27 = sadd.s32 1, %s20
    %p28 = scmp.ge.s32.totalorder %s27, 1
    %s29 = scalar_select %p28, 0, %s27
    %s30 = sadd.s32 1, %s19
    %s31 = scalar_select %p28, %s30, %s19
    %p32 = scmp.ge.s32.totalorder %s31, 1
    %s33 = scalar_select %p32, 0, %s31
    %s34 = sadd.s32 1, %s18
    %s35 = scalar_select %p32, %s34, %s18
    %p36 = scmp.ge.s32.totalorder %s35, 2
    %s37 = scalar_select %p36, 0, %s35
    %s38 = ssub.s32 %s18, %s37
    %s39 = ssub.s32 %s20, %s29
    %s40 = sor.u32 %s38, %s39
    %p41 = scmp.eq.s32.totalorder %s40, 0
    %s43 = sadd.s32 %s42, 1
    %s44 = scalar_select %p41, %s42, %s43
    %p47 = pneg %p41
    %p48 = scmp.eq.s32.totalorder %s11, 1
    %p49 = por %p47, %p48
    %p50 = scmp.ne.s32.totalorder %s42, %s45
    %p51 = scmp.eq.s32.totalorder %s11, 0
    %p52 = por %p50, %p51
    %p53 = scmp.ne.s32.totalorder %s42, %s45
    %p54 = scmp.eq.s32.totalorder %s16, 1
    %p55 = por %p53, %p54
    %p56 = scmp.ne.s32.totalorder %s45, %s46
    %p57 = scmp.eq.s32.totalorder %s16, 0
    %p58 = por %p56, %p57
    %p59 = scmp.ne.s32.totalorder %s45, %s46
    %p60 = scmp.eq.s32.totalorder %s17, 1
    %p61 = por %p59, %p60
    %p63 = scmp.ne.s32.totalorder %s46, %s62
    %p64 = scmp.eq.s32.totalorder %s17, 0
    %p65 = por %p63, %p64
    %s66 = ssub.s32 %s20, %s29
    %s67 = ssub.s32 %s19, %s33
    %s68 = sor.u32 %s66, %s67
    %p69 = scmp.eq.s32.totalorder %s68, 0
    %s71 = sadd.s32 %s70, 1
    %s72 = scalar_select %p69, %s70, %s71
    %p75 = pneg %p69
    %p76 = scmp.eq.s32.totalorder %s11, 1
    %p77 = por %p75, %p76
    %p78 = scmp.ne.s32.totalorder %s70, %s73
    %p79 = scmp.eq.s32.totalorder %s11, 0
    %p80 = por %p78, %p79
    %p81 = scmp.ne.s32.totalorder %s70, %s73
    %p82 = scmp.eq.s32.totalorder %s16, 1
    %p83 = por %p81, %p82
    %p84 = scmp.ne.s32.totalorder %s73, %s74
    %p85 = scmp.eq.s32.totalorder %s16, 0
    %p86 = por %p84, %p85
    %p87 = scmp.ne.s32.totalorder %s73, %s74
    %p88 = scmp.eq.s32.totalorder %s17, 1
    %p89 = por %p87, %p88
    %p91 = scmp.ne.s32.totalorder %s74, %s90
    %p92 = scmp.eq.s32.totalorder %s17, 0
    %p93 = por %p91, %p92
    %s94 = ssub.s32 %s18, %s37
    %s95 = ssub.s32 %s19, %s33
    %s96 = sor.u32 %s94, %s95
    %p97 = scmp.eq.s32.totalorder %s96, 0
    %s99 = sadd.s32 %s98, 1
    %s100 = scalar_select %p97, %s98, %s99
    %p103 = pneg %p97
    %p104 = scmp.eq.s32.totalorder %s11, 1
    %p105 = por %p103, %p104
    %p106 = scmp.ne.s32.totalorder %s98, %s101
    %p107 = scmp.eq.s32.totalorder %s11, 0
    %p108 = por %p106, %p107
    %p109 = scmp.ne.s32.totalorder %s98, %s101
    %p110 = scmp.eq.s32.totalorder %s16, 1
    %p111 = por %p109, %p110
    %p112 = scmp.ne.s32.totalorder %s101, %s102
    %p113 = scmp.eq.s32.totalorder %s16, 0
    %p114 = por %p112, %p113
    %p115 = scmp.ne.s32.totalorder %s101, %s102
    %p116 = scmp.eq.s32.totalorder %s17, 1
    %p117 = por %p115, %p116
    %p119 = scmp.ne.s32.totalorder %s102, %s118
    %p120 = scmp.eq.s32.totalorder %s17, 0
    %p121 = por %p119, %p120
    %s122 = ssub.s32 %s18, %s37
    %s123 = ssub.s32 %s19, %s33
    %s124 = sor.u32 %s122, %s123
    %p125 = scmp.eq.s32.totalorder %s124, 0
    %s127 = sadd.s32 %s126, 1
    %s128 = scalar_select %p125, %s126, %s127
    %p131 = pneg %p125
    %p132 = scmp.eq.s32.totalorder %s11, 1
    %p133 = por %p131, %p132
    %p134 = scmp.ne.s32.totalorder %s126, %s129
    %p135 = scmp.eq.s32.totalorder %s11, 0
    %p136 = por %p134, %p135
    %p137 = scmp.ne.s32.totalorder %s126, %s129
    %p138 = scmp.eq.s32.totalorder %s16, 1
    %p139 = por %p137, %p138
    %p140 = scmp.ne.s32.totalorder %s129, %s130
    %p141 = scmp.eq.s32.totalorder %s16, 0
    %p142 = por %p140, %p141
    %p143 = scmp.ne.s32.totalorder %s129, %s130
    %p144 = scmp.eq.s32.totalorder %s17, 1
    %p145 = por %p143, %p144
    %p147 = scmp.ne.s32.totalorder %s130, %s146
    %p148 = scmp.eq.s32.totalorder %s17, 0
    %p149 = por %p147, %p148
    %s150 = ssub.s32 %s18, %s37
    %s151 = ssub.s32 %s19, %s33
    %s152 = sor.u32 %s150, %s151
    %p153 = scmp.eq.s32.totalorder %s152, 0
    %s155 = sadd.s32 %s154, 1
    %s156 = scalar_select %p153, %s154, %s155
    %p159 = pneg %p153
    %p160 = scmp.eq.s32.totalorder %s11, 1
    %p161 = por %p159, %p160
    %p162 = scmp.ne.s32.totalorder %s154, %s157
    %p163 = scmp.eq.s32.totalorder %s11, 0
    %p164 = por %p162, %p163
    %p165 = scmp.ne.s32.totalorder %s154, %s157
    %p166 = scmp.eq.s32.totalorder %s16, 1
    %p167 = por %p165, %p166
    %p168 = scmp.ne.s32.totalorder %s157, %s158
    %p169 = scmp.eq.s32.totalorder %s16, 0
    %p170 = por %p168, %p169
    %p171 = scmp.ne.s32.totalorder %s157, %s158
    %p172 = scmp.eq.s32.totalorder %s17, 1
    %p173 = por %p171, %p172
    %p175 = scmp.ne.s32.totalorder %s158, %s174
    %p176 = scmp.eq.s32.totalorder %s17, 0
    %p177 = por %p175, %p176
    %p178 = scmp.le.s32.totalorder 1, %s11
    %p179 = scmp.lt.s32.totalorder %s11, 3
    %p180 = pnand %p178, %p179
    %p181 = pneg %p180
    // Predicated region
    $region9: #{nlayer_discriminator_forward.11} parent=5 // pred_check
      _
    $region10: #{nlayer_discriminator_forward.11} parent=5 // pred_check_branch
      %183 = sbr.rel (%p180) target = $region12
    $region11: #{nlayer_discriminator_forward.11} parent=5 // pred_region
      %s184 = ssub.s32 %s11, 1
      // Predicated region
      $region13: #{nlayer_discriminator_forward.11} parent=11 // pred_check
        %p185 = pneg %p86
      $region14: #{nlayer_discriminator_forward.11} parent=11 // pred_check_branch
        %187 = sbr.rel (%p185) target = $region16
      $region15: #{nlayer_discriminator_forward.11} parent=11 // pred_region
        %s188 = smul.u32 32, %s23
        %p189 = scmp.lt.s32.totalorder %s188, 31
        %s190 = scalar_select %p189, %s188, 31
        %p191 = scmp.lt.s32.totalorder %s22, 0
        %s192 = scalar_select %p191, %s22, 0
        %s193 = sadd.s32 %s192, %s190
        %s194 = smul.addr %s193, 4
        %s195 = scalar_lea.vmem %s1, %s194
        %s196 = smul.u32 32, %s23
      $region16: #{nlayer_discriminator_forward.11} parent=11 // pred_fallthru
        _
    $region12: #{nlayer_discriminator_forward.11} parent=5 // pred_fallthru
      _
    %p197 = scmp.lt.s32.totalorder %s11, 2
    // Predicated region
    $region17: #{nlayer_discriminator_forward.11} parent=5 // pred_check
      %p198 = pneg %p197
    $region18: #{nlayer_discriminator_forward.11} parent=5 // pred_check_branch
      %200 = sbr.rel (%p198) target = $region20
    $region19: #{nlayer_discriminator_forward.11} parent=5 // pred_region
      // Predicated region
      $region21: #{nlayer_discriminator_forward.11} parent=19 // pred_check
        %p201 = pneg %p52
      $region22: #{nlayer_discriminator_forward.11} parent=19 // pred_check_branch
        %203 = sbr.rel (%p201) target = $region24
      $region23: #{nlayer_discriminator_forward.11} parent=19 // pred_region
        %s204 = smul.u32 2, %s18
        %s205 = smul.u32 2, %s20
        %p206 = scmp.lt.s32.totalorder %s204, 3
        %s207 = scalar_select %p206, %s204, 3
        %p208 = scmp.lt.s32.totalorder %s205, 1
        %s209 = scalar_select %p208, %s205, 1
        %s210 = smul.addr %s207, 2
        %s211 = sadd.s32 %s209, %s210
        %s212 = smul.addr %s211, 4
        %s213 = scalar_lea.vmem %s0, %s212
        %s214 = smul.u32 2, %s18
        %s215 = smul.u32 2, %s20
      $region24: #{nlayer_discriminator_forward.11} parent=19 // pred_fallthru
        _
    $region20: #{nlayer_discriminator_forward.11} parent=5 // pred_fallthru
      _
    %p216 = scmp.le.s32.totalorder 1, %s11
    %p217 = scmp.lt.s32.totalorder %s11, 3
    %p218 = pnand %p216, %p217
    %p219 = pneg %p218
    // Predicated region
    $region25: #{nlayer_discriminator_forward.11} parent=5 // pred_check
      _
    $region26: #{nlayer_discriminator_forward.11} parent=5 // pred_check_branch
      %221 = sbr.rel (%p218) target = $region28
    $region27: #{nlayer_discriminator_forward.11} parent=5 // pred_region
      %s222 = ssub.s32 %s11, 1
      %s223 = smul.u32 2, %s21
      %s224 = smul.u32 2, %s23
      %p225 = scmp.lt.s32.totalorder %s223, 3
      %s226 = scalar_select %p225, %s223, 3
      %p227 = scmp.lt.s32.totalorder %s224, 1
      %s228 = scalar_select %p227, %s224, 1
      %s229 = smul.addr %s226, 2
      %s230 = sadd.s32 %s228, %s229
      %s231 = smul.addr %s230, 4
      %s232 = scalar_lea.vmem %s0, %s231
      %p233 = pneg %p58
      %p234 = pneg %p55
      %s235 = smul.u32 32, %s23
      %p236 = scmp.lt.s32.totalorder %s235, 31
      %s237 = scalar_select %p236, %s235, 31
      %p238 = scmp.lt.s32.totalorder %s22, 0
      %s239 = scalar_select %p238, %s22, 0
      %s240 = sadd.s32 %s239, %s237
      %s241 = smul.addr %s240, 4
      %s242 = scalar_lea.vmem %s1, %s241
      %p243 = pneg %p86
      %p244 = pneg %p83
      %p245 = pneg %p114
      %p246 = pneg %p111
      %s247 = smul.u32 2, %s21
      %p248 = scmp.lt.s32.totalorder %s247, 3
      %s249 = scalar_select %p248, %s247, 3
      %p250 = scmp.lt.s32.totalorder %s22, 0
      %s251 = scalar_select %p250, %s22, 0
      %s252 = sadd.s32 %s251, %s249
      %s253 = smul.addr %s252, 4
      %s254 = scalar_lea.vmem %s2, %s253
      %p255 = pneg %p142
      %p256 = pneg %p139
      %p257 = scmp.lt.s32.totalorder %s21, 1
      %s258 = scalar_select %p257, %s21, 1
      %p259 = scmp.lt.s32.totalorder %s22, 0
      %s260 = scalar_select %p259, %s22, 0
      %s261 = sadd.s32 %s260, %s258
      %s262 = smul.addr %s261, 8
      %s263 = scalar_lea.vmem %s3, %s262
      %p264 = pneg %p170
      %p265 = pneg %p167
      %p266 = scmp.lt.s32.totalorder %s21, 1
      %s267 = scalar_select %p266, %s21, 1
      %p268 = scmp.lt.s32.totalorder %s22, 0
      %s269 = scalar_select %p268, %s22, 0
      %s270 = sadd.s32 %s269, %s267
      %s271 = smul.addr %s270, 8
      %s272 = scalar_lea.vmem %s4, %s271
      %s273 = smul.u32 2, %s21
      %s274 = smul.u32 2, %s23
      %p275 = scmp.lt.s32.totalorder %s273, 3
      %s276 = scalar_select %p275, %s273, 3
      %p277 = scmp.lt.s32.totalorder %s274, 1
      %s278 = scalar_select %p277, %s274, 1
      %s279 = smul.addr %s276, 2
      %s280 = sadd.s32 %s278, %s279
      %s281 = smul.addr %s280, 4
      %s282 = scalar_lea.vmem %s0, %s281
      %s283 = smul.u32 2, %s21
      %s284 = smul.u32 2, %s23
      %s285 = smul.u32 32, %s23
      %p286 = scmp.lt.s32.totalorder %s285, 31
      %s287 = scalar_select %p286, %s285, 31
      %p288 = scmp.lt.s32.totalorder %s22, 0
      %s289 = scalar_select %p288, %s22, 0
      %s290 = sadd.s32 %s289, %s287
      %s291 = smul.addr %s290, 4
      %s292 = scalar_lea.vmem %s1, %s291
      %s293 = smul.u32 32, %s23
      %s294 = smul.u32 2, %s21
      %p295 = scmp.lt.s32.totalorder %s294, 3
      %s296 = scalar_select %p295, %s294, 3
      %p297 = scmp.lt.s32.totalorder %s22, 0
      %s298 = scalar_select %p297, %s22, 0
      %s299 = sadd.s32 %s298, %s296
      %s300 = smul.addr %s299, 4
      %s301 = scalar_lea.vmem %s2, %s300
      %s302 = smul.u32 2, %s21
      %p303 = scmp.lt.s32.totalorder %s21, 1
      %s304 = scalar_select %p303, %s21, 1
      %p305 = scmp.lt.s32.totalorder %s22, 0
      %s306 = scalar_select %p305, %s22, 0
      %s307 = sadd.s32 %s306, %s304
      %s308 = smul.addr %s307, 8
      %s309 = scalar_lea.vmem %s3, %s308
      %p310 = scmp.lt.s32.totalorder %s21, 1
      %s311 = scalar_select %p310, %s21, 1
      %p312 = scmp.lt.s32.totalorder %s22, 0
      %s313 = scalar_select %p312, %s22, 0
      %s314 = sadd.s32 %s313, %s311
      %s315 = smul.addr %s314, 8
      %s316 = scalar_lea.vmem %s4, %s315
      %p318 = scmp.eq.s32.totalorder %s23, 0
      // Predicated region
      $region29: #{nlayer_discriminator_forward.11} parent=27 // pred_check
        %p319 = pneg %p318
      $region30: #{nlayer_discriminator_forward.11} parent=27 // pred_check_branch
        %321 = sbr.rel (%p319) target = $region32
      $region31: #{nlayer_discriminator_forward.11} parent=27 // pred_region
        %322 = vst [vmem:[#allocation2] sm:$0xff] 0.0
        %323 = vst [vmem:[#allocation2 + $0x8] sm:$0xff] 0.0
      $region32: #{nlayer_discriminator_forward.11} parent=27 // pred_fallthru
        _
      %v324 = vld [vmem:[#allocation2] sm:$0xff]
      %v325 = vld [vmem:[#allocation2 + $0x8] sm:$0xff]
      %v326 = vld [vmem:[%s282] sm:$0xff]
      %v327 = vld [vmem:[%s282 + $0x8] sm:$0xff]
      %v328 = vld [vmem:[%s292] sm:$0xf]
      %v329 = vld [vmem:[%s292 + $0x4] sm:$0xf]
      %v330 = vld [vmem:[%s292 + $0x8] sm:$0xf]
      %v331 = vld [vmem:[%s292 + $0xc] sm:$0xf]
      %v332 = vld [vmem:[%s292 + $0x10] sm:$0xf]
      %v333 = vld [vmem:[%s292 + $0x14] sm:$0xf]
      %v334 = vld [vmem:[%s292 + $0x18] sm:$0xf]
      %v335 = vld [vmem:[%s292 + $0x1c] sm:$0xf]
      %v336 = vld [vmem:[%s292 + $0x20] sm:$0xf]
      %v337 = vld [vmem:[%s292 + $0x24] sm:$0xf]
      %v338 = vld [vmem:[%s292 + $0x28] sm:$0xf]
      %v339 = vld [vmem:[%s292 + $0x2c] sm:$0xf]
      %v340 = vld [vmem:[%s292 + $0x30] sm:$0xf]
      %v341 = vld [vmem:[%s292 + $0x34] sm:$0xf]
      %v342 = vld [vmem:[%s292 + $0x38] sm:$0xf]
      %v343 = vld [vmem:[%s292 + $0x3c] sm:$0xf]
      %v344 = vld [vmem:[%s292 + $0x40] sm:$0xf]
      %v345 = vld [vmem:[%s292 + $0x44] sm:$0xf]
      %v346 = vld [vmem:[%s292 + $0x48] sm:$0xf]
      %v347 = vld [vmem:[%s292 + $0x4c] sm:$0xf]
      %v348 = vld [vmem:[%s292 + $0x50] sm:$0xf]
      %v349 = vld [vmem:[%s292 + $0x54] sm:$0xf]
      %v350 = vld [vmem:[%s292 + $0x58] sm:$0xf]
      %v351 = vld [vmem:[%s292 + $0x5c] sm:$0xf]
      %v352 = vld [vmem:[%s292 + $0x60] sm:$0xf]
      %v353 = vld [vmem:[%s292 + $0x64] sm:$0xf]
      %v354 = vld [vmem:[%s292 + $0x68] sm:$0xf]
      %v355 = vld [vmem:[%s292 + $0x6c] sm:$0xf]
      %v356 = vld [vmem:[%s292 + $0x70] sm:$0xf]
      %v357 = vld [vmem:[%s292 + $0x74] sm:$0xf]
      %v358 = vld [vmem:[%s292 + $0x78] sm:$0xf]
      %v359 = vld [vmem:[%s292 + $0x7c] sm:$0xf]
      %v362 = vunpack.c.l.b16 %v326
      %v363 = vunpack.c.h.b16 %v326
      %v364 = vunpack.c.l.b16 %v327
      %v365 = vunpack.c.h.b16 %v327
      %v366 = vpack.c.b16 %v364, %v362
      %v367 = vpack.c.b16 %v365, %v363
      %v402 = vunpack.c.l.b16 %v328
      %v403 = vunpack.c.l.b16 %v329
      %v404 = vunpack.c.l.b16 %v330
      %v405 = vunpack.c.l.b16 %v331
      %v406 = vunpack.c.l.b16 %v332
      %v407 = vunpack.c.l.b16 %v333
      %v408 = vunpack.c.l.b16 %v334
      %v409 = vunpack.c.l.b16 %v335
      %v410 = vunpack.c.l.b16 %v336
      %v411 = vunpack.c.l.b16 %v337
      %v412 = vunpack.c.l.b16 %v338
      %v413 = vunpack.c.l.b16 %v339
      %v414 = vunpack.c.l.b16 %v340
      %v415 = vunpack.c.l.b16 %v341
      %v416 = vunpack.c.l.b16 %v342
      %v417 = vunpack.c.l.b16 %v343
      %v418 = vunpack.c.l.b16 %v344
      %v419 = vunpack.c.l.b16 %v345
      %v420 = vunpack.c.l.b16 %v346
      %v421 = vunpack.c.l.b16 %v347
      %v422 = vunpack.c.l.b16 %v348
      %v423 = vunpack.c.l.b16 %v349
      %v424 = vunpack.c.l.b16 %v350
      %v425 = vunpack.c.l.b16 %v351
      %v426 = vunpack.c.l.b16 %v352
      %v427 = vunpack.c.l.b16 %v353
      %v428 = vunpack.c.l.b16 %v354
      %v429 = vunpack.c.l.b16 %v355
      %v430 = vunpack.c.l.b16 %v356
      %v431 = vunpack.c.l.b16 %v357
      %v432 = vunpack.c.l.b16 %v358
      %v433 = vunpack.c.l.b16 %v359
      %v434 = vpack.c.b16 %v403, %v402
      %v435 = vpack.c.b16 %v405, %v404
      %v436 = vpack.c.b16 %v407, %v406
      %v437 = vpack.c.b16 %v409, %v408
      %v438 = vpack.c.b16 %v411, %v410
      %v439 = vpack.c.b16 %v413, %v412
      %v440 = vpack.c.b16 %v415, %v414
      %v441 = vpack.c.b16 %v417, %v416
      %v442 = vpack.c.b16 %v419, %v418
      %v443 = vpack.c.b16 %v421, %v420
      %v444 = vpack.c.b16 %v423, %v422
      %v445 = vpack.c.b16 %v425, %v424
      %v446 = vpack.c.b16 %v427, %v426
      %v447 = vpack.c.b16 %v429, %v428
      %v448 = vpack.c.b16 %v431, %v430
      %v449 = vpack.c.b16 %v433, %v432
      %466 = vmatprep.subr.bf16.mxu0 0
      %467 = vmatpush1.bf16.msra.mxu0 %v441
      %468 = vmatprep.subr.bf16.mxu0 0
      %469 = vmatpush1.bf16.msra.mxu0 %v440
      %470 = vmatprep.subr.bf16.mxu0 0
      %471 = vmatpush1.bf16.msra.mxu0 %v439
      %472 = vmatprep.subr.bf16.mxu0 0
      %473 = vmatpush1.bf16.msra.mxu0 %v438
      %474 = vmatprep.subr.bf16.mxu0 0
      %475 = vmatpush1.bf16.msra.mxu0 %v437
      %476 = vmatprep.subr.bf16.mxu0 0
      %477 = vmatpush1.bf16.msra.mxu0 %v436
      %478 = vmatprep.subr.bf16.mxu0 0
      %479 = vmatpush1.bf16.msra.mxu0 %v435
      %480 = vmatprep.subr.bf16.mxu0 0
      %481 = vmatpush1.bf16.msra.mxu0 %v434
      %482 = vmatprep.subr.bf16.mxu0 0
      %483 = vmatpush2.bf16.msra.mxu0 %v449
      %484 = vmatprep.subr.bf16.mxu0 0
      %485 = vmatpush2.bf16.msra.mxu0 %v448
      %486 = vmatprep.subr.bf16.mxu0 0
      %487 = vmatpush2.bf16.msra.mxu0 %v447
      %488 = vmatprep.subr.bf16.mxu0 0
      %489 = vmatpush2.bf16.msra.mxu0 %v446
      %490 = vmatprep.subr.bf16.mxu0 0
      %491 = vmatpush2.bf16.msra.mxu0 %v445
      %492 = vmatprep.subr.bf16.mxu0 0
      %493 = vmatpush2.bf16.msra.mxu0 %v444
      %494 = vmatprep.subr.bf16.mxu0 0
      %495 = vmatpush2.bf16.msra.mxu0 %v443
      %496 = vmatprep.subr.bf16.mxu0 0
      %497 = vmatpush2.bf16.msra.mxu0 %v442
      %498 = vmatprep.mubr.bf16.mxu0 %v367
      %499 = vmatmul.mubr.bf16.gmra.mxu0 %v366
      %v500 = vpop.f32.mrf.mxu0
      %v501 = vadd.f32 0.0, %v500
      %v502 = vpop.f32.mrf.mxu0
      %v503 = vpop.f32.mrf.mxu0
      %v504 = vadd.f32 0.0, %v503
      %v505 = vpop.f32.mrf.mxu0
      %506 = vdwg.mxu0
      %v507 = vadd.f32 %v324, %v501
      %v508 = vadd.f32 %v325, %v504
      %509 = vst [vmem:[#allocation2] sm:$0xff] %v507
      %510 = vst [vmem:[#allocation2 + $0x8] sm:$0xff] %v508
      // Predicated region
      $region33: #{nlayer_discriminator_forward.11} parent=27 // pred_check
        %p511 = pneg %p318
      $region34: #{nlayer_discriminator_forward.11} parent=27 // pred_check_branch
        %513 = sbr.rel (%p511) target = $region36
      $region35: #{nlayer_discriminator_forward.11} parent=27 // pred_region
        %v514 = vld [vmem:[#allocation2] sm:$0xff]
        %v515 = vld [vmem:[#allocation2 + $0x8] sm:$0xff]
        %v516 = vadd.f32 %v514, %v515
        %v517 = vrot.slane %v516, 4
        %v518 = vadd.f32 %v516, %v517
        %v519 = vrot.slane %v518, 2
        %v520 = vadd.f32 %v518, %v519
        %v521 = vrot.slane %v520, 1
        %v522 = vadd.f32 %v520, %v521
        %523 = vst [vmem:[%s309] sm:$0xff] %v522
        %v524 = vmul.f32 %v514, %v514
        %v525 = vmul.f32 %v515, %v515
        %v526 = vadd.f32 %v524, %v525
        %v527 = vrot.slane %v526, 4
        %v528 = vadd.f32 %v526, %v527
        %v529 = vrot.slane %v528, 2
        %v530 = vadd.f32 %v528, %v529
        %v531 = vrot.slane %v530, 1
        %v532 = vadd.f32 %v530, %v531
        %533 = vst [vmem:[%s316] sm:$0xff] %v532
        %v534 = vpack.c.bf16 %v515, %v514
        %v536 = vunpack.c.l.b16 %v534
        %v537 = vunpack.c.h.b16 %v534
        %v538 = vpack.c.b16 %v536, %v536
        %v539 = vpack.c.b16 %v537, %v537
        %542 = vst [vmem:[%s301] sm:$0xf] %v538
        %543 = vst [vmem:[%s301 + $0x4] sm:$0xf] %v539
      $region36: #{nlayer_discriminator_forward.11} parent=27 // pred_fallthru
        _
      %s544 = smul.u32 2, %s21
      %p545 = scmp.lt.s32.totalorder %s544, 3
      %s546 = scalar_select %p545, %s544, 3
      %p547 = scmp.lt.s32.totalorder %s22, 0
      %s548 = scalar_select %p547, %s22, 0
      %s549 = sadd.s32 %s548, %s546
      %s550 = smul.addr %s549, 4
      %s551 = scalar_lea.vmem %s2, %s550
      %p552 = scmp.lt.s32.totalorder %s21, 1
      %s553 = scalar_select %p552, %s21, 1
      %p554 = scmp.lt.s32.totalorder %s22, 0
      %s555 = scalar_select %p554, %s22, 0
      %s556 = sadd.s32 %s555, %s553
      %s557 = smul.addr %s556, 8
      %s558 = scalar_lea.vmem %s3, %s557
      %p559 = scmp.lt.s32.totalorder %s21, 1
      %s560 = scalar_select %p559, %s21, 1
      %p561 = scmp.lt.s32.totalorder %s22, 0
      %s562 = scalar_select %p561, %s22, 0
      %s563 = sadd.s32 %s562, %s560
      %s564 = smul.addr %s563, 8
      %s565 = scalar_lea.vmem %s4, %s564
      // Predicated region
      $region37: #{nlayer_discriminator_forward.11} parent=27 // pred_check
        %p566 = pneg %p111
      $region38: #{nlayer_discriminator_forward.11} parent=27 // pred_check_branch
        %568 = sbr.rel (%p566) target = $region40
      $region39: #{nlayer_discriminator_forward.11} parent=27 // pred_region
        %s569 = smul.u32 2, %s21
      $region40: #{nlayer_discriminator_forward.11} parent=27 // pred_fallthru
        _
      // Predicated region
      $region41: #{nlayer_discriminator_forward.11} parent=27 // pred_check
        %p570 = pneg %p139
      $region42: #{nlayer_discriminator_forward.11} parent=27 // pred_check_branch
        %572 = sbr.rel (%p570) target = $region44
      $region43: #{nlayer_discriminator_forward.11} parent=27 // pred_region
        _
      $region44: #{nlayer_discriminator_forward.11} parent=27 // pred_fallthru
        _
      // Predicated region
      $region45: #{nlayer_discriminator_forward.11} parent=27 // pred_check
        %p573 = pneg %p167
      $region46: #{nlayer_discriminator_forward.11} parent=27 // pred_check_branch
        %575 = sbr.rel (%p573) target = $region48
      $region47: #{nlayer_discriminator_forward.11} parent=27 // pred_region
        _
      $region48: #{nlayer_discriminator_forward.11} parent=27 // pred_fallthru
        _
    $region28: #{nlayer_discriminator_forward.11} parent=5 // pred_fallthru
      _
    %p576 = scmp.le.s32.totalorder 2, %s11
    // Predicated region
    $region49: #{nlayer_discriminator_forward.11} parent=5 // pred_check
      %p577 = pneg %p576
    $region50: #{nlayer_discriminator_forward.11} parent=5 // pred_check_branch
      %579 = sbr.rel (%p577) target = $region52
    $region51: #{nlayer_discriminator_forward.11} parent=5 // pred_region
      %s580 = ssub.s32 %s11, 2
      // Predicated region
      $region53: #{nlayer_discriminator_forward.11} parent=51 // pred_check
        %p581 = pneg %p117
      $region54: #{nlayer_discriminator_forward.11} parent=51 // pred_check_branch
        %583 = sbr.rel (%p581) target = $region56
      $region55: #{nlayer_discriminator_forward.11} parent=51 // pred_region
        %s584 = smul.u32 2, %s24
        %p585 = scmp.lt.s32.totalorder %s584, 3
        %s586 = scalar_select %p585, %s584, 3
        %p587 = scmp.lt.s32.totalorder %s25, 0
        %s588 = scalar_select %p587, %s25, 0
        %s589 = sadd.s32 %s588, %s586
        %s590 = smul.addr %s589, 4
        %s591 = scalar_lea.vmem %s2, %s590
      $region56: #{nlayer_discriminator_forward.11} parent=51 // pred_fallthru
        _
      // Predicated region
      $region57: #{nlayer_discriminator_forward.11} parent=51 // pred_check
        %p592 = pneg %p145
      $region58: #{nlayer_discriminator_forward.11} parent=51 // pred_check_branch
        %594 = sbr.rel (%p592) target = $region60
      $region59: #{nlayer_discriminator_forward.11} parent=51 // pred_region
        %p595 = scmp.lt.s32.totalorder %s24, 1
        %s596 = scalar_select %p595, %s24, 1
        %p597 = scmp.lt.s32.totalorder %s25, 0
        %s598 = scalar_select %p597, %s25, 0
        %s599 = sadd.s32 %s598, %s596
        %s600 = smul.addr %s599, 8
        %s601 = scalar_lea.vmem %s3, %s600
      $region60: #{nlayer_discriminator_forward.11} parent=51 // pred_fallthru
        _
      // Predicated region
      $region61: #{nlayer_discriminator_forward.11} parent=51 // pred_check
        %p602 = pneg %p173
      $region62: #{nlayer_discriminator_forward.11} parent=51 // pred_check_branch
        %604 = sbr.rel (%p602) target = $region64
      $region63: #{nlayer_discriminator_forward.11} parent=51 // pred_region
        %p605 = scmp.lt.s32.totalorder %s24, 1
        %s606 = scalar_select %p605, %s24, 1
        %p607 = scmp.lt.s32.totalorder %s25, 0
        %s608 = scalar_select %p607, %s25, 0
        %s609 = sadd.s32 %s608, %s606
        %s610 = smul.addr %s609, 8
        %s611 = scalar_lea.vmem %s4, %s610
      $region64: #{nlayer_discriminator_forward.11} parent=51 // pred_fallthru
        _
    $region52: #{nlayer_discriminator_forward.11} parent=5 // pred_fallthru
      _
  $region6: #{nlayer_discriminator_forward.11} parent=0 // loop_footer
    %s15 = sadd.s32 1, %s11
  $region7: #{nlayer_discriminator_forward.11} parent=0 // loop_footer_branch
    %10 = sbr.rel target = $region3
  $region8: #{nlayer_discriminator_forward.11} parent=0 // loop_exit
    _

// kernel: nlayer_discriminator_forward.13
$region0: #{nlayer_discriminator_forward.13}
  #allocation0 [shape = 'u32[]', space=smem, size = 0x4, offset = 0x4, fixed_abs, tag = 'smem constant byte address 0x4 - core index']
  #allocation1 [shape = 'u32[144,128]{1,0:T(1,128)}', space=vmem, size = 0x12000, scoped, tag = 'internal scratch']
  #allocation2 [shape = 'f32[16,128]{1,0:T(8,128)}', space=vmem, size = 0x2000, scoped, tag = 'scratch operand']
  %s0 = inlined_call_operand.vmem [shape: bf16[32,512], index: 0, kind: input, shape index: {}]
  %s1 = inlined_call_operand.vmem [shape: bf16[512,128], index: 1, kind: input, shape index: {}]
  %s2 = inlined_call_operand.vmem [shape: bf16[32,128], index: 2, kind: output, shape index: {0}]
  %s3 = inlined_call_operand.vmem [shape: f32[16,128], index: 3, kind: output, shape index: {1}]
  %s4 = inlined_call_operand.vmem [shape: f32[16,128], index: 4, kind: output, shape index: {2}]
  %5 = xla_tuple %s2, %s3, %s4
  %s6 = sld [smem:[#allocation0]]
  $region65: #{nlayer_discriminator_forward.13} parent=0
    _
  %s8 = ssub.s32 1, %s6
  %s9 = scalar_select 0, %s8, %s6
  loop: start=0, step=1, limit=4
  $region2: #{nlayer_discriminator_forward.13} parent=0 // loop_pre_header
    _
  $region3: #{nlayer_discriminator_forward.13} parent=0 // loop_header
    %s11 = sphi 0, %s15
    %p12 = scmp.ge.s32.totalorder %s11, 4
    %s18 = sphi 0, %s37
    %s19 = sphi 0, %s33
    %s20 = sphi 0, %s29
    %s21 = sphi 0, %s18
    %s22 = sphi 0, %s19
    %s23 = sphi 0, %s20
    %s24 = sphi 0, %s21
    %s25 = sphi 0, %s22
    %s26 = sphi 0, %s23
    %s42 = sphi 0, %s44
    %s45 = sphi 0, %s42
    %s46 = sphi 0, %s45
    %s62 = sphi 0, %s46
    %s70 = sphi 0, %s72
    %s73 = sphi 0, %s70
    %s74 = sphi 0, %s73
    %s90 = sphi 0, %s74
    %s98 = sphi 0, %s100
    %s101 = sphi 0, %s98
    %s102 = sphi 0, %s101
    %s118 = sphi 0, %s102
    %s126 = sphi 0, %s128
    %s129 = sphi 0, %s126
    %s130 = sphi 0, %s129
    %s146 = sphi 0, %s130
    %s154 = sphi 0, %s156
    %s157 = sphi 0, %s154
    %s158 = sphi 0, %s157
    %s174 = sphi 0, %s158
  $region4: #{nlayer_discriminator_forward.13} parent=0 // loop_header_branch
    %14 = sbr.rel (%p12) target = $region8
  $region5: #{nlayer_discriminator_forward.13} parent=0 // loop_body
    %s16 = ssub.s32 %s11, 1
    %s17 = ssub.s32 %s11, 2
    %s27 = sadd.s32 1, %s20
    %p28 = scmp.ge.s32.totalorder %s27, 1
    %s29 = scalar_select %p28, 0, %s27
    %s30 = sadd.s32 1, %s19
    %s31 = scalar_select %p28, %s30, %s19
    %p32 = scmp.ge.s32.totalorder %s31, 1
    %s33 = scalar_select %p32, 0, %s31
    %s34 = sadd.s32 1, %s18
    %s35 = scalar_select %p32, %s34, %s18
    %p36 = scmp.ge.s32.totalorder %s35, 2
    %s37 = scalar_select %p36, 0, %s35
    %s38 = ssub.s32 %s18, %s37
    %s39 = ssub.s32 %s20, %s29
    %s40 = sor.u32 %s38, %s39
    %p41 = scmp.eq.s32.totalorder %s40, 0
    %s43 = sadd.s32 %s42, 1
    %s44 = scalar_select %p41, %s42, %s43
    %p47 = pneg %p41
    %p48 = scmp.eq.s32.totalorder %s11, 1
    %p49 = por %p47, %p48
    %p50 = scmp.ne.s32.totalorder %s42, %s45
    %p51 = scmp.eq.s32.totalorder %s11, 0
    %p52 = por %p50, %p51
    %p53 = scmp.ne.s32.totalorder %s42, %s45
    %p54 = scmp.eq.s32.totalorder %s16, 1
    %p55 = por %p53, %p54
    %p56 = scmp.ne.s32.totalorder %s45, %s46
    %p57 = scmp.eq.s32.totalorder %s16, 0
    %p58 = por %p56, %p57
    %p59 = scmp.ne.s32.totalorder %s45, %s46
    %p60 = scmp.eq.s32.totalorder %s17, 1
    %p61 = por %p59, %p60
    %p63 = scmp.ne.s32.totalorder %s46, %s62
    %p64 = scmp.eq.s32.totalorder %s17, 0
    %p65 = por %p63, %p64
    %s66 = ssub.s32 %s20, %s29
    %s67 = ssub.s32 %s19, %s33
    %s68 = sor.u32 %s66, %s67
    %p69 = scmp.eq.s32.totalorder %s68, 0
    %s71 = sadd.s32 %s70, 1
    %s72 = scalar_select %p69, %s70, %s71
    %p75 = pneg %p69
    %p76 = scmp.eq.s32.totalorder %s11, 1
    %p77 = por %p75, %p76
    %p78 = scmp.ne.s32.totalorder %s70, %s73
    %p79 = scmp.eq.s32.totalorder %s11, 0
    %p80 = por %p78, %p79
    %p81 = scmp.ne.s32.totalorder %s70, %s73
    %p82 = scmp.eq.s32.totalorder %s16, 1
    %p83 = por %p81, %p82
    %p84 = scmp.ne.s32.totalorder %s73, %s74
    %p85 = scmp.eq.s32.totalorder %s16, 0
    %p86 = por %p84, %p85
    %p87 = scmp.ne.s32.totalorder %s73, %s74
    %p88 = scmp.eq.s32.totalorder %s17, 1
    %p89 = por %p87, %p88
    %p91 = scmp.ne.s32.totalorder %s74, %s90
    %p92 = scmp.eq.s32.totalorder %s17, 0
    %p93 = por %p91, %p92
    %s94 = ssub.s32 %s18, %s37
    %s95 = ssub.s32 %s19, %s33
    %s96 = sor.u32 %s94, %s95
    %p97 = scmp.eq.s32.totalorder %s96, 0
    %s99 = sadd.s32 %s98, 1
    %s100 = scalar_select %p97, %s98, %s99
    %p103 = pneg %p97
    %p104 = scmp.eq.s32.totalorder %s11, 1
    %p105 = por %p103, %p104
    %p106 = scmp.ne.s32.totalorder %s98, %s101
    %p107 = scmp.eq.s32.totalorder %s11, 0
    %p108 = por %p106, %p107
    %p109 = scmp.ne.s32.totalorder %s98, %s101
    %p110 = scmp.eq.s32.totalorder %s16, 1
    %p111 = por %p109, %p110
    %p112 = scmp.ne.s32.totalorder %s101, %s102
    %p113 = scmp.eq.s32.totalorder %s16, 0
    %p114 = por %p112, %p113
    %p115 = scmp.ne.s32.totalorder %s101, %s102
    %p116 = scmp.eq.s32.totalorder %s17, 1
    %p117 = por %p115, %p116
    %p119 = scmp.ne.s32.totalorder %s102, %s118
    %p120 = scmp.eq.s32.totalorder %s17, 0
    %p121 = por %p119, %p120
    %s122 = ssub.s32 %s18, %s37
    %s123 = ssub.s32 %s19, %s33
    %s124 = sor.u32 %s122, %s123
    %p125 = scmp.eq.s32.totalorder %s124, 0
    %s127 = sadd.s32 %s126, 1
    %s128 = scalar_select %p125, %s126, %s127
    %p131 = pneg %p125
    %p132 = scmp.eq.s32.totalorder %s11, 1
    %p133 = por %p131, %p132
    %p134 = scmp.ne.s32.totalorder %s126, %s129
    %p135 = scmp.eq.s32.totalorder %s11, 0
    %p136 = por %p134, %p135
    %p137 = scmp.ne.s32.totalorder %s126, %s129
    %p138 = scmp.eq.s32.totalorder %s16, 1
    %p139 = por %p137, %p138
    %p140 = scmp.ne.s32.totalorder %s129, %s130
    %p141 = scmp.eq.s32.totalorder %s16, 0
    %p142 = por %p140, %p141
    %p143 = scmp.ne.s32.totalorder %s129, %s130
    %p144 = scmp.eq.s32.totalorder %s17, 1
    %p145 = por %p143, %p144
    %p147 = scmp.ne.s32.totalorder %s130, %s146
    %p148 = scmp.eq.s32.totalorder %s17, 0
    %p149 = por %p147, %p148
    %s150 = ssub.s32 %s18, %s37
    %s151 = ssub.s32 %s19, %s33
    %s152 = sor.u32 %s150, %s151
    %p153 = scmp.eq.s32.totalorder %s152, 0
    %s155 = sadd.s32 %s154, 1
    %s156 = scalar_select %p153, %s154, %s155
    %p159 = pneg %p153
    %p160 = scmp.eq.s32.totalorder %s11, 1
    %p161 = por %p159, %p160
    %p162 = scmp.ne.s32.totalorder %s154, %s157
    %p163 = scmp.eq.s32.totalorder %s11, 0
    %p164 = por %p162, %p163
    %p165 = scmp.ne.s32.totalorder %s154, %s157
    %p166 = scmp.eq.s32.totalorder %s16, 1
    %p167 = por %p165, %p166
    %p168 = scmp.ne.s32.totalorder %s157, %s158
    %p169 = scmp.eq.s32.totalorder %s16, 0
    %p170 = por %p168, %p169
    %p171 = scmp.ne.s32.totalorder %s157, %s158
    %p172 = scmp.eq.s32.totalorder %s17, 1
    %p173 = por %p171, %p172
    %p175 = scmp.ne.s32.totalorder %s158, %s174
    %p176 = scmp.eq.s32.totalorder %s17, 0
    %p177 = por %p175, %p176
    %p178 = scmp.le.s32.totalorder 1, %s11
    %p179 = scmp.lt.s32.totalorder %s11, 3
    %p180 = pnand %p178, %p179
    %p181 = pneg %p180
    // Predicated region
    $region9: #{nlayer_discriminator_forward.13} parent=5 // pred_check
      _
    $region10: #{nlayer_discriminator_forward.13} parent=5 // pred_check_branch
      %183 = sbr.rel (%p180) target = $region12
    $region11: #{nlayer_discriminator_forward.13} parent=5 // pred_region
      %s184 = ssub.s32 %s11, 1
      // Predicated region
      $region13: #{nlayer_discriminator_forward.13} parent=11 // pred_check
        %p185 = pneg %p86
      $region14: #{nlayer_discriminator_forward.13} parent=11 // pred_check_branch
        %187 = sbr.rel (%p185) target = $region16
      $region15: #{nlayer_discriminator_forward.13} parent=11 // pred_region
        %s188 = smul.u32 64, %s23
        %p189 = scmp.lt.s32.totalorder %s188, 63
        %s190 = scalar_select %p189, %s188, 63
        %p191 = scmp.lt.s32.totalorder %s22, 0
        %s192 = scalar_select %p191, %s22, 0
        %s193 = sadd.s32 %s192, %s190
        %s194 = smul.addr %s193, 4
        %s195 = scalar_lea.vmem %s1, %s194
        %s196 = smul.u32 64, %s23
      $region16: #{nlayer_discriminator_forward.13} parent=11 // pred_fallthru
        _
    $region12: #{nlayer_discriminator_forward.13} parent=5 // pred_fallthru
      _
    %p197 = scmp.lt.s32.totalorder %s11, 2
    // Predicated region
    $region17: #{nlayer_discriminator_forward.13} parent=5 // pred_check
      %p198 = pneg %p197
    $region18: #{nlayer_discriminator_forward.13} parent=5 // pred_check_branch
      %200 = sbr.rel (%p198) target = $region20
    $region19: #{nlayer_discriminator_forward.13} parent=5 // pred_region
      // Predicated region
      $region21: #{nlayer_discriminator_forward.13} parent=19 // pred_check
        %p201 = pneg %p52
      $region22: #{nlayer_discriminator_forward.13} parent=19 // pred_check_branch
        %203 = sbr.rel (%p201) target = $region24
      $region23: #{nlayer_discriminator_forward.13} parent=19 // pred_region
        %s204 = smul.u32 2, %s18
        %s205 = smul.u32 4, %s20
        %p206 = scmp.lt.s32.totalorder %s204, 3
        %s207 = scalar_select %p206, %s204, 3
        %p208 = scmp.lt.s32.totalorder %s205, 3
        %s209 = scalar_select %p208, %s205, 3
        %s210 = smul.addr %s207, 4
        %s211 = sadd.s32 %s209, %s210
        %s212 = smul.addr %s211, 4
        %s213 = scalar_lea.vmem %s0, %s212
        %s214 = smul.u32 2, %s18
        %s215 = smul.u32 4, %s20
      $region24: #{nlayer_discriminator_forward.13} parent=19 // pred_fallthru
        _
    $region20: #{nlayer_discriminator_forward.13} parent=5 // pred_fallthru
      _
    %p216 = scmp.le.s32.totalorder 1, %s11
    %p217 = scmp.lt.s32.totalorder %s11, 3
    %p218 = pnand %p216, %p217
    %p219 = pneg %p218
    // Predicated region
    $region25: #{nlayer_discriminator_forward.13} parent=5 // pred_check
      _
    $region26: #{nlayer_discriminator_forward.13} parent=5 // pred_check_branch
      %221 = sbr.rel (%p218) target = $region28
    $region27: #{nlayer_discriminator_forward.13} parent=5 // pred_region
      %s222 = ssub.s32 %s11, 1
      %s223 = smul.u32 2, %s21
      %s224 = smul.u32 4, %s23
      %p225 = scmp.lt.s32.totalorder %s223, 3
      %s226 = scalar_select %p225, %s223, 3
      %p227 = scmp.lt.s32.totalorder %s224, 3
      %s228 = scalar_select %p227, %s224, 3
      %s229 = smul.addr %s226, 4
      %s230 = sadd.s32 %s228, %s229
      %s231 = smul.addr %s230, 4
      %s232 = scalar_lea.vmem %s0, %s231
      %p233 = pneg %p58
      %p234 = pneg %p55
      %s235 = smul.u32 64, %s23
      %p236 = scmp.lt.s32.totalorder %s235, 63
      %s237 = scalar_select %p236, %s235, 63
      %p238 = scmp.lt.s32.totalorder %s22, 0
      %s239 = scalar_select %p238, %s22, 0
      %s240 = sadd.s32 %s239, %s237
      %s241 = smul.addr %s240, 4
      %s242 = scalar_lea.vmem %s1, %s241
      %p243 = pneg %p86
      %p244 = pneg %p83
      %p245 = pneg %p114
      %p246 = pneg %p111
      %s247 = smul.u32 2, %s21
      %p248 = scmp.lt.s32.totalorder %s247, 3
      %s249 = scalar_select %p248, %s247, 3
      %p250 = scmp.lt.s32.totalorder %s22, 0
      %s251 = scalar_select %p250, %s22, 0
      %s252 = sadd.s32 %s251, %s249
      %s253 = smul.addr %s252, 4
      %s254 = scalar_lea.vmem %s2, %s253
      %p255 = pneg %p142
      %p256 = pneg %p139
      %p257 = scmp.lt.s32.totalorder %s21, 1
      %s258 = scalar_select %p257, %s21, 1
      %p259 = scmp.lt.s32.totalorder %s22, 0
      %s260 = scalar_select %p259, %s22, 0
      %s261 = sadd.s32 %s260, %s258
      %s262 = smul.addr %s261, 8
      %s263 = scalar_lea.vmem %s3, %s262
      %p264 = pneg %p170
      %p265 = pneg %p167
      %p266 = scmp.lt.s32.totalorder %s21, 1
      %s267 = scalar_select %p266, %s21, 1
      %p268 = scmp.lt.s32.totalorder %s22, 0
      %s269 = scalar_select %p268, %s22, 0
      %s270 = sadd.s32 %s269, %s267
      %s271 = smul.addr %s270, 8
      %s272 = scalar_lea.vmem %s4, %s271
      %s273 = smul.u32 2, %s21
      %s274 = smul.u32 4, %s23
      %p275 = scmp.lt.s32.totalorder %s273, 3
      %s276 = scalar_select %p275, %s273, 3
      %p277 = scmp.lt.s32.totalorder %s274, 3
      %s278 = scalar_select %p277, %s274, 3
      %s279 = smul.addr %s276, 4
      %s280 = sadd.s32 %s278, %s279
      %s281 = smul.addr %s280, 4
      %s282 = scalar_lea.vmem %s0, %s281
      %s283 = smul.u32 2, %s21
      %s284 = smul.u32 4, %s23
      %s285 = smul.u32 64, %s23
      %p286 = scmp.lt.s32.totalorder %s285, 63
      %s287 = scalar_select %p286, %s285, 63
      %p288 = scmp.lt.s32.totalorder %s22, 0
      %s289 = scalar_select %p288, %s22, 0
      %s290 = sadd.s32 %s289, %s287
      %s291 = smul.addr %s290, 4
      %s292 = scalar_lea.vmem %s1, %s291
      %s293 = smul.u32 64, %s23
      %s294 = smul.u32 2, %s21
      %p295 = scmp.lt.s32.totalorder %s294, 3
      %s296 = scalar_select %p295, %s294, 3
      %p297 = scmp.lt.s32.totalorder %s22, 0
      %s298 = scalar_select %p297, %s22, 0
      %s299 = sadd.s32 %s298, %s296
      %s300 = smul.addr %s299, 4
      %s301 = scalar_lea.vmem %s2, %s300
      %s302 = smul.u32 2, %s21
      %p303 = scmp.lt.s32.totalorder %s21, 1
      %s304 = scalar_select %p303, %s21, 1
      %p305 = scmp.lt.s32.totalorder %s22, 0
      %s306 = scalar_select %p305, %s22, 0
      %s307 = sadd.s32 %s306, %s304
      %s308 = smul.addr %s307, 8
      %s309 = scalar_lea.vmem %s3, %s308
      %p310 = scmp.lt.s32.totalorder %s21, 1
      %s311 = scalar_select %p310, %s21, 1
      %p312 = scmp.lt.s32.totalorder %s22, 0
      %s313 = scalar_select %p312, %s22, 0
      %s314 = sadd.s32 %s313, %s311
      %s315 = smul.addr %s314, 8
      %s316 = scalar_lea.vmem %s4, %s315
      %p318 = scmp.eq.s32.totalorder %s23, 0
      // Predicated region
      $region29: #{nlayer_discriminator_forward.13} parent=27 // pred_check
        %p319 = pneg %p318
      $region30: #{nlayer_discriminator_forward.13} parent=27 // pred_check_branch
        %321 = sbr.rel (%p319) target = $region32
      $region31: #{nlayer_discriminator_forward.13} parent=27 // pred_region
        %322 = vst [vmem:[#allocation2] sm:$0xff] 0.0
        %323 = vst [vmem:[#allocation2 + $0x8] sm:$0xff] 0.0
      $region32: #{nlayer_discriminator_forward.13} parent=27 // pred_fallthru
        _
      %v324 = vld [vmem:[#allocation2] sm:$0xff]
      %v325 = vld [vmem:[#allocation2 + $0x8] sm:$0xff]
      %v326 = vld [vmem:[%s282] sm:$0xff]
      %v327 = vld [vmem:[%s282 + $0x8] sm:$0xff]
      %v328 = vld [vmem:[%s282 + $0x10] sm:$0xff]
      %v329 = vld [vmem:[%s282 + $0x18] sm:$0xff]
      %v330 = vld [vmem:[%s292] sm:$0xf]
      %v331 = vld [vmem:[%s292 + $0x4] sm:$0xf]
      %v332 = vld [vmem:[%s292 + $0x8] sm:$0xf]
      %v333 = vld [vmem:[%s292 + $0xc] sm:$0xf]
      %v334 = vld [vmem:[%s292 + $0x10] sm:$0xf]
      %v335 = vld [vmem:[%s292 + $0x14] sm:$0xf]
      %v336 = vld [vmem:[%s292 + $0x18] sm:$0xf]
      %v337 = vld [vmem:[%s292 + $0x1c] sm:$0xf]
      %v338 = vld [vmem:[%s292 + $0x20] sm:$0xf]
      %v339 = vld [vmem:[%s292 + $0x24] sm:$0xf]
      %v340 = vld [vmem:[%s292 + $0x28] sm:$0xf]
      %v341 = vld [vmem:[%s292 + $0x2c] sm:$0xf]
      %v342 = vld [vmem:[%s292 + $0x30] sm:$0xf]
      %v343 = vld [vmem:[%s292 + $0x34] sm:$0xf]
      %v344 = vld [vmem:[%s292 + $0x38] sm:$0xf]
      %v345 = vld [vmem:[%s292 + $0x3c] sm:$0xf]
      %v346 = vld [vmem:[%s292 + $0x40] sm:$0xf]
      %v347 = vld [vmem:[%s292 + $0x44] sm:$0xf]
      %v348 = vld [vmem:[%s292 + $0x48] sm:$0xf]
      %v349 = vld [vmem:[%s292 + $0x4c] sm:$0xf]
      %v350 = vld [vmem:[%s292 + $0x50] sm:$0xf]
      %v351 = vld [vmem:[%s292 + $0x54] sm:$0xf]
      %v352 = vld [vmem:[%s292 + $0x58] sm:$0xf]
      %v353 = vld [vmem:[%s292 + $0x5c] sm:$0xf]
      %v354 = vld [vmem:[%s292 + $0x60] sm:$0xf]
      %v355 = vld [vmem:[%s292 + $0x64] sm:$0xf]
      %v356 = vld [vmem:[%s292 + $0x68] sm:$0xf]
      %v357 = vld [vmem:[%s292 + $0x6c] sm:$0xf]
      %v358 = vld [vmem:[%s292 + $0x70] sm:$0xf]
      %v359 = vld [vmem:[%s292 + $0x74] sm:$0xf]
      %v360 = vld [vmem:[%s292 + $0x78] sm:$0xf]
      %v361 = vld [vmem:[%s292 + $0x7c] sm:$0xf]
      %v362 = vld [vmem:[%s292 + $0x80] sm:$0xf]
      %v363 = vld [vmem:[%s292 + $0x84] sm:$0xf]
      %v364 = vld [vmem:[%s292 + $0x88] sm:$0xf]
      %v365 = vld [vmem:[%s292 + $0x8c] sm:$0xf]
      %v366 = vld [vmem:[%s292 + $0x90] sm:$0xf]
      %v367 = vld [vmem:[%s292 + $0x94] sm:$0xf]
      %v368 = vld [vmem:[%s292 + $0x98] sm:$0xf]
      %v369 = vld [vmem:[%s292 + $0x9c] sm:$0xf]
      %v370 = vld [vmem:[%s292 + $0xa0] sm:$0xf]
      %v371 = vld [vmem:[%s292 + $0xa4] sm:$0xf]
      %v372 = vld [vmem:[%s292 + $0xa8] sm:$0xf]
      %v373 = vld [vmem:[%s292 + $0xac] sm:$0xf]
      %v374 = vld [vmem:[%s292 + $0xb0] sm:$0xf]
      %v375 = vld [vmem:[%s292 + $0xb4] sm:$0xf]
      %v376 = vld [vmem:[%s292 + $0xb8] sm:$0xf]
      %v377 = vld [vmem:[%s292 + $0xbc] sm:$0xf]
      %v378 = vld [vmem:[%s292 + $0xc0] sm:$0xf]
      %v379 = vld [vmem:[%s292 + $0xc4] sm:$0xf]
      %v380 = vld [vmem:[%s292 + $0xc8] sm:$0xf]
      %v381 = vld [vmem:[%s292 + $0xcc] sm:$0xf]
      %v382 = vld [vmem:[%s292 + $0xd0] sm:$0xf]
      %v383 = vld [vmem:[%s292 + $0xd4] sm:$0xf]
      %v384 = vld [vmem:[%s292 + $0xd8] sm:$0xf]
      %v385 = vld [vmem:[%s292 + $0xdc] sm:$0xf]
      %v386 = vld [vmem:[%s292 + $0xe0] sm:$0xf]
      %v387 = vld [vmem:[%s292 + $0xe4] sm:$0xf]
      %v388 = vld [vmem:[%s292 + $0xe8] sm:$0xf]
      %v389 = vld [vmem:[%s292 + $0xec] sm:$0xf]
      %v390 = vld [vmem:[%s292 + $0xf0] sm:$0xf]
      %v391 = vld [vmem:[%s292 + $0xf4] sm:$0xf]
      %v392 = vld [vmem:[%s292 + $0xf8] sm:$0xf]
      %v393 = vld [vmem:[%s292 + $0xfc] sm:$0xf]
      %v398 = vunpack.c.l.b16 %v326
      %v399 = vunpack.c.h.b16 %v326
      %v400 = vunpack.c.l.b16 %v327
      %v401 = vunpack.c.h.b16 %v327
      %v402 = vunpack.c.l.b16 %v328
      %v403 = vunpack.c.h.b16 %v328
      %v404 = vunpack.c.l.b16 %v329
      %v405 = vunpack.c.h.b16 %v329
      %v406 = vpack.c.b16 %v402, %v398
      %v407 = vpack.c.b16 %v403, %v399
      %v408 = vpack.c.b16 %v404, %v400
      %v409 = vpack.c.b16 %v405, %v401
      %v478 = vunpack.c.l.b16 %v330
      %v479 = vunpack.c.l.b16 %v331
      %v480 = vunpack.c.l.b16 %v332
      %v481 = vunpack.c.l.b16 %v333
      %v482 = vunpack.c.l.b16 %v334
      %v483 = vunpack.c.l.b16 %v335
      %v484 = vunpack.c.l.b16 %v336
      %v485 = vunpack.c.l.b16 %v337
      %v486 = vunpack.c.l.b16 %v338
      %v487 = vunpack.c.l.b16 %v339
      %v488 = vunpack.c.l.b16 %v340
      %v489 = vunpack.c.l.b16 %v341
      %v490 = vunpack.c.l.b16 %v342
      %v491 = vunpack.c.l.b16 %v343
      %v492 = vunpack.c.l.b16 %v344
      %v493 = vunpack.c.l.b16 %v345
      %v494 = vunpack.c.l.b16 %v346
      %v495 = vunpack.c.l.b16 %v347
      %v496 = vunpack.c.l.b16 %v348
      %v497 = vunpack.c.l.b16 %v349
      %v498 = vunpack.c.l.b16 %v350
      %v499 = vunpack.c.l.b16 %v351
      %v500 = vunpack.c.l.b16 %v352
      %v501 = vunpack.c.l.b16 %v353
      %v502 = vunpack.c.l.b16 %v354
      %v503 = vunpack.c.l.b16 %v355
      %v504 = vunpack.c.l.b16 %v356
      %v505 = vunpack.c.l.b16 %v357
      %v506 = vunpack.c.l.b16 %v358
      %v507 = vunpack.c.l.b16 %v359
      %v508 = vunpack.c.l.b16 %v360
      %v509 = vunpack.c.l.b16 %v361
      %v510 = vunpack.c.l.b16 %v362
      %v511 = vunpack.c.l.b16 %v363
      %v512 = vunpack.c.l.b16 %v364
      %v513 = vunpack.c.l.b16 %v365
      %v514 = vunpack.c.l.b16 %v366
      %v515 = vunpack.c.l.b16 %v367
      %v516 = vunpack.c.l.b16 %v368
      %v517 = vunpack.c.l.b16 %v369
      %v518 = vunpack.c.l.b16 %v370
      %v519 = vunpack.c.l.b16 %v371
      %v520 = vunpack.c.l.b16 %v372
      %v521 = vunpack.c.l.b16 %v373
      %v522 = vunpack.c.l.b16 %v374
      %v523 = vunpack.c.l.b16 %v375
      %v524 = vunpack.c.l.b16 %v376
      %v525 = vunpack.c.l.b16 %v377
      %v526 = vunpack.c.l.b16 %v378
      %v527 = vunpack.c.l.b16 %v379
      %v528 = vunpack.c.l.b16 %v380
      %v529 = vunpack.c.l.b16 %v381
      %v530 = vunpack.c.l.b16 %v382
      %v531 = vunpack.c.l.b16 %v383
      %v532 = vunpack.c.l.b16 %v384
      %v533 = vunpack.c.l.b16 %v385
      %v534 = vunpack.c.l.b16 %v386
      %v535 = vunpack.c.l.b16 %v387
      %v536 = vunpack.c.l.b16 %v388
      %v537 = vunpack.c.l.b16 %v389
      %v538 = vunpack.c.l.b16 %v390
      %v539 = vunpack.c.l.b16 %v391
      %v540 = vunpack.c.l.b16 %v392
      %v541 = vunpack.c.l.b16 %v393
      %v542 = vpack.c.b16 %v479, %v478
      %v543 = vpack.c.b16 %v481, %v480
      %v544 = vpack.c.b16 %v483, %v482
      %v545 = vpack.c.b16 %v485, %v484
      %v546 = vpack.c.b16 %v487, %v486
      %v547 = vpack.c.b16 %v489, %v488
      %v548 = vpack.c.b16 %v491, %v490
      %v549 = vpack.c.b16 %v493, %v492
      %v550 = vpack.c.b16 %v495, %v494
      %v551 = vpack.c.b16 %v497, %v496
      %v552 = vpack.c.b16 %v499, %v498
      %v553 = vpack.c.b16 %v501, %v500
      %v554 = vpack.c.b16 %v503, %v502
      %v555 = vpack.c.b16 %v505, %v504
      %v556 = vpack.c.b16 %v507, %v506
      %v557 = vpack.c.b16 %v509, %v508
      %v558 = vpack.c.b16 %v511, %v510
      %v559 = vpack.c.b16 %v513, %v512
      %v560 = vpack.c.b16 %v515, %v514
      %v561 = vpack.c.b16 %v517, %v516
      %v562 = vpack.c.b16 %v519, %v518
      %v563 = vpack.c.b16 %v521, %v520
      %v564 = vpack.c.b16 %v523, %v522
      %v565 = vpack.c.b16 %v525, %v524
      %v566 = vpack.c.b16 %v527, %v526
      %v567 = vpack.c.b16 %v529, %v528
      %v568 = vpack.c.b16 %v531, %v530
      %v569 = vpack.c.b16 %v533, %v532
      %v570 = vpack.c.b16 %v535, %v534
      %v571 = vpack.c.b16 %v537, %v536
      %v572 = vpack.c.b16 %v539, %v538
      %v573 = vpack.c.b16 %v541, %v540
      %606 = vmatprep.subr.bf16.mxu0 0
      %607 = vmatpush1.bf16.msra.mxu0 %v549
      %608 = vmatprep.subr.bf16.mxu0 0
      %609 = vmatpush1.bf16.msra.mxu0 %v548
      %610 = vmatprep.subr.bf16.mxu0 0
      %611 = vmatpush1.bf16.msra.mxu0 %v547
      %612 = vmatprep.subr.bf16.mxu0 0
      %613 = vmatpush1.bf16.msra.mxu0 %v546
      %614 = vmatprep.subr.bf16.mxu0 0
      %615 = vmatpush1.bf16.msra.mxu0 %v545
      %616 = vmatprep.subr.bf16.mxu0 0
      %617 = vmatpush1.bf16.msra.mxu0 %v544
      %618 = vmatprep.subr.bf16.mxu0 0
      %619 = vmatpush1.bf16.msra.mxu0 %v543
      %620 = vmatprep.subr.bf16.mxu0 0
      %621 = vmatpush1.bf16.msra.mxu0 %v542
      %622 = vmatprep.subr.bf16.mxu0 0
      %623 = vmatpush2.bf16.msra.mxu0 %v557
      %624 = vmatprep.subr.bf16.mxu0 0
      %625 = vmatpush2.bf16.msra.mxu0 %v556
      %626 = vmatprep.subr.bf16.mxu0 0
      %627 = vmatpush2.bf16.msra.mxu0 %v555
      %628 = vmatprep.subr.bf16.mxu0 0
      %629 = vmatpush2.bf16.msra.mxu0 %v554
      %630 = vmatprep.subr.bf16.mxu0 0
      %631 = vmatpush2.bf16.msra.mxu0 %v553
      %632 = vmatprep.subr.bf16.mxu0 0
      %633 = vmatpush2.bf16.msra.mxu0 %v552
      %634 = vmatprep.subr.bf16.mxu0 0
      %635 = vmatpush2.bf16.msra.mxu0 %v551
      %636 = vmatprep.subr.bf16.mxu0 0
      %637 = vmatpush2.bf16.msra.mxu0 %v550
      %638 = vmatprep.mubr.bf16.mxu0 %v407
      %639 = vmatmul.mubr.bf16.gmra.mxu0 %v406
      %v640 = vpop.f32.mrf.mxu0
      %v641 = vadd.f32 0.0, %v640
      %v642 = vpop.f32.mrf.mxu0
      %v643 = vpop.f32.mrf.mxu0
      %v644 = vadd.f32 0.0, %v643
      %v645 = vpop.f32.mrf.mxu0
      %646 = vdwg.mxu0
      %647 = vmatprep.subr.bf16.mxu0 0
      %648 = vmatpush1.bf16.msra.mxu0 %v565
      %649 = vmatprep.subr.bf16.mxu0 0
      %650 = vmatpush1.bf16.msra.mxu0 %v564
      %651 = vmatprep.subr.bf16.mxu0 0
      %652 = vmatpush1.bf16.msra.mxu0 %v563
      %653 = vmatprep.subr.bf16.mxu0 0
      %654 = vmatpush1.bf16.msra.mxu0 %v562
      %655 = vmatprep.subr.bf16.mxu0 0
      %656 = vmatpush1.bf16.msra.mxu0 %v561
      %657 = vmatprep.subr.bf16.mxu0 0
      %658 = vmatpush1.bf16.msra.mxu0 %v560
      %659 = vmatprep.subr.bf16.mxu0 0
      %660 = vmatpush1.bf16.msra.mxu0 %v559
      %661 = vmatprep.subr.bf16.mxu0 0
      %662 = vmatpush1.bf16.msra.mxu0 %v558
      %663 = vmatprep.subr.bf16.mxu0 0
      %664 = vmatpush2.bf16.msra.mxu0 %v573
      %665 = vmatprep.subr.bf16.mxu0 0
      %666 = vmatpush2.bf16.msra.mxu0 %v572
      %667 = vmatprep.subr.bf16.mxu0 0
      %668 = vmatpush2.bf16.msra.mxu0 %v571
      %669 = vmatprep.subr.bf16.mxu0 0
      %670 = vmatpush2.bf16.msra.mxu0 %v570
      %671 = vmatprep.subr.bf16.mxu0 0
      %672 = vmatpush2.bf16.msra.mxu0 %v569
      %673 = vmatprep.subr.bf16.mxu0 0
      %674 = vmatpush2.bf16.msra.mxu0 %v568
      %675 = vmatprep.subr.bf16.mxu0 0
      %676 = vmatpush2.bf16.msra.mxu0 %v567
      %677 = vmatprep.subr.bf16.mxu0 0
      %678 = vmatpush2.bf16.msra.mxu0 %v566
      %679 = vmatprep.mubr.bf16.mxu0 %v409
      %680 = vmatmul.mubr.bf16.gmra.mxu0 %v408
      %v681 = vpop.f32.mrf.mxu0
      %v682 = vadd.f32 %v641, %v681
      %v683 = vpop.f32.mrf.mxu0
      %v684 = vpop.f32.mrf.mxu0
      %v685 = vadd.f32 %v644, %v684
      %v686 = vpop.f32.mrf.mxu0
      %687 = vdwg.mxu0
      %v688 = vadd.f32 %v324, %v682
      %v689 = vadd.f32 %v325, %v685
      %690 = vst [vmem:[#allocation2] sm:$0xff] %v688
      %691 = vst [vmem:[#allocation2 + $0x8] sm:$0xff] %v689
      // Predicated region
      $region33: #{nlayer_discriminator_forward.13} parent=27 // pred_check
        %p692 = pneg %p318
      $region34: #{nlayer_discriminator_forward.13} parent=27 // pred_check_branch
        %694 = sbr.rel (%p692) target = $region36
      $region35: #{nlayer_discriminator_forward.13} parent=27 // pred_region
        %v695 = vld [vmem:[#allocation2] sm:$0xff]
        %v696 = vld [vmem:[#allocation2 + $0x8] sm:$0xff]
        %v697 = vadd.f32 %v695, %v696
        %v698 = vrot.slane %v697, 4
        %v699 = vadd.f32 %v697, %v698
        %v700 = vrot.slane %v699, 2
        %v701 = vadd.f32 %v699, %v700
        %v702 = vrot.slane %v701, 1
        %v703 = vadd.f32 %v701, %v702
        %704 = vst [vmem:[%s309] sm:$0xff] %v703
        %v705 = vmul.f32 %v695, %v695
        %v706 = vmul.f32 %v696, %v696
        %v707 = vadd.f32 %v705, %v706
        %v708 = vrot.slane %v707, 4
        %v709 = vadd.f32 %v707, %v708
        %v710 = vrot.slane %v709, 2
        %v711 = vadd.f32 %v709, %v710
        %v712 = vrot.slane %v711, 1
        %v713 = vadd.f32 %v711, %v712
        %714 = vst [vmem:[%s316] sm:$0xff] %v713
        %v715 = vpack.c.bf16 %v696, %v695
        %v717 = vunpack.c.l.b16 %v715
        %v718 = vunpack.c.h.b16 %v715
        %v719 = vpack.c.b16 %v717, %v717
        %v720 = vpack.c.b16 %v718, %v718
        %723 = vst [vmem:[%s301] sm:$0xf] %v719
        %724 = vst [vmem:[%s301 + $0x4] sm:$0xf] %v720
      $region36: #{nlayer_discriminator_forward.13} parent=27 // pred_fallthru
        _
      %s725 = smul.u32 2, %s21
      %p726 = scmp.lt.s32.totalorder %s725, 3
      %s727 = scalar_select %p726, %s725, 3
      %p728 = scmp.lt.s32.totalorder %s22, 0
      %s729 = scalar_select %p728, %s22, 0
      %s730 = sadd.s32 %s729, %s727
      %s731 = smul.addr %s730, 4
      %s732 = scalar_lea.vmem %s2, %s731
      %p733 = scmp.lt.s32.totalorder %s21, 1
      %s734 = scalar_select %p733, %s21, 1
      %p735 = scmp.lt.s32.totalorder %s22, 0
      %s736 = scalar_select %p735, %s22, 0
      %s737 = sadd.s32 %s736, %s734
      %s738 = smul.addr %s737, 8
      %s739 = scalar_lea.vmem %s3, %s738
      %p740 = scmp.lt.s32.totalorder %s21, 1
      %s741 = scalar_select %p740, %s21, 1
      %p742 = scmp.lt.s32.totalorder %s22, 0
      %s743 = scalar_select %p742, %s22, 0
      %s744 = sadd.s32 %s743, %s741
      %s745 = smul.addr %s744, 8
      %s746 = scalar_lea.vmem %s4, %s745
      // Predicated region
      $region37: #{nlayer_discriminator_forward.13} parent=27 // pred_check
        %p747 = pneg %p111
      $region38: #{nlayer_discriminator_forward.13} parent=27 // pred_check_branch
        %749 = sbr.rel (%p747) target = $region40
      $region39: #{nlayer_discriminator_forward.13} parent=27 // pred_region
        %s750 = smul.u32 2, %s21
      $region40: #{nlayer_discriminator_forward.13} parent=27 // pred_fallthru
        _
      // Predicated region
      $region41: #{nlayer_discriminator_forward.13} parent=27 // pred_check
        %p751 = pneg %p139
      $region42: #{nlayer_discriminator_forward.13} parent=27 // pred_check_branch
        %753 = sbr.rel (%p751) target = $region44
      $region43: #{nlayer_discriminator_forward.13} parent=27 // pred_region
        _
      $region44: #{nlayer_discriminator_forward.13} parent=27 // pred_fallthru
        _
      // Predicated region
      $region45: #{nlayer_discriminator_forward.13} parent=27 // pred_check
        %p754 = pneg %p167
      $region46: #{nlayer_discriminator_forward.13} parent=27 // pred_check_branch
        %756 = sbr.rel (%p754) target = $region48
      $region47: #{nlayer_discriminator_forward.13} parent=27 // pred_region
        _
      $region48: #{nlayer_discriminator_forward.13} parent=27 // pred_fallthru
        _
    $region28: #{nlayer_discriminator_forward.13} parent=5 // pred_fallthru
      _
    %p757 = scmp.le.s32.totalorder 2, %s11
    // Predicated region
    $region49: #{nlayer_discriminator_forward.13} parent=5 // pred_check
      %p758 = pneg %p757
    $region50: #{nlayer_discriminator_forward.13} parent=5 // pred_check_branch
      %760 = sbr.rel (%p758) target = $region52
    $region51: #{nlayer_discriminator_forward.13} parent=5 // pred_region
      %s761 = ssub.s32 %s11, 2
      // Predicated region
      $region53: #{nlayer_discriminator_forward.13} parent=51 // pred_check
        %p762 = pneg %p117
      $region54: #{nlayer_discriminator_forward.13} parent=51 // pred_check_branch
        %764 = sbr.rel (%p762) target = $region56
      $region55: #{nlayer_discriminator_forward.13} parent=51 // pred_region
        %s765 = smul.u32 2, %s24
        %p766 = scmp.lt.s32.totalorder %s765, 3
        %s767 = scalar_select %p766, %s765, 3
        %p768 = scmp.lt.s32.totalorder %s25, 0
        %s769 = scalar_select %p768, %s25, 0
        %s770 = sadd.s32 %s769, %s767
        %s771 = smul.addr %s770, 4
        %s772 = scalar_lea.vmem %s2, %s771
      $region56: #{nlayer_discriminator_forward.13} parent=51 // pred_fallthru
        _
      // Predicated region
      $region57: #{nlayer_discriminator_forward.13} parent=51 // pred_check
        %p773 = pneg %p145
      $region58: #{nlayer_discriminator_forward.13} parent=51 // pred_check_branch
        %775 = sbr.rel (%p773) target = $region60
      $region59: #{nlayer_discriminator_forward.13} parent=51 // pred_region
        %p776 = scmp.lt.s32.totalorder %s24, 1
        %s777 = scalar_select %p776, %s24, 1
        %p778 = scmp.lt.s32.totalorder %s25, 0
        %s779 = scalar_select %p778, %s25, 0
        %s780 = sadd.s32 %s779, %s777
        %s781 = smul.addr %s780, 8
        %s782 = scalar_lea.vmem %s3, %s781
      $region60: #{nlayer_discriminator_forward.13} parent=51 // pred_fallthru
        _
      // Predicated region
      $region61: #{nlayer_discriminator_forward.13} parent=51 // pred_check
        %p783 = pneg %p173
      $region62: #{nlayer_discriminator_forward.13} parent=51 // pred_check_branch
        %785 = sbr.rel (%p783) target = $region64
      $region63: #{nlayer_discriminator_forward.13} parent=51 // pred_region
        %p786 = scmp.lt.s32.totalorder %s24, 1
        %s787 = scalar_select %p786, %s24, 1
        %p788 = scmp.lt.s32.totalorder %s25, 0
        %s789 = scalar_select %p788, %s25, 0
        %s790 = sadd.s32 %s789, %s787
        %s791 = smul.addr %s790, 8
        %s792 = scalar_lea.vmem %s4, %s791
      $region64: #{nlayer_discriminator_forward.13} parent=51 // pred_fallthru
        _
    $region52: #{nlayer_discriminator_forward.13} parent=5 // pred_fallthru
      _
  $region6: #{nlayer_discriminator_forward.13} parent=0 // loop_footer
    %s15 = sadd.s32 1, %s11
  $region7: #{nlayer_discriminator_forward.13} parent=0 // loop_footer_branch
    %10 = sbr.rel target = $region3
  $region8: #{nlayer_discriminator_forward.13} parent=0 // loop_exit
    _

// kernel: nlayer_discriminator_forward.15
$region0: #{nlayer_discriminator_forward.15}
  #allocation0 [shape = 'u32[]', space=smem, size = 0x4, offset = 0x4, fixed_abs, tag = 'smem constant byte address 0x4 - core index']
  #allocation1 [shape = 'u32[144,128]{1,0:T(1,128)}', space=vmem, size = 0x12000, scoped, tag = 'internal scratch']
  #allocation2 [shape = 'f32[32,128]{1,0:T(8,128)}', space=vmem, size = 0x4000, scoped, tag = 'scratch operand']
  %s0 = inlined_call_operand.vmem [shape: bf16[64,1024], index: 0, kind: input, shape index: {}]
  %s1 = inlined_call_operand.vmem [shape: bf16[1024,128], index: 1, kind: input, shape index: {}]
  %s2 = inlined_call_operand.vmem [shape: f32[1,128], index: 2, kind: input, shape index: {}]
  %s3 = inlined_call_operand.vmem [shape: f32[64,128], index: 3, kind: output, shape index: {}]
  %s4 = sld [smem:[#allocation0]]
  $region76: #{nlayer_discriminator_forward.15} parent=0
    _
  %s6 = ssub.s32 1, %s4
  %s7 = scalar_select 0, %s6, %s4
  $region1: #{nlayer_discriminator_forward.15} parent=0
    #allocation3 [shape = 'u8[65536]{0}', space=vmem, size = 0x10000, scoped, tag = 'input window, operand 0']
    loop: start=0, step=1, limit=6
    $region2: #{nlayer_discriminator_forward.15} parent=1 // loop_pre_header
      _
    $region3: #{nlayer_discriminator_forward.15} parent=1 // loop_header
      %s9 = sphi 0, %s13
      %p10 = scmp.ge.s32.totalorder %s9, 6
      %s16 = sphi 0, %s35
      %s17 = sphi 0, %s31
      %s18 = sphi 0, %s27
      %s19 = sphi 0, %s16
      %s20 = sphi 0, %s17
      %s21 = sphi 0, %s18
      %s22 = sphi 0, %s19
      %s23 = sphi 0, %s20
      %s24 = sphi 0, %s21
      %s40 = sphi 0, %s42
      %s43 = sphi 0, %s40
      %s44 = sphi 0, %s43
      %s60 = sphi 0, %s44
      %s68 = sphi 0, %s70
      %s71 = sphi 0, %s68
      %s72 = sphi 0, %s71
      %s88 = sphi 0, %s72
      %s94 = sphi 0, %s96
      %s97 = sphi 0, %s94
      %s98 = sphi 0, %s97
      %s114 = sphi 0, %s98
      %s122 = sphi 0, %s124
      %s125 = sphi 0, %s122
      %s126 = sphi 0, %s125
      %s142 = sphi 0, %s126
    $region4: #{nlayer_discriminator_forward.15} parent=1 // loop_header_branch
      %12 = sbr.rel (%p10) target = $region8
    $region5: #{nlayer_discriminator_forward.15} parent=1 // loop_body
      %s14 = ssub.s32 %s9, 1
      %s15 = ssub.s32 %s9, 2
      %s25 = sadd.s32 1, %s18
      %p26 = scmp.ge.s32.totalorder %s25, 2
      %s27 = scalar_select %p26, 0, %s25
      %s28 = sadd.s32 1, %s17
      %s29 = scalar_select %p26, %s28, %s17
      %p30 = scmp.ge.s32.totalorder %s29, 1
      %s31 = scalar_select %p30, 0, %s29
      %s32 = sadd.s32 1, %s16
      %s33 = scalar_select %p30, %s32, %s16
      %p34 = scmp.ge.s32.totalorder %s33, 2
      %s35 = scalar_select %p34, 0, %s33
      %s36 = ssub.s32 %s16, %s35
      %s37 = ssub.s32 %s18, %s27
      %s38 = sor.u32 %s36, %s37
      %p39 = scmp.eq.s32.totalorder %s38, 0
      %s41 = sadd.s32 %s40, 1
      %s42 = scalar_select %p39, %s40, %s41
      %p45 = pneg %p39
      %p46 = scmp.eq.s32.totalorder %s9, 3
      %p47 = por %p45, %p46
      %p48 = scmp.ne.s32.totalorder %s40, %s43
      %p49 = scmp.eq.s32.totalorder %s9, 0
      %p50 = por %p48, %p49
      %p51 = scmp.ne.s32.totalorder %s40, %s43
      %p52 = scmp.eq.s32.totalorder %s14, 3
      %p53 = por %p51, %p52
      %p54 = scmp.ne.s32.totalorder %s43, %s44
      %p55 = scmp.eq.s32.totalorder %s14, 0
      %p56 = por %p54, %p55
      %p57 = scmp.ne.s32.totalorder %s43, %s44
      %p58 = scmp.eq.s32.totalorder %s15, 3
      %p59 = por %p57, %p58
      %p61 = scmp.ne.s32.totalorder %s44, %s60
      %p62 = scmp.eq.s32.totalorder %s15, 0
      %p63 = por %p61, %p62
      %s64 = ssub.s32 %s18, %s27
      %s65 = ssub.s32 %s17, %s31
      %s66 = sor.u32 %s64, %s65
      %p67 = scmp.eq.s32.totalorder %s66, 0
      %s69 = sadd.s32 %s68, 1
      %s70 = scalar_select %p67, %s68, %s69
      %p73 = pneg %p67
      %p74 = scmp.eq.s32.totalorder %s9, 3
      %p75 = por %p73, %p74
      %p76 = scmp.ne.s32.totalorder %s68, %s71
      %p77 = scmp.eq.s32.totalorder %s9, 0
      %p78 = por %p76, %p77
      %p79 = scmp.ne.s32.totalorder %s68, %s71
      %p80 = scmp.eq.s32.totalorder %s14, 3
      %p81 = por %p79, %p80
      %p82 = scmp.ne.s32.totalorder %s71, %s72
      %p83 = scmp.eq.s32.totalorder %s14, 0
      %p84 = por %p82, %p83
      %p85 = scmp.ne.s32.totalorder %s71, %s72
      %p86 = scmp.eq.s32.totalorder %s15, 3
      %p87 = por %p85, %p86
      %p89 = scmp.ne.s32.totalorder %s72, %s88
      %p90 = scmp.eq.s32.totalorder %s15, 0
      %p91 = por %p89, %p90
      %s92 = ssub.s32 %s17, %s31
      %p93 = scmp.eq.s32.totalorder %s92, 0
      %s95 = sadd.s32 %s94, 1
      %s96 = scalar_select %p93, %s94, %s95
      %p99 = pneg %p93
      %p100 = scmp.eq.s32.totalorder %s9, 3
      %p101 = por %p99, %p100
      %p102 = scmp.ne.s32.totalorder %s94, %s97
      %p103 = scmp.eq.s32.totalorder %s9, 0
      %p104 = por %p102, %p103
      %p105 = scmp.ne.s32.totalorder %s94, %s97
      %p106 = scmp.eq.s32.totalorder %s14, 3
      %p107 = por %p105, %p106
      %p108 = scmp.ne.s32.totalorder %s97, %s98
      %p109 = scmp.eq.s32.totalorder %s14, 0
      %p110 = por %p108, %p109
      %p111 = scmp.ne.s32.totalorder %s97, %s98
      %p112 = scmp.eq.s32.totalorder %s15, 3
      %p113 = por %p111, %p112
      %p115 = scmp.ne.s32.totalorder %s98, %s114
      %p116 = scmp.eq.s32.totalorder %s15, 0
      %p117 = por %p115, %p116
      %s118 = ssub.s32 %s16, %s35
      %s119 = ssub.s32 %s17, %s31
      %s120 = sor.u32 %s118, %s119
      %p121 = scmp.eq.s32.totalorder %s120, 0
      %s123 = sadd.s32 %s122, 1
      %s124 = scalar_select %p121, %s122, %s123
      %p127 = pneg %p121
      %p128 = scmp.eq.s32.totalorder %s9, 3
      %p129 = por %p127, %p128
      %p130 = scmp.ne.s32.totalorder %s122, %s125
      %p131 = scmp.eq.s32.totalorder %s9, 0
      %p132 = por %p130, %p131
      %p133 = scmp.ne.s32.totalorder %s122, %s125
      %p134 = scmp.eq.s32.totalorder %s14, 3
      %p135 = por %p133, %p134
      %p136 = scmp.ne.s32.totalorder %s125, %s126
      %p137 = scmp.eq.s32.totalorder %s14, 0
      %p138 = por %p136, %p137
      %p139 = scmp.ne.s32.totalorder %s125, %s126
      %p140 = scmp.eq.s32.totalorder %s15, 3
      %p141 = por %p139, %p140
      %p143 = scmp.ne.s32.totalorder %s126, %s142
      %p144 = scmp.eq.s32.totalorder %s15, 0
      %p145 = por %p143, %p144
      %p146 = scmp.le.s32.totalorder 1, %s9
      %p147 = scmp.lt.s32.totalorder %s9, 5
      %p148 = pnand %p146, %p147
      %p149 = pneg %p148
      // Predicated region
      $region9: #{nlayer_discriminator_forward.15} parent=5 // pred_check
        _
      $region10: #{nlayer_discriminator_forward.15} parent=5 // pred_check_branch
        %151 = sbr.rel (%p148) target = $region12
      $region11: #{nlayer_discriminator_forward.15} parent=5 // pred_region
        %s152 = ssub.s32 %s9, 1
        // Predicated region
        $region13: #{nlayer_discriminator_forward.15} parent=11 // pred_check
          %p153 = pneg %p110
        $region14: #{nlayer_discriminator_forward.15} parent=11 // pred_check_branch
          %155 = sbr.rel (%p153) target = $region16
        $region15: #{nlayer_discriminator_forward.15} parent=11 // pred_region
          %p156 = scmp.lt.s32.totalorder %s20, 0
          %s157 = scalar_select %p156, %s20, 0
          %s158 = scalar_lea.vmem %s2, %s157
        $region16: #{nlayer_discriminator_forward.15} parent=11 // pred_fallthru
          _
      $region12: #{nlayer_discriminator_forward.15} parent=5 // pred_fallthru
        _
      %p159 = scmp.lt.s32.totalorder %s9, 4
      // Predicated region
      $region17: #{nlayer_discriminator_forward.15} parent=5 // pred_check
        %p160 = pneg %p159
      $region18: #{nlayer_discriminator_forward.15} parent=5 // pred_check_branch
        %162 = sbr.rel (%p160) target = $region20
      $region19: #{nlayer_discriminator_forward.15} parent=5 // pred_region
        // Predicated region
        $region21: #{nlayer_discriminator_forward.15} parent=19 // pred_check
          %p163 = pneg %p50
        $region22: #{nlayer_discriminator_forward.15} parent=19 // pred_check_branch
          %165 = sbr.rel (%p163) target = $region24
        $region23: #{nlayer_discriminator_forward.15} parent=19 // pred_region
          %s166 = sand.u32 %s40, 1
          %s167 = sand.u32 %s40, 1
          %s168 = smul.addr %s167, 64
          %s169 = scalar_lea.vmem [#allocation3], %s168
          %s170 = smul.u32 4, %s16
          %s171 = smul.u32 4, %s18
          %s172 = smul.addr %s170, 8
          %s173 = sadd.s32 %s171, %s172
          %s174 = smul.addr %s173, 4
          %s175 = scalar_lea.vmem %s0, %s174
          // Predicated region
          $region25: #{nlayer_discriminator_forward.15} parent=23 // pred_check
            _
          $region26: #{nlayer_discriminator_forward.15} parent=23 // pred_check_branch
            %177 = sbr.rel (0) target = $region28
          $region27: #{nlayer_discriminator_forward.15} parent=23 // pred_region
            // Predicated region
            $region29: #{nlayer_discriminator_forward.15} parent=27 // pred_check
              _
            $region30: #{nlayer_discriminator_forward.15} parent=27 // pred_check_branch
              %179 = sbr.rel (0) target = $region32
            $region31: #{nlayer_discriminator_forward.15} parent=27 // pred_region
              loop: start=0, step=1, limit=1
              $region33: #{nlayer_discriminator_forward.15} parent=31 // loop_pre_header
                _
              $region34: #{nlayer_discriminator_forward.15} parent=31 // loop_header
                %s181 = sphi 0, %s185
                %p182 = scmp.ge.s32.totalorder %s181, 1
                %s186 = sphi %s175, %s175
                %s187 = sphi %s169, %s169
              $region35: #{nlayer_discriminator_forward.15} parent=31 // loop_header_branch
                %184 = sbr.rel (%p182) target = $region39
              $region36: #{nlayer_discriminator_forward.15} parent=31 // loop_body
                %v188 = vld [vmem:[%s186] sm:$0xff]
                %189 = vst [vmem:[%s187] sm:$0xff] %v188
                %v190 = vld [vmem:[%s186 + $0x8] sm:$0xff]
                %191 = vst [vmem:[%s187 + $0x8] sm:$0xff] %v190
                %v192 = vld [vmem:[%s186 + $0x20] sm:$0xff]
                %193 = vst [vmem:[%s187 + $0x10] sm:$0xff] %v192
                %v194 = vld [vmem:[%s186 + $0x28] sm:$0xff]
                %195 = vst [vmem:[%s187 + $0x18] sm:$0xff] %v194
                %v196 = vld [vmem:[%s186 + $0x40] sm:$0xff]
                %197 = vst [vmem:[%s187 + $0x20] sm:$0xff] %v196
                %v198 = vld [vmem:[%s186 + $0x48] sm:$0xff]
                %199 = vst [vmem:[%s187 + $0x28] sm:$0xff] %v198
                %v200 = vld [vmem:[%s186 + $0x60] sm:$0xff]
                %201 = vst [vmem:[%s187 + $0x30] sm:$0xff] %v200
                %v202 = vld [vmem:[%s186 + $0x68] sm:$0xff]
                %203 = vst [vmem:[%s187 + $0x38] sm:$0xff] %v202
              $region37: #{nlayer_discriminator_forward.15} parent=31 // loop_footer
                %s185 = sadd.s32 1, %s181
              $region38: #{nlayer_discriminator_forward.15} parent=31 // loop_footer_branch
                %180 = sbr.rel target = $region34
              $region39: #{nlayer_discriminator_forward.15} parent=31 // loop_exit
                _
            $region32: #{nlayer_discriminator_forward.15} parent=27 // pred_fallthru
              _
            // Predicated region
            $region40: #{nlayer_discriminator_forward.15} parent=27 // pred_check
              _
            $region41: #{nlayer_discriminator_forward.15} parent=27 // pred_check_branch
              %205 = sbr.rel target = $region43
            $region42: #{nlayer_discriminator_forward.15} parent=27 // pred_region
              _
            $region43: #{nlayer_discriminator_forward.15} parent=27 // pred_fallthru
              _
          $region28: #{nlayer_discriminator_forward.15} parent=23 // pred_fallthru
            _
          %206 = vnop
        $region24: #{nlayer_discriminator_forward.15} parent=19 // pred_fallthru
          _
        // Predicated region
        $region44: #{nlayer_discriminator_forward.15} parent=19 // pred_check
          %p207 = pneg %p78
        $region45: #{nlayer_discriminator_forward.15} parent=19 // pred_check_branch
          %209 = sbr.rel (%p207) target = $region47
        $region46: #{nlayer_discriminator_forward.15} parent=19 // pred_region
          %s210 = smul.u32 64, %s18
          %p211 = scmp.lt.s32.totalorder %s210, 127
          %s212 = scalar_select %p211, %s210, 127
          %p213 = scmp.lt.s32.totalorder %s17, 0
          %s214 = scalar_select %p213, %s17, 0
          %s215 = sadd.s32 %s214, %s212
          %s216 = smul.addr %s215, 4
          %s217 = scalar_lea.vmem %s1, %s216
          %s218 = smul.u32 64, %s18
        $region47: #{nlayer_discriminator_forward.15} parent=19 // pred_fallthru
          _
      $region20: #{nlayer_discriminator_forward.15} parent=5 // pred_fallthru
        _
      %p219 = scmp.le.s32.totalorder 1, %s9
      %p220 = scmp.lt.s32.totalorder %s9, 5
      %p221 = pnand %p219, %p220
      %p222 = pneg %p221
      // Predicated region
      $region48: #{nlayer_discriminator_forward.15} parent=5 // pred_check
        _
      $region49: #{nlayer_discriminator_forward.15} parent=5 // pred_check_branch
        %224 = sbr.rel (%p221) target = $region51
      $region50: #{nlayer_discriminator_forward.15} parent=5 // pred_region
        %s225 = ssub.s32 %s9, 1
        %s226 = sand.u32 %s43, 1
        %s227 = sand.u32 %s43, 1
        %s228 = smul.addr %s227, 64
        %s229 = scalar_lea.vmem [#allocation3], %s228
        // Predicated region
        $region52: #{nlayer_discriminator_forward.15} parent=50 // pred_check
          %p230 = pneg %p56
        $region53: #{nlayer_discriminator_forward.15} parent=50 // pred_check_branch
          %232 = sbr.rel (%p230) target = $region55
        $region54: #{nlayer_discriminator_forward.15} parent=50 // pred_region
          _
        $region55: #{nlayer_discriminator_forward.15} parent=50 // pred_fallthru
          _
        %s233 = sand.u32 %s43, 1
        %s234 = sand.u32 %s43, 1
        %s235 = smul.addr %s234, 64
        %s236 = scalar_lea.vmem [#allocation3], %s235
        %p237 = pneg %p56
        %p238 = pneg %p53
        %s239 = smul.u32 64, %s21
        %p240 = scmp.lt.s32.totalorder %s239, 127
        %s241 = scalar_select %p240, %s239, 127
        %p242 = scmp.lt.s32.totalorder %s20, 0
        %s243 = scalar_select %p242, %s20, 0
        %s244 = sadd.s32 %s243, %s241
        %s245 = smul.addr %s244, 4
        %s246 = scalar_lea.vmem %s1, %s245
        %p247 = pneg %p84
        %p248 = pneg %p81
        %p249 = scmp.lt.s32.totalorder %s20, 0
        %s250 = scalar_select %p249, %s20, 0
        %s251 = scalar_lea.vmem %s2, %s250
        %p252 = pneg %p110
        %p253 = pneg %p107
        %p254 = pneg %p138
        %p255 = pneg %p135
        %s256 = smul.u32 4, %s19
        %p257 = scmp.lt.s32.totalorder %s256, 7
        %s258 = scalar_select %p257, %s256, 7
        %p259 = scmp.lt.s32.totalorder %s20, 0
        %s260 = scalar_select %p259, %s20, 0
        %s261 = sadd.s32 %s260, %s258
        %s262 = smul.addr %s261, 8
        %s263 = scalar_lea.vmem %s3, %s262
        %s264 = smul.u32 4, %s19
        %s265 = smul.u32 4, %s21
        %s266 = smul.u32 64, %s21
        %p267 = scmp.lt.s32.totalorder %s266, 127
        %s268 = scalar_select %p267, %s266, 127
        %p269 = scmp.lt.s32.totalorder %s20, 0
        %s270 = scalar_select %p269, %s20, 0
        %s271 = sadd.s32 %s270, %s268
        %s272 = smul.addr %s271, 4
        %s273 = scalar_lea.vmem %s1, %s272
        %s274 = smul.u32 64, %s21
        %p275 = scmp.lt.s32.totalorder %s20, 0
        %s276 = scalar_select %p275, %s20, 0
        %s277 = scalar_lea.vmem %s2, %s276
        %s278 = smul.u32 4, %s19
        %p279 = scmp.lt.s32.totalorder %s278, 7
        %s280 = scalar_select %p279, %s278, 7
        %p281 = scmp.lt.s32.totalorder %s20, 0
        %s282 = scalar_select %p281, %s20, 0
        %s283 = sadd.s32 %s282, %s280
        %s284 = smul.addr %s283, 8
        %s285 = scalar_lea.vmem %s3, %s284
        %s286 = smul.u32 4, %s19
        %p288 = scmp.eq.s32.totalorder %s21, 0
        // Predicated region
        $region56: #{nlayer_discriminator_forward.15} parent=50 // pred_check
          %p289 = pneg %p288
        $region57: #{nlayer_discriminator_forward.15} parent=50 // pred_check_branch
          %291 = sbr.rel (%p289) target = $region59
        $region58: #{nlayer_discriminator_forward.15} parent=50 // pred_region
          %292 = vst [vmem:[#allocation2] sm:$0xff] 0.0
          %293 = vst [vmem:[#allocation2 + $0x8] sm:$0xff] 0.0
          %294 = vst [vmem:[#allocation2 + $0x10] sm:$0xff] 0.0
          %295 = vst [vmem:[#allocation2 + $0x18] sm:$0xff] 0.0
        $region59: #{nlayer_discriminator_forward.15} parent=50 // pred_fallthru
          _
        %v296 = vld [vmem:[#allocation2] sm:$0xff]
        %v297 = vld [vmem:[#allocation2 + $0x8] sm:$0xff]
        %v298 = vld [vmem:[#allocation2 + $0x10] sm:$0xff]
        %v299 = vld [vmem:[#allocation2 + $0x18] sm:$0xff]
        %v300 = vld [vmem:[%s229] sm:$0xff]
        %v301 = vld [vmem:[%s229 + $0x8] sm:$0xff]
        %v302 = vld [vmem:[%s229 + $0x10] sm:$0xff]
        %v303 = vld [vmem:[%s229 + $0x18] sm:$0xff]
        %v304 = vld [vmem:[%s229 + $0x20] sm:$0xff]
        %v305 = vld [vmem:[%s229 + $0x28] sm:$0xff]
        %v306 = vld [vmem:[%s229 + $0x30] sm:$0xff]
        %v307 = vld [vmem:[%s229 + $0x38] sm:$0xff]
        %v308 = vld [vmem:[%s273] sm:$0xf]
        %v309 = vld [vmem:[%s273 + $0x4] sm:$0xf]
        %v310 = vld [vmem:[%s273 + $0x8] sm:$0xf]
        %v311 = vld [vmem:[%s273 + $0xc] sm:$0xf]
        %v312 = vld [vmem:[%s273 + $0x10] sm:$0xf]
        %v313 = vld [vmem:[%s273 + $0x14] sm:$0xf]
        %v314 = vld [vmem:[%s273 + $0x18] sm:$0xf]
        %v315 = vld [vmem:[%s273 + $0x1c] sm:$0xf]
        %v316 = vld [vmem:[%s273 + $0x20] sm:$0xf]
        %v317 = vld [vmem:[%s273 + $0x24] sm:$0xf]
        %v318 = vld [vmem:[%s273 + $0x28] sm:$0xf]
        %v319 = vld [vmem:[%s273 + $0x2c] sm:$0xf]
        %v320 = vld [vmem:[%s273 + $0x30] sm:$0xf]
        %v321 = vld [vmem:[%s273 + $0x34] sm:$0xf]
        %v322 = vld [vmem:[%s273 + $0x38] sm:$0xf]
        %v323 = vld [vmem:[%s273 + $0x3c] sm:$0xf]
        %v324 = vld [vmem:[%s273 + $0x40] sm:$0xf]
        %v325 = vld [vmem:[%s273 + $0x44] sm:$0xf]
        %v326 = vld [vmem:[%s273 + $0x48] sm:$0xf]
        %v327 = vld [vmem:[%s273 + $0x4c] sm:$0xf]
        %v328 = vld [vmem:[%s273 + $0x50] sm:$0xf]
        %v329 = vld [vmem:[%s273 + $0x54] sm:$0xf]
        %v330 = vld [vmem:[%s273 + $0x58] sm:$0xf]
        %v331 = vld [vmem:[%s273 + $0x5c] sm:$0xf]
        %v332 = vld [vmem:[%s273 + $0x60] sm:$0xf]
        %v333 = vld [vmem:[%s273 + $0x64] sm:$0xf]
        %v334 = vld [vmem:[%s273 + $0x68] sm:$0xf]
        %v335 = vld [vmem:[%s273 + $0x6c] sm:$0xf]
        %v336 = vld [vmem:[%s273 + $0x70] sm:$0xf]
        %v337 = vld [vmem:[%s273 + $0x74] sm:$0xf]
        %v338 = vld [vmem:[%s273 + $0x78] sm:$0xf]
        %v339 = vld [vmem:[%s273 + $0x7c] sm:$0xf]
        %v340 = vld [vmem:[%s273 + $0x80] sm:$0xf]
        %v341 = vld [vmem:[%s273 + $0x84] sm:$0xf]
        %v342 = vld [vmem:[%s273 + $0x88] sm:$0xf]
        %v343 = vld [vmem:[%s273 + $0x8c] sm:$0xf]
        %v344 = vld [vmem:[%s273 + $0x90] sm:$0xf]
        %v345 = vld [vmem:[%s273 + $0x94] sm:$0xf]
        %v346 = vld [vmem:[%s273 + $0x98] sm:$0xf]
        %v347 = vld [vmem:[%s273 + $0x9c] sm:$0xf]
        %v348 = vld [vmem:[%s273 + $0xa0] sm:$0xf]
        %v349 = vld [vmem:[%s273 + $0xa4] sm:$0xf]
        %v350 = vld [vmem:[%s273 + $0xa8] sm:$0xf]
        %v351 = vld [vmem:[%s273 + $0xac] sm:$0xf]
        %v352 = vld [vmem:[%s273 + $0xb0] sm:$0xf]
        %v353 = vld [vmem:[%s273 + $0xb4] sm:$0xf]
        %v354 = vld [vmem:[%s273 + $0xb8] sm:$0xf]
        %v355 = vld [vmem:[%s273 + $0xbc] sm:$0xf]
        %v356 = vld [vmem:[%s273 + $0xc0] sm:$0xf]
        %v357 = vld [vmem:[%s273 + $0xc4] sm:$0xf]
        %v358 = vld [vmem:[%s273 + $0xc8] sm:$0xf]
        %v359 = vld [vmem:[%s273 + $0xcc] sm:$0xf]
        %v360 = vld [vmem:[%s273 + $0xd0] sm:$0xf]
        %v361 = vld [vmem:[%s273 + $0xd4] sm:$0xf]
        %v362 = vld [vmem:[%s273 + $0xd8] sm:$0xf]
        %v363 = vld [vmem:[%s273 + $0xdc] sm:$0xf]
        %v364 = vld [vmem:[%s273 + $0xe0] sm:$0xf]
        %v365 = vld [vmem:[%s273 + $0xe4] sm:$0xf]
        %v366 = vld [vmem:[%s273 + $0xe8] sm:$0xf]
        %v367 = vld [vmem:[%s273 + $0xec] sm:$0xf]
        %v368 = vld [vmem:[%s273 + $0xf0] sm:$0xf]
        %v369 = vld [vmem:[%s273 + $0xf4] sm:$0xf]
        %v370 = vld [vmem:[%s273 + $0xf8] sm:$0xf]
        %v371 = vld [vmem:[%s273 + $0xfc] sm:$0xf]
        %v380 = vunpack.c.l.b16 %v300
        %v381 = vunpack.c.h.b16 %v300
        %v382 = vunpack.c.l.b16 %v301
        %v383 = vunpack.c.h.b16 %v301
        %v384 = vunpack.c.l.b16 %v302
        %v385 = vunpack.c.h.b16 %v302
        %v386 = vunpack.c.l.b16 %v303
        %v387 = vunpack.c.h.b16 %v303
        %v388 = vunpack.c.l.b16 %v304
        %v389 = vunpack.c.h.b16 %v304
        %v390 = vunpack.c.l.b16 %v305
        %v391 = vunpack.c.h.b16 %v305
        %v392 = vunpack.c.l.b16 %v306
        %v393 = vunpack.c.h.b16 %v306
        %v394 = vunpack.c.l.b16 %v307
        %v395 = vunpack.c.h.b16 %v307
        %v396 = vpack.c.b16 %v384, %v380
        %v397 = vpack.c.b16 %v385, %v381
        %v398 = vpack.c.b16 %v386, %v382
        %v399 = vpack.c.b16 %v387, %v383
        %v400 = vpack.c.b16 %v392, %v388
        %v401 = vpack.c.b16 %v393, %v389
        %v402 = vpack.c.b16 %v394, %v390
        %v403 = vpack.c.b16 %v395, %v391
        %v476 = vunpack.c.l.b16 %v308
        %v477 = vunpack.c.l.b16 %v309
        %v478 = vunpack.c.l.b16 %v310
        %v479 = vunpack.c.l.b16 %v311
        %v480 = vunpack.c.l.b16 %v312
        %v481 = vunpack.c.l.b16 %v313
        %v482 = vunpack.c.l.b16 %v314
        %v483 = vunpack.c.l.b16 %v315
        %v484 = vunpack.c.l.b16 %v316
        %v485 = vunpack.c.l.b16 %v317
        %v486 = vunpack.c.l.b16 %v318
        %v487 = vunpack.c.l.b16 %v319
        %v488 = vunpack.c.l.b16 %v320
        %v489 = vunpack.c.l.b16 %v321
        %v490 = vunpack.c.l.b16 %v322
        %v491 = vunpack.c.l.b16 %v323
        %v492 = vunpack.c.l.b16 %v324
        %v493 = vunpack.c.l.b16 %v325
        %v494 = vunpack.c.l.b16 %v326
        %v495 = vunpack.c.l.b16 %v327
        %v496 = vunpack.c.l.b16 %v328
        %v497 = vunpack.c.l.b16 %v329
        %v498 = vunpack.c.l.b16 %v330
        %v499 = vunpack.c.l.b16 %v331
        %v500 = vunpack.c.l.b16 %v332
        %v501 = vunpack.c.l.b16 %v333
        %v502 = vunpack.c.l.b16 %v334
        %v503 = vunpack.c.l.b16 %v335
        %v504 = vunpack.c.l.b16 %v336
        %v505 = vunpack.c.l.b16 %v337
        %v506 = vunpack.c.l.b16 %v338
        %v507 = vunpack.c.l.b16 %v339
        %v508 = vunpack.c.l.b16 %v340
        %v509 = vunpack.c.l.b16 %v341
        %v510 = vunpack.c.l.b16 %v342
        %v511 = vunpack.c.l.b16 %v343
        %v512 = vunpack.c.l.b16 %v344
        %v513 = vunpack.c.l.b16 %v345
        %v514 = vunpack.c.l.b16 %v346
        %v515 = vunpack.c.l.b16 %v347
        %v516 = vunpack.c.l.b16 %v348
        %v517 = vunpack.c.l.b16 %v349
        %v518 = vunpack.c.l.b16 %v350
        %v519 = vunpack.c.l.b16 %v351
        %v520 = vunpack.c.l.b16 %v352
        %v521 = vunpack.c.l.b16 %v353
        %v522 = vunpack.c.l.b16 %v354
        %v523 = vunpack.c.l.b16 %v355
        %v524 = vunpack.c.l.b16 %v356
        %v525 = vunpack.c.l.b16 %v357
        %v526 = vunpack.c.l.b16 %v358
        %v527 = vunpack.c.l.b16 %v359
        %v528 = vunpack.c.l.b16 %v360
        %v529 = vunpack.c.l.b16 %v361
        %v530 = vunpack.c.l.b16 %v362
        %v531 = vunpack.c.l.b16 %v363
        %v532 = vunpack.c.l.b16 %v364
        %v533 = vunpack.c.l.b16 %v365
        %v534 = vunpack.c.l.b16 %v366
        %v535 = vunpack.c.l.b16 %v367
        %v536 = vunpack.c.l.b16 %v368
        %v537 = vunpack.c.l.b16 %v369
        %v538 = vunpack.c.l.b16 %v370
        %v539 = vunpack.c.l.b16 %v371
        %v540 = vpack.c.b16 %v477, %v476
        %v541 = vpack.c.b16 %v479, %v478
        %v542 = vpack.c.b16 %v481, %v480
        %v543 = vpack.c.b16 %v483, %v482
        %v544 = vpack.c.b16 %v485, %v484
        %v545 = vpack.c.b16 %v487, %v486
        %v546 = vpack.c.b16 %v489, %v488
        %v547 = vpack.c.b16 %v491, %v490
        %v548 = vpack.c.b16 %v493, %v492
        %v549 = vpack.c.b16 %v495, %v494
        %v550 = vpack.c.b16 %v497, %v496
        %v551 = vpack.c.b16 %v499, %v498
        %v552 = vpack.c.b16 %v501, %v500
        %v553 = vpack.c.b16 %v503, %v502
        %v554 = vpack.c.b16 %v505, %v504
        %v555 = vpack.c.b16 %v507, %v506
        %v556 = vpack.c.b16 %v509, %v508
        %v557 = vpack.c.b16 %v511, %v510
        %v558 = vpack.c.b16 %v513, %v512
        %v559 = vpack.c.b16 %v515, %v514
        %v560 = vpack.c.b16 %v517, %v516
        %v561 = vpack.c.b16 %v519, %v518
        %v562 = vpack.c.b16 %v521, %v520
        %v563 = vpack.c.b16 %v523, %v522
        %v564 = vpack.c.b16 %v525, %v524
        %v565 = vpack.c.b16 %v527, %v526
        %v566 = vpack.c.b16 %v529, %v528
        %v567 = vpack.c.b16 %v531, %v530
        %v568 = vpack.c.b16 %v533, %v532
        %v569 = vpack.c.b16 %v535, %v534
        %v570 = vpack.c.b16 %v537, %v536
        %v571 = vpack.c.b16 %v539, %v538
        %604 = vmatprep.subr.bf16.mxu0 0
        %605 = vmatpush1.bf16.msra.mxu0 %v547
        %606 = vmatprep.subr.bf16.mxu0 0
        %607 = vmatpush1.bf16.msra.mxu0 %v546
        %608 = vmatprep.subr.bf16.mxu0 0
        %609 = vmatpush1.bf16.msra.mxu0 %v545
        %610 = vmatprep.subr.bf16.mxu0 0
        %611 = vmatpush1.bf16.msra.mxu0 %v544
        %612 = vmatprep.subr.bf16.mxu0 0
        %613 = vmatpush1.bf16.msra.mxu0 %v543
        %614 = vmatprep.subr.bf16.mxu0 0
        %615 = vmatpush1.bf16.msra.mxu0 %v542
        %616 = vmatprep.subr.bf16.mxu0 0
        %617 = vmatpush1.bf16.msra.mxu0 %v541
        %618 = vmatprep.subr.bf16.mxu0 0
        %619 = vmatpush1.bf16.msra.mxu0 %v540
        %620 = vmatprep.subr.bf16.mxu0 0
        %621 = vmatpush2.bf16.msra.mxu0 %v555
        %622 = vmatprep.subr.bf16.mxu0 0
        %623 = vmatpush2.bf16.msra.mxu0 %v554
        %624 = vmatprep.subr.bf16.mxu0 0
        %625 = vmatpush2.bf16.msra.mxu0 %v553
        %626 = vmatprep.subr.bf16.mxu0 0
        %627 = vmatpush2.bf16.msra.mxu0 %v552
        %628 = vmatprep.subr.bf16.mxu0 0
        %629 = vmatpush2.bf16.msra.mxu0 %v551
        %630 = vmatprep.subr.bf16.mxu0 0
        %631 = vmatpush2.bf16.msra.mxu0 %v550
        %632 = vmatprep.subr.bf16.mxu0 0
        %633 = vmatpush2.bf16.msra.mxu0 %v549
        %634 = vmatprep.subr.bf16.mxu0 0
        %635 = vmatpush2.bf16.msra.mxu0 %v548
        %636 = vmatprep.mubr.bf16.mxu0 %v397
        %637 = vmatmul.mubr.bf16.gmra.mxu0 %v396
        %v638 = vpop.f32.mrf.mxu0
        %v639 = vadd.f32 0.0, %v638
        %v640 = vpop.f32.mrf.mxu0
        %v641 = vpop.f32.mrf.mxu0
        %v642 = vadd.f32 0.0, %v641
        %v643 = vpop.f32.mrf.mxu0
        %644 = vmatprep.mubr.bf16.mxu0 %v401
        %645 = vmatmul.mubr.bf16.gmra.mxu0 %v400
        %v646 = vpop.f32.mrf.mxu0
        %v647 = vadd.f32 0.0, %v646
        %v648 = vpop.f32.mrf.mxu0
        %v649 = vpop.f32.mrf.mxu0
        %v650 = vadd.f32 0.0, %v649
        %v651 = vpop.f32.mrf.mxu0
        %652 = vdwg.mxu0
        %653 = vmatprep.subr.bf16.mxu0 0
        %654 = vmatpush1.bf16.msra.mxu0 %v563
        %655 = vmatprep.subr.bf16.mxu0 0
        %656 = vmatpush1.bf16.msra.mxu0 %v562
        %657 = vmatprep.subr.bf16.mxu0 0
        %658 = vmatpush1.bf16.msra.mxu0 %v561
        %659 = vmatprep.subr.bf16.mxu0 0
        %660 = vmatpush1.bf16.msra.mxu0 %v560
        %661 = vmatprep.subr.bf16.mxu0 0
        %662 = vmatpush1.bf16.msra.mxu0 %v559
        %663 = vmatprep.subr.bf16.mxu0 0
        %664 = vmatpush1.bf16.msra.mxu0 %v558
        %665 = vmatprep.subr.bf16.mxu0 0
        %666 = vmatpush1.bf16.msra.mxu0 %v557
        %667 = vmatprep.subr.bf16.mxu0 0
        %668 = vmatpush1.bf16.msra.mxu0 %v556
        %669 = vmatprep.subr.bf16.mxu0 0
        %670 = vmatpush2.bf16.msra.mxu0 %v571
        %671 = vmatprep.subr.bf16.mxu0 0
        %672 = vmatpush2.bf16.msra.mxu0 %v570
        %673 = vmatprep.subr.bf16.mxu0 0
        %674 = vmatpush2.bf16.msra.mxu0 %v569
        %675 = vmatprep.subr.bf16.mxu0 0
        %676 = vmatpush2.bf16.msra.mxu0 %v568
        %677 = vmatprep.subr.bf16.mxu0 0
        %678 = vmatpush2.bf16.msra.mxu0 %v567
        %679 = vmatprep.subr.bf16.mxu0 0
        %680 = vmatpush2.bf16.msra.mxu0 %v566
        %681 = vmatprep.subr.bf16.mxu0 0
        %682 = vmatpush2.bf16.msra.mxu0 %v565
        %683 = vmatprep.subr.bf16.mxu0 0
        %684 = vmatpush2.bf16.msra.mxu0 %v564
        %685 = vmatprep.mubr.bf16.mxu0 %v399
        %686 = vmatmul.mubr.bf16.gmra.mxu0 %v398
        %v687 = vpop.f32.mrf.mxu0
        %v688 = vadd.f32 %v639, %v687
        %v689 = vpop.f32.mrf.mxu0
        %v690 = vpop.f32.mrf.mxu0
        %v691 = vadd.f32 %v642, %v690
        %v692 = vpop.f32.mrf.mxu0
        %693 = vmatprep.mubr.bf16.mxu0 %v403
        %694 = vmatmul.mubr.bf16.gmra.mxu0 %v402
        %v695 = vpop.f32.mrf.mxu0
        %v696 = vadd.f32 %v647, %v695
        %v697 = vpop.f32.mrf.mxu0
        %v698 = vpop.f32.mrf.mxu0
        %v699 = vadd.f32 %v650, %v698
        %v700 = vpop.f32.mrf.mxu0
        %701 = vdwg.mxu0
        %v702 = vadd.f32 %v296, %v688
        %v703 = vadd.f32 %v297, %v691
        %v704 = vadd.f32 %v298, %v696
        %v705 = vadd.f32 %v299, %v699
        %706 = vst [vmem:[#allocation2] sm:$0xff] %v702
        %707 = vst [vmem:[#allocation2 + $0x8] sm:$0xff] %v703
        %708 = vst [vmem:[#allocation2 + $0x10] sm:$0xff] %v704
        %709 = vst [vmem:[#allocation2 + $0x18] sm:$0xff] %v705
        %p710 = scmp.eq.s32.totalorder %s21, 1
        // Predicated region
        $region60: #{nlayer_discriminator_forward.15} parent=50 // pred_check
          %p711 = pneg %p710
        $region61: #{nlayer_discriminator_forward.15} parent=50 // pred_check_branch
          %713 = sbr.rel (%p711) target = $region63
        $region62: #{nlayer_discriminator_forward.15} parent=50 // pred_region
          %v714 = vld [vmem:[#allocation2] sm:$0xff]
          %v715 = vld [vmem:[#allocation2 + $0x8] sm:$0xff]
          %v716 = vld [vmem:[#allocation2 + $0x10] sm:$0xff]
          %v717 = vld [vmem:[#allocation2 + $0x18] sm:$0xff]
          %v718 = vld [vmem:[%s277] sm:$0x1]
          %v720 = vlaneseq
          %v721 = vshrl.u32 %v720, 7
          %v722 = vsub.s32 0, %v721
          %v723 = vrot.slane %v718, %v722
          %v725 = vadd.f32 %v714, %v723
          %v726 = vadd.f32 %v715, %v723
          %v727 = vadd.f32 %v716, %v723
          %v728 = vadd.f32 %v717, %v723
          %729 = vst [vmem:[%s285] sm:$0xff] %v725
          %730 = vst [vmem:[%s285 + $0x8] sm:$0xff] %v726
          %731 = vst [vmem:[%s285 + $0x10] sm:$0xff] %v727
          %732 = vst [vmem:[%s285 + $0x18] sm:$0xff] %v728
        $region63: #{nlayer_discriminator_forward.15} parent=50 // pred_fallthru
          _
        %s733 = smul.u32 4, %s19
        %p734 = scmp.lt.s32.totalorder %s733, 7
        %s735 = scalar_select %p734, %s733, 7
        %p736 = scmp.lt.s32.totalorder %s20, 0
        %s737 = scalar_select %p736, %s20, 0
        %s738 = sadd.s32 %s737, %s735
        %s739 = smul.addr %s738, 8
        %s740 = scalar_lea.vmem %s3, %s739
        // Predicated region
        $region64: #{nlayer_discriminator_forward.15} parent=50 // pred_check
          %p741 = pneg %p135
        $region65: #{nlayer_discriminator_forward.15} parent=50 // pred_check_branch
          %743 = sbr.rel (%p741) target = $region67
        $region66: #{nlayer_discriminator_forward.15} parent=50 // pred_region
          %s744 = smul.u32 4, %s19
        $region67: #{nlayer_discriminator_forward.15} parent=50 // pred_fallthru
          _
      $region51: #{nlayer_discriminator_forward.15} parent=5 // pred_fallthru
        _
      %p745 = scmp.le.s32.totalorder 2, %s9
      // Predicated region
      $region68: #{nlayer_discriminator_forward.15} parent=5 // pred_check
        %p746 = pneg %p745
      $region69: #{nlayer_discriminator_forward.15} parent=5 // pred_check_branch
        %748 = sbr.rel (%p746) target = $region71
      $region70: #{nlayer_discriminator_forward.15} parent=5 // pred_region
        %s749 = ssub.s32 %s9, 2
        // Predicated region
        $region72: #{nlayer_discriminator_forward.15} parent=70 // pred_check
          %p750 = pneg %p141
        $region73: #{nlayer_discriminator_forward.15} parent=70 // pred_check_branch
          %752 = sbr.rel (%p750) target = $region75
        $region74: #{nlayer_discriminator_forward.15} parent=70 // pred_region
          %s753 = smul.u32 4, %s22
          %p754 = scmp.lt.s32.totalorder %s753, 7
          %s755 = scalar_select %p754, %s753, 7
          %p756 = scmp.lt.s32.totalorder %s23, 0
          %s757 = scalar_select %p756, %s23, 0
          %s758 = sadd.s32 %s757, %s755
          %s759 = smul.addr %s758, 8
          %s760 = scalar_lea.vmem %s3, %s759
        $region75: #{nlayer_discriminator_forward.15} parent=70 // pred_fallthru
          _
      $region71: #{nlayer_discriminator_forward.15} parent=5 // pred_fallthru
        _
    $region6: #{nlayer_discriminator_forward.15} parent=1 // loop_footer
      %s13 = sadd.s32 1, %s9
    $region7: #{nlayer_discriminator_forward.15} parent=1 // loop_footer_branch
      %8 = sbr.rel target = $region3
    $region8: #{nlayer_discriminator_forward.15} parent=1 // loop_exit
      _

</llo_original>
